<compile_context>
chip_gen: v6e
topology: v6e:2x2x1
jax: 0.10.0
libtpu: 0.0.40
codegen_flags: <defaults>
</compile_context>

<pallas_src>
import functools

import jax
import jax.numpy as jnp
from jax import lax
from jax.experimental import pallas as pl
from jax.experimental.pallas import tpu as pltpu


# ---------------------------------------------------------------------------
# Pallas kernel: one time-chunk of BOTH directions' GRU recurrences (interleaved)
# ---------------------------------------------------------------------------
def _gru_chunk_kernel(x_ref, wih_ref, whh_ref, gib_ref, bhn_ref, o_ref,
                      h_ref, gi_ref, *, hidden_dim, unroll, storage_dtype):
    """Grid axis 0 = time chunk (sequential carry through h_ref).

    x_ref  : (2, Tt, B, Din)  input chunk (dir 0 = forward order, dir 1 = reversed)
    wih_ref: (2, Din, 3H)     input->hidden weights  (resident across chunks)
    whh_ref: (2, H, 3H)       hidden->hidden weights, gates fused on lanes (r|z|n)
    gib_ref: (2, 1, 3H) f32   b_ih with b_hh_r / b_hh_z folded in
    bhn_ref: (2, 1, H)  f32   b_hh_n (must stay separate: multiplied by r)
    o_ref  : (2, Tt, B, H)    per-timestep hidden states of this chunk
    h_ref  : (2, B, H)  f32   VMEM scratch: hidden state carried across chunks
    gi_ref : (2, Tt, B, 3H) f32  VMEM scratch: this chunk's input projections
    """
    H = hidden_dim
    Tt = x_ref.shape[1]

    @pl.when(pl.program_id(0) == 0)
    def _():
        h_ref[...] = jnp.zeros_like(h_ref)

    # ---- non-serial work first: input projection for the whole chunk --------------
    # Independent of the recurrence carry, so these MXU issues pipeline back-to-back
    # and overlap with the next chunk's DMA.
    def gi_step(t, carry):
        for d in (0, 1):                                   # static unrolled over dirs
            g = jnp.dot(x_ref[d, t], wih_ref[d],
                        preferred_element_type=jnp.float32)
            gi_ref[d, t] = g + gib_ref[d]
        return carry

    lax.fori_loop(0, Tt, gi_step, 0, unroll=unroll)

    bhn0 = bhn_ref[0]                                      # (1, H) f32
    bhn1 = bhn_ref[1]

    def cell(gi_t, gh, h, bhn):
        # PyTorch GRU, gate order r, z, n.
        r = jax.nn.sigmoid(gi_t[:, :H] + gh[:, :H])
        z = jax.nn.sigmoid(gi_t[:, H:2 * H] + gh[:, H:2 * H])
        n = jnp.tanh(gi_t[:, 2 * H:] + r * (gh[:, 2 * H:] + bhn))
        return (1.0 - z) * n + z * h

    def step(t, carry):
        h0, h1 = carry
        # Interleave the two independent recurrences: both fused (H,3H) hidden
        # matmuls are issued back-to-back so their latency chains overlap
        # (single-TensorCore v5e/v6e gain ~2x occupancy on the serial portion).
        gh0 = jnp.dot(h0.astype(storage_dtype), whh_ref[0],
                      preferred_element_type=jnp.float32)
        gh1 = jnp.dot(h1.astype(storage_dtype), whh_ref[1],
                      preferred_element_type=jnp.float32)
        h0n = cell(gi_ref[0, t], gh0, h0, bhn0)
        h1n = cell(gi_ref[1, t], gh1, h1, bhn1)
        o_ref[0, t] = h0n.astype(storage_dtype)
        o_ref[1, t] = h1n.astype(storage_dtype)
        return (h0n, h1n)

    h_fin = lax.fori_loop(0, Tt, step, (h_ref[0], h_ref[1]), unroll=unroll)
    h_ref[0] = h_fin[0]
    h_ref[1] = h_fin[1]


# ---------------------------------------------------------------------------
# Wrapper: one layer of the two GRU stacks (forward dir + backward dir)
# ---------------------------------------------------------------------------
def _pick_time_chunk(S, B, Din, H, storage_bytes, budget_bytes):
    """Largest Tt (divisor of S) whose double-buffered blocks + scratch fit the budget."""
    per_t = 2 * 2 * B * (Din + H) * storage_bytes      # x + out blocks, double-buffered
    per_t += 2 * B * 3 * H * 4                         # f32 gi scratch (single buffer)
    fixed = 2 * (2 * Din * 3 * H + 2 * H * 3 * H) * storage_bytes   # resident weights
    fixed += 2 * 2 * 4 * H * 4                         # biases
    fixed += 2 * B * H * 4                             # hidden-state scratch
    tt = max(1, min(S, (budget_bytes - fixed) // max(per_t, 1)))
    while S % tt:                                      # keep chunks uniform
        tt -= 1
    return int(tt)


def gru_layer_bidir_pallas(x_dirs, w_ih, w_hh, b_ih, b_hh, *,
                           time_chunk=None,
                           storage_dtype=jnp.float32,
                           vmem_budget_bytes=24 << 20):   # v7x (64 MiB VMEM)-safe default
    """x_dirs: (2, S, B, Din); w_ih: (2, Din, 3H); w_hh: (2, H, 3H); b_*: (2, 3H).
    Gate order r, z, n. Returns (2, S, B, H) in storage_dtype."""
    D, S, B, Din = x_dirs.shape
    H = w_hh.shape[1]
    assert D == 2 and w_hh.shape == (2, H, 3 * H)

    storage_bytes = jnp.dtype(storage_dtype).itemsize

    # Fold b_ih + (b_hh_r, b_hh_z) at trace time; keep b_hh_n separate.
    gib = b_ih + jnp.concatenate([b_hh[:, :2 * H],
                                  jnp.zeros((2, H), b_hh.dtype)], axis=-1)
    gib = gib.reshape(2, 1, 3 * H).astype(jnp.float32)
    bhn = b_hh[:, 2 * H:].reshape(2, 1, H).astype(jnp.float32)

    x_s = x_dirs.astype(storage_dtype)
    wih = w_ih.astype(storage_dtype)
    whh = w_hh.astype(storage_dtype)

    if time_chunk is None:
        time_chunk = _pick_time_chunk(S, B, Din, H, storage_bytes, vmem_budget_bytes)
    tt = max(1, min(int(time_chunk), S))
    while S % tt:
        tt -= 1
    n_chunks = S // tt

    # Back off the unroll when the per-step live (B, H) intermediates get large.
    unroll = min(tt, 8) if B * H * 4 <= 16 * 1024 else min(tt, 2)

    kernel = functools.partial(_gru_chunk_kernel, hidden_dim=H, unroll=unroll,
                               storage_dtype=storage_dtype)

    return pl.pallas_call(
        kernel,
        out_shape=jax.ShapeDtypeStruct((2, S, B, H), storage_dtype),
        grid_spec=pltpu.PrefetchScalarGridSpec(
            num_scalar_prefetch=0,
            grid=(n_chunks,),                                     # time-chunk axis
            in_specs=[
                pl.BlockSpec((2, tt, B, Din), lambda c: (0, c, 0, 0)),   # x chunk
                pl.BlockSpec((2, Din, 3 * H), lambda c: (0, 0, 0)),      # W_ih resident
                pl.BlockSpec((2, H, 3 * H), lambda c: (0, 0, 0)),        # W_hh resident
                pl.BlockSpec((2, 1, 3 * H), lambda c: (0, 0, 0)),        # folded biases
                pl.BlockSpec((2, 1, H), lambda c: (0, 0, 0)),            # b_hh_n
            ],
            out_specs=pl.BlockSpec((2, tt, B, H), lambda c: (0, c, 0, 0)),
            scratch_shapes=[
                pltpu.VMEM((2, B, H), jnp.float32),           # hidden-state carry
                pltpu.VMEM((2, tt, B, 3 * H), jnp.float32),   # per-chunk gi
            ],
        ),
        compiler_params=pltpu.CompilerParams(
            # Chunk axis carries the hidden state -> must run in order.
            dimension_semantics=("arbitrary",),
            vmem_limit_bytes=int(vmem_budget_bytes) + (8 << 20),
        ),
    )(x_s, wih, whh, gib, bhn)


# ---------------------------------------------------------------------------
# Glue (plain XLA): padded-sequence reversal, layer stacking, final gather/concat
# ---------------------------------------------------------------------------
def reverse_padded_sequence(x, lengths):
    """x: (S, B, D) time-major; reverses the valid prefix of each sequence."""
    S = x.shape[0]
    t = jnp.arange(S)[:, None]
    L = lengths[None, :]
    idx = jnp.where(t < L, L - 1 - t, t)
    return jnp.take_along_axis(x, idx[:, :, None], axis=0)


@functools.partial(jax.jit, static_argnames=("storage_dtype", "time_chunk"))
def birnn_wrapper_forward(params, inp, length, *, storage_dtype=jnp.float32,
                          time_chunk=None):
    """BiRNN_wrapper.forward: inp (B, S, word_dim), length (B,) -> (B, 2*hidden_dim)."""
    x = jnp.transpose(inp, (1, 0, 2)).astype(jnp.float32)        # (S, B, D) time-major
    x_rev = reverse_padded_sequence(x, length)
    h = jnp.stack([x, x_rev], axis=0)                            # (2, S, B, D)

    # Two independent multi-layer unidirectional GRU stacks (matches the module:
    # separate forward_encoder / backward_encoder, each num_layers deep, in_dim=H
    # for layers > 0).
    for layer in params["layers"]:
        h = gru_layer_bidir_pallas(h, layer["w_ih"], layer["w_hh"],
                                   layer["b_ih"], layer["b_hh"],
                                   storage_dtype=storage_dtype,
                                   time_chunk=time_chunk)

    forward_output = h[0].astype(jnp.float32)            # (S, B, H)
    reversed_backward_output = h[1].astype(jnp.float32)  # (S, B, H)
    b_idx = jnp.arange(inp.shape[0])
    t_idx = length - 1
    f_last = forward_output[t_idx, b_idx]                # (B, H)
    r_last = reversed_backward_output[t_idx, b_idx]      # (B, H)
    return jnp.concatenate([f_last, r_last], axis=-1)    # (B, 2H)


# ---------------------------------------------------------------------------
# Parameter init (reset_parameters: weights ~ N(0, 0.01), biases = 0).
# Stored pre-transposed, stacked over direction: w_ih (2, Din, 3H), w_hh (2, H, 3H).
# ---------------------------------------------------------------------------
def init_params(key, word_dim, hidden_dim, num_layers):
    layers = []
    for layer in range(num_layers):
        in_dim = word_dim if layer == 0 else hidden_dim
        key, k1, k2 = jax.random.split(key, 3)
        w_ih = 0.01 * jax.random.normal(k1, (2, in_dim, 3 * hidden_dim), jnp.float32)
        w_hh = 0.01 * jax.random.normal(k2, (2, hidden_dim, 3 * hidden_dim), jnp.float32)
        b_ih = jnp.zeros((2, 3 * hidden_dim), jnp.float32)
        b_hh = jnp.zeros((2, 3 * hidden_dim), jnp.float32)
        layers.append(dict(w_ih=w_ih, w_hh=w_hh, b_ih=b_ih, b_hh=b_hh))
    return {"layers": layers}


# ---------------------------------------------------------------------------
# Pure-JAX reference (lax.scan GRU) used only to check the kernel.
# ---------------------------------------------------------------------------
def _gru_layer_ref(x, w_ih, w_hh, b_ih, b_hh):
    S, B, _ = x.shape
    H = w_hh.shape[0]

    def step(h, xt):
        gi = xt @ w_ih + b_ih
        gh = h @ w_hh + b_hh
        r = jax.nn.sigmoid(gi[:, :H] + gh[:, :H])
        z = jax.nn.sigmoid(gi[:, H:2 * H] + gh[:, H:2 * H])
        n = jnp.tanh(gi[:, 2 * H:] + r * gh[:, 2 * H:])
        hn = (1.0 - z) * n + z * h
        return hn, hn

    _, out = lax.scan(step, jnp.zeros((B, H), jnp.float32), x)
    return out


def _forward_ref(params, inp, length):
    x = jnp.transpose(inp, (1, 0, 2)).astype(jnp.float32)
    x_rev = reverse_padded_sequence(x, length)
    f, b = x, x_rev
    for layer in params["layers"]:
        f = _gru_layer_ref(f, layer["w_ih"][0], layer["w_hh"][0],
                           layer["b_ih"][0], layer["b_hh"][0])
        b = _gru_layer_ref(b, layer["w_ih"][1], layer["w_hh"][1],
                           layer["b_ih"][1], layer["b_hh"][1])
    bi = jnp.arange(inp.shape[0])
    return jnp.concatenate([f[length - 1, bi], b[length - 1, bi]], axis=-1)


# ---------------------------------------------------------------------------
if __name__ == "__main__":
    B, S, WORD_DIM, HIDDEN_DIM, NUM_LAYERS = 2, 8, 16, 32, 2

    key = jax.random.PRNGKey(0)
    key, k_inp = jax.random.split(key)
    inp = jax.random.normal(k_inp, (B, S, WORD_DIM), jnp.float32)
    length = jnp.array([S, 5], dtype=jnp.int32)          # valid lengths per example

    params = init_params(key, WORD_DIM, HIDDEN_DIM, NUM_LAYERS)

    # f32 storage; time_chunk=4 -> 2 chunks, exercising the cross-chunk hidden carry.
    out = birnn_wrapper_forward(params, inp, length, time_chunk=4)
    out = jax.block_until_ready(out)
    assert out.shape == (B, 2 * HIDDEN_DIM), out.shape

    ref = _forward_ref(params, inp, length)
    assert jnp.allclose(out, ref, atol=1e-5, rtol=1e-5), "f32 kernel mismatch vs reference"

    # bf16 storage for x / W_ih / W_hh (halved VMEM + HBM traffic); gate math stays f32.
    out_bf16 = birnn_wrapper_forward(params, inp, length,
                                     storage_dtype=jnp.bfloat16, time_chunk=4)
    out_bf16 = jax.block_until_ready(out_bf16).astype(jnp.float32)
    assert jnp.allclose(out_bf16, ref, atol=1e-2, rtol=1e-2), "bf16 kernel drift too large"

    print("KERNEL_OK")
</pallas_src>

<mosaic_0001>
module attributes {stable_mosaic.version = 11 : i64} {
  func.func @_gru_chunk_kernel(%arg0: i32, %arg1: memref<2x4x2x16xf32, #tpu.memory_space<vmem>>, %arg2: memref<2x16x96xf32, #tpu.memory_space<vmem>>, %arg3: memref<2x32x96xf32, #tpu.memory_space<vmem>>, %arg4: memref<2x1x96xf32, #tpu.memory_space<vmem>>, %arg5: memref<2x1x32xf32, #tpu.memory_space<vmem>>, %arg6: memref<2x4x2x32xf32, #tpu.memory_space<vmem>>, %arg7: memref<2x2x32xf32, #tpu.memory_space<vmem>>, %arg8: memref<2x4x2x96xf32, #tpu.memory_space<vmem>>) attributes {dimension_semantics = [#tpu.dimension_semantics<arbitrary>], iteration_bounds = array<i64: 2>, scalar_prefetch = 0 : i64, scratch_operands = 2 : i64, tpu.core_type = #tpu.core_type<tc>, window_params = [{transform_indices = @transform_0, window_bounds = array<i64: 2, 4, 2, 16>}, {pipeline_mode = #tpu.pipeline_mode<synchronous>, transform_indices = @transform_1, window_bounds = array<i64: 2, 16, 96>}, {pipeline_mode = #tpu.pipeline_mode<synchronous>, transform_indices = @transform_2, window_bounds = array<i64: 2, 32, 96>}, {pipeline_mode = #tpu.pipeline_mode<synchronous>, transform_indices = @transform_3, window_bounds = array<i64: 2, 1, 96>}, {pipeline_mode = #tpu.pipeline_mode<synchronous>, transform_indices = @transform_4, window_bounds = array<i64: 2, 1, 32>}, {transform_indices = @transform_5, window_bounds = array<i64: 2, 4, 2, 32>}]} {
    %c0_i32 = arith.constant 0 : i32
    %0 = arith.cmpi eq, %arg0, %c0_i32 : i32
    %1 = arith.extui %0 : i1 to i32
    %c0_i32_0 = arith.constant 0 : i32
    %2 = arith.cmpi ne, %1, %c0_i32_0 : i32
    scf.if %2 {
      %cst_230 = arith.constant 0.000000e+00 : f32
      %433 = vector.broadcast %cst_230 : f32 to vector<2x2x32xf32>
      %c0_231 = arith.constant 0 : index
      %c0_232 = arith.constant 0 : index
      %c0_233 = arith.constant 0 : index
      %434 = vector.load %arg7[%c0_231, %c0_232, %c0_233] : memref<2x2x32xf32, #tpu.memory_space<vmem>>, vector<2x2x32xf32>
      tpu.vector_store %arg7[%c0_231, %c0_232, %c0_233], %433 {strides = array<i32>} : memref<2x2x32xf32, #tpu.memory_space<vmem>>, vector<2x2x32xf32>,
    } else {
    }
    %c0_i32_1 = arith.constant 0 : i32
    %c0 = arith.constant 0 : index
    %3 = arith.index_cast %c0_i32_1 : i32 to index
    %c0_2 = arith.constant 0 : index
    %c0_3 = arith.constant 0 : index
    %4 = vector.load %arg1[%c0, %3, %c0_2, %c0_3] : memref<2x4x2x16xf32, #tpu.memory_space<vmem>>, vector<1x1x2x16xf32>
    %5 = vector.shape_cast %4 : vector<1x1x2x16xf32> to vector<2x16xf32>
    %c0_4 = arith.constant 0 : index
    %c0_5 = arith.constant 0 : index
    %c0_6 = arith.constant 0 : index
    %6 = vector.load %arg2[%c0_4, %c0_5, %c0_6] : memref<2x16x96xf32, #tpu.memory_space<vmem>>, vector<1x16x96xf32>
    %7 = vector.shape_cast %6 : vector<1x16x96xf32> to vector<16x96xf32>
    %cst = arith.constant dense<0.000000e+00> : vector<2x96xf32>
    %8 = tpu.matmul %5, %7, %cst {dimension_numbers = #tpu.dot_dimension_numbers<[1], [0], [0], [1], [0, 0, 1, 1], [], []>} : vector<2x16xf32>, vector<16x96xf32>, vector<2x96xf32> -> vector<2x96xf32>
    %c0_7 = arith.constant 0 : index
    %c0_8 = arith.constant 0 : index
    %c0_9 = arith.constant 0 : index
    %9 = vector.load %arg4[%c0_7, %c0_8, %c0_9] : memref<2x1x96xf32, #tpu.memory_space<vmem>>, vector<1x1x96xf32>
    %10 = vector.shape_cast %9 : vector<1x1x96xf32> to vector<1x96xf32>
    %11 = vector.broadcast %10 : vector<1x96xf32> to vector<2x96xf32>
    %12 = arith.addf %8, %11 : vector<2x96xf32>
    %c0_10 = arith.constant 0 : index
    %13 = arith.index_cast %c0_i32_1 : i32 to index
    %c0_11 = arith.constant 0 : index
    %c0_12 = arith.constant 0 : index
    %14 = vector.load %arg8[%c0_10, %13, %c0_11, %c0_12] : memref<2x4x2x96xf32, #tpu.memory_space<vmem>>, vector<1x1x2x96xf32>
    %15 = vector.shape_cast %14 : vector<1x1x2x96xf32> to vector<2x96xf32>
    %16 = vector.shape_cast %12 : vector<2x96xf32> to vector<1x1x2x96xf32>
    tpu.vector_store %arg8[%c0_10, %13, %c0_11, %c0_12], %16 {strides = array<i32>} : memref<2x4x2x96xf32, #tpu.memory_space<vmem>>, vector<1x1x2x96xf32>,
    %c1 = arith.constant 1 : index
    %17 = arith.index_cast %c0_i32_1 : i32 to index
    %c0_13 = arith.constant 0 : index
    %c0_14 = arith.constant 0 : index
    %18 = vector.load %arg1[%c1, %17, %c0_13, %c0_14] : memref<2x4x2x16xf32, #tpu.memory_space<vmem>>, vector<1x1x2x16xf32>
    %19 = vector.shape_cast %18 : vector<1x1x2x16xf32> to vector<2x16xf32>
    %c1_15 = arith.constant 1 : index
    %c0_16 = arith.constant 0 : index
    %c0_17 = arith.constant 0 : index
    %20 = vector.load %arg2[%c1_15, %c0_16, %c0_17] : memref<2x16x96xf32, #tpu.memory_space<vmem>>, vector<1x16x96xf32>
    %21 = vector.shape_cast %20 : vector<1x16x96xf32> to vector<16x96xf32>
    %cst_18 = arith.constant dense<0.000000e+00> : vector<2x96xf32>
    %22 = tpu.matmul %19, %21, %cst_18 {dimension_numbers = #tpu.dot_dimension_numbers<[1], [0], [0], [1], [0, 0, 1, 1], [], []>} : vector<2x16xf32>, vector<16x96xf32>, vector<2x96xf32> -> vector<2x96xf32>
    %c1_19 = arith.constant 1 : index
    %c0_20 = arith.constant 0 : index
    %c0_21 = arith.constant 0 : index
    %23 = vector.load %arg4[%c1_19, %c0_20, %c0_21] : memref<2x1x96xf32, #tpu.memory_space<vmem>>, vector<1x1x96xf32>
    %24 = vector.shape_cast %23 : vector<1x1x96xf32> to vector<1x96xf32>
    %25 = vector.broadcast %24 : vector<1x96xf32> to vector<2x96xf32>
    %26 = arith.addf %22, %25 : vector<2x96xf32>
    %c1_22 = arith.constant 1 : index
    %27 = arith.index_cast %c0_i32_1 : i32 to index
    %c0_23 = arith.constant 0 : index
    %c0_24 = arith.constant 0 : index
    %28 = vector.load %arg8[%c1_22, %27, %c0_23, %c0_24] : memref<2x4x2x96xf32, #tpu.memory_space<vmem>>, vector<1x1x2x96xf32>
    %29 = vector.shape_cast %28 : vector<1x1x2x96xf32> to vector<2x96xf32>
    %30 = vector.shape_cast %26 : vector<2x96xf32> to vector<1x1x2x96xf32>
    tpu.vector_store %arg8[%c1_22, %27, %c0_23, %c0_24], %30 {strides = array<i32>} : memref<2x4x2x96xf32, #tpu.memory_space<vmem>>, vector<1x1x2x96xf32>,
    %c1_i32 = arith.constant 1 : i32
    %c0_25 = arith.constant 0 : index
    %31 = arith.index_cast %c1_i32 : i32 to index
    %c0_26 = arith.constant 0 : index
    %c0_27 = arith.constant 0 : index
    %32 = vector.load %arg1[%c0_25, %31, %c0_26, %c0_27] : memref<2x4x2x16xf32, #tpu.memory_space<vmem>>, vector<1x1x2x16xf32>
    %33 = vector.shape_cast %32 : vector<1x1x2x16xf32> to vector<2x16xf32>
    %c0_28 = arith.constant 0 : index
    %c0_29 = arith.constant 0 : index
    %c0_30 = arith.constant 0 : index
    %34 = vector.load %arg2[%c0_28, %c0_29, %c0_30] : memref<2x16x96xf32, #tpu.memory_space<vmem>>, vector<1x16x96xf32>
    %35 = vector.shape_cast %34 : vector<1x16x96xf32> to vector<16x96xf32>
    %cst_31 = arith.constant dense<0.000000e+00> : vector<2x96xf32>
    %36 = tpu.matmul %33, %35, %cst_31 {dimension_numbers = #tpu.dot_dimension_numbers<[1], [0], [0], [1], [0, 0, 1, 1], [], []>} : vector<2x16xf32>, vector<16x96xf32>, vector<2x96xf32> -> vector<2x96xf32>
    %c0_32 = arith.constant 0 : index
    %c0_33 = arith.constant 0 : index
    %c0_34 = arith.constant 0 : index
    %37 = vector.load %arg4[%c0_32, %c0_33, %c0_34] : memref<2x1x96xf32, #tpu.memory_space<vmem>>, vector<1x1x96xf32>
    %38 = vector.shape_cast %37 : vector<1x1x96xf32> to vector<1x96xf32>
    %39 = vector.broadcast %38 : vector<1x96xf32> to vector<2x96xf32>
    %40 = arith.addf %36, %39 : vector<2x96xf32>
    %c0_35 = arith.constant 0 : index
    %41 = arith.index_cast %c1_i32 : i32 to index
    %c0_36 = arith.constant 0 : index
    %c0_37 = arith.constant 0 : index
    %42 = vector.load %arg8[%c0_35, %41, %c0_36, %c0_37] : memref<2x4x2x96xf32, #tpu.memory_space<vmem>>, vector<1x1x2x96xf32>
    %43 = vector.shape_cast %42 : vector<1x1x2x96xf32> to vector<2x96xf32>
    %44 = vector.shape_cast %40 : vector<2x96xf32> to vector<1x1x2x96xf32>
    tpu.vector_store %arg8[%c0_35, %41, %c0_36, %c0_37], %44 {strides = array<i32>} : memref<2x4x2x96xf32, #tpu.memory_space<vmem>>, vector<1x1x2x96xf32>,
    %c1_38 = arith.constant 1 : index
    %45 = arith.index_cast %c1_i32 : i32 to index
    %c0_39 = arith.constant 0 : index
    %c0_40 = arith.constant 0 : index
    %46 = vector.load %arg1[%c1_38, %45, %c0_39, %c0_40] : memref<2x4x2x16xf32, #tpu.memory_space<vmem>>, vector<1x1x2x16xf32>
    %47 = vector.shape_cast %46 : vector<1x1x2x16xf32> to vector<2x16xf32>
    %c1_41 = arith.constant 1 : index
    %c0_42 = arith.constant 0 : index
    %c0_43 = arith.constant 0 : index
    %48 = vector.load %arg2[%c1_41, %c0_42, %c0_43] : memref<2x16x96xf32, #tpu.memory_space<vmem>>, vector<1x16x96xf32>
    %49 = vector.shape_cast %48 : vector<1x16x96xf32> to vector<16x96xf32>
    %cst_44 = arith.constant dense<0.000000e+00> : vector<2x96xf32>
    %50 = tpu.matmul %47, %49, %cst_44 {dimension_numbers = #tpu.dot_dimension_numbers<[1], [0], [0], [1], [0, 0, 1, 1], [], []>} : vector<2x16xf32>, vector<16x96xf32>, vector<2x96xf32> -> vector<2x96xf32>
    %c1_45 = arith.constant 1 : index
    %c0_46 = arith.constant 0 : index
    %c0_47 = arith.constant 0 : index
    %51 = vector.load %arg4[%c1_45, %c0_46, %c0_47] : memref<2x1x96xf32, #tpu.memory_space<vmem>>, vector<1x1x96xf32>
    %52 = vector.shape_cast %51 : vector<1x1x96xf32> to vector<1x96xf32>
    %53 = vector.broadcast %52 : vector<1x96xf32> to vector<2x96xf32>
    %54 = arith.addf %50, %53 : vector<2x96xf32>
    %c1_48 = arith.constant 1 : index
    %55 = arith.index_cast %c1_i32 : i32 to index
    %c0_49 = arith.constant 0 : index
    %c0_50 = arith.constant 0 : index
    %56 = vector.load %arg8[%c1_48, %55, %c0_49, %c0_50] : memref<2x4x2x96xf32, #tpu.memory_space<vmem>>, vector<1x1x2x96xf32>
    %57 = vector.shape_cast %56 : vector<1x1x2x96xf32> to vector<2x96xf32>
    %58 = vector.shape_cast %54 : vector<2x96xf32> to vector<1x1x2x96xf32>
    tpu.vector_store %arg8[%c1_48, %55, %c0_49, %c0_50], %58 {strides = array<i32>} : memref<2x4x2x96xf32, #tpu.memory_space<vmem>>, vector<1x1x2x96xf32>,
    %c2_i32 = arith.constant 2 : i32
    %c0_51 = arith.constant 0 : index
    %59 = arith.index_cast %c2_i32 : i32 to index
    %c0_52 = arith.constant 0 : index
    %c0_53 = arith.constant 0 : index
    %60 = vector.load %arg1[%c0_51, %59, %c0_52, %c0_53] : memref<2x4x2x16xf32, #tpu.memory_space<vmem>>, vector<1x1x2x16xf32>
    %61 = vector.shape_cast %60 : vector<1x1x2x16xf32> to vector<2x16xf32>
    %c0_54 = arith.constant 0 : index
    %c0_55 = arith.constant 0 : index
    %c0_56 = arith.constant 0 : index
    %62 = vector.load %arg2[%c0_54, %c0_55, %c0_56] : memref<2x16x96xf32, #tpu.memory_space<vmem>>, vector<1x16x96xf32>
    %63 = vector.shape_cast %62 : vector<1x16x96xf32> to vector<16x96xf32>
    %cst_57 = arith.constant dense<0.000000e+00> : vector<2x96xf32>
    %64 = tpu.matmul %61, %63, %cst_57 {dimension_numbers = #tpu.dot_dimension_numbers<[1], [0], [0], [1], [0, 0, 1, 1], [], []>} : vector<2x16xf32>, vector<16x96xf32>, vector<2x96xf32> -> vector<2x96xf32>
    %c0_58 = arith.constant 0 : index
    %c0_59 = arith.constant 0 : index
    %c0_60 = arith.constant 0 : index
    %65 = vector.load %arg4[%c0_58, %c0_59, %c0_60] : memref<2x1x96xf32, #tpu.memory_space<vmem>>, vector<1x1x96xf32>
    %66 = vector.shape_cast %65 : vector<1x1x96xf32> to vector<1x96xf32>
    %67 = vector.broadcast %66 : vector<1x96xf32> to vector<2x96xf32>
    %68 = arith.addf %64, %67 : vector<2x96xf32>
    %c0_61 = arith.constant 0 : index
    %69 = arith.index_cast %c2_i32 : i32 to index
    %c0_62 = arith.constant 0 : index
    %c0_63 = arith.constant 0 : index
    %70 = vector.load %arg8[%c0_61, %69, %c0_62, %c0_63] : memref<2x4x2x96xf32, #tpu.memory_space<vmem>>, vector<1x1x2x96xf32>
    %71 = vector.shape_cast %70 : vector<1x1x2x96xf32> to vector<2x96xf32>
    %72 = vector.shape_cast %68 : vector<2x96xf32> to vector<1x1x2x96xf32>
    tpu.vector_store %arg8[%c0_61, %69, %c0_62, %c0_63], %72 {strides = array<i32>} : memref<2x4x2x96xf32, #tpu.memory_space<vmem>>, vector<1x1x2x96xf32>,
    %c1_64 = arith.constant 1 : index
    %73 = arith.index_cast %c2_i32 : i32 to index
    %c0_65 = arith.constant 0 : index
    %c0_66 = arith.constant 0 : index
    %74 = vector.load %arg1[%c1_64, %73, %c0_65, %c0_66] : memref<2x4x2x16xf32, #tpu.memory_space<vmem>>, vector<1x1x2x16xf32>
    %75 = vector.shape_cast %74 : vector<1x1x2x16xf32> to vector<2x16xf32>
    %c1_67 = arith.constant 1 : index
    %c0_68 = arith.constant 0 : index
    %c0_69 = arith.constant 0 : index
    %76 = vector.load %arg2[%c1_67, %c0_68, %c0_69] : memref<2x16x96xf32, #tpu.memory_space<vmem>>, vector<1x16x96xf32>
    %77 = vector.shape_cast %76 : vector<1x16x96xf32> to vector<16x96xf32>
    %cst_70 = arith.constant dense<0.000000e+00> : vector<2x96xf32>
    %78 = tpu.matmul %75, %77, %cst_70 {dimension_numbers = #tpu.dot_dimension_numbers<[1], [0], [0], [1], [0, 0, 1, 1], [], []>} : vector<2x16xf32>, vector<16x96xf32>, vector<2x96xf32> -> vector<2x96xf32>
    %c1_71 = arith.constant 1 : index
    %c0_72 = arith.constant 0 : index
    %c0_73 = arith.constant 0 : index
    %79 = vector.load %arg4[%c1_71, %c0_72, %c0_73] : memref<2x1x96xf32, #tpu.memory_space<vmem>>, vector<1x1x96xf32>
    %80 = vector.shape_cast %79 : vector<1x1x96xf32> to vector<1x96xf32>
    %81 = vector.broadcast %80 : vector<1x96xf32> to vector<2x96xf32>
    %82 = arith.addf %78, %81 : vector<2x96xf32>
    %c1_74 = arith.constant 1 : index
    %83 = arith.index_cast %c2_i32 : i32 to index
    %c0_75 = arith.constant 0 : index
    %c0_76 = arith.constant 0 : index
    %84 = vector.load %arg8[%c1_74, %83, %c0_75, %c0_76] : memref<2x4x2x96xf32, #tpu.memory_space<vmem>>, vector<1x1x2x96xf32>
    %85 = vector.shape_cast %84 : vector<1x1x2x96xf32> to vector<2x96xf32>
    %86 = vector.shape_cast %82 : vector<2x96xf32> to vector<1x1x2x96xf32>
    tpu.vector_store %arg8[%c1_74, %83, %c0_75, %c0_76], %86 {strides = array<i32>} : memref<2x4x2x96xf32, #tpu.memory_space<vmem>>, vector<1x1x2x96xf32>,
    %c3_i32 = arith.constant 3 : i32
    %c0_77 = arith.constant 0 : index
    %87 = arith.index_cast %c3_i32 : i32 to index
    %c0_78 = arith.constant 0 : index
    %c0_79 = arith.constant 0 : index
    %88 = vector.load %arg1[%c0_77, %87, %c0_78, %c0_79] : memref<2x4x2x16xf32, #tpu.memory_space<vmem>>, vector<1x1x2x16xf32>
    %89 = vector.shape_cast %88 : vector<1x1x2x16xf32> to vector<2x16xf32>
    %c0_80 = arith.constant 0 : index
    %c0_81 = arith.constant 0 : index
    %c0_82 = arith.constant 0 : index
    %90 = vector.load %arg2[%c0_80, %c0_81, %c0_82] : memref<2x16x96xf32, #tpu.memory_space<vmem>>, vector<1x16x96xf32>
    %91 = vector.shape_cast %90 : vector<1x16x96xf32> to vector<16x96xf32>
    %cst_83 = arith.constant dense<0.000000e+00> : vector<2x96xf32>
    %92 = tpu.matmul %89, %91, %cst_83 {dimension_numbers = #tpu.dot_dimension_numbers<[1], [0], [0], [1], [0, 0, 1, 1], [], []>} : vector<2x16xf32>, vector<16x96xf32>, vector<2x96xf32> -> vector<2x96xf32>
    %c0_84 = arith.constant 0 : index
    %c0_85 = arith.constant 0 : index
    %c0_86 = arith.constant 0 : index
    %93 = vector.load %arg4[%c0_84, %c0_85, %c0_86] : memref<2x1x96xf32, #tpu.memory_space<vmem>>, vector<1x1x96xf32>
    %94 = vector.shape_cast %93 : vector<1x1x96xf32> to vector<1x96xf32>
    %95 = vector.broadcast %94 : vector<1x96xf32> to vector<2x96xf32>
    %96 = arith.addf %92, %95 : vector<2x96xf32>
    %c0_87 = arith.constant 0 : index
    %97 = arith.index_cast %c3_i32 : i32 to index
    %c0_88 = arith.constant 0 : index
    %c0_89 = arith.constant 0 : index
    %98 = vector.load %arg8[%c0_87, %97, %c0_88, %c0_89] : memref<2x4x2x96xf32, #tpu.memory_space<vmem>>, vector<1x1x2x96xf32>
    %99 = vector.shape_cast %98 : vector<1x1x2x96xf32> to vector<2x96xf32>
    %100 = vector.shape_cast %96 : vector<2x96xf32> to vector<1x1x2x96xf32>
    tpu.vector_store %arg8[%c0_87, %97, %c0_88, %c0_89], %100 {strides = array<i32>} : memref<2x4x2x96xf32, #tpu.memory_space<vmem>>, vector<1x1x2x96xf32>,
    %c1_90 = arith.constant 1 : index
    %101 = arith.index_cast %c3_i32 : i32 to index
    %c0_91 = arith.constant 0 : index
    %c0_92 = arith.constant 0 : index
    %102 = vector.load %arg1[%c1_90, %101, %c0_91, %c0_92] : memref<2x4x2x16xf32, #tpu.memory_space<vmem>>, vector<1x1x2x16xf32>
    %103 = vector.shape_cast %102 : vector<1x1x2x16xf32> to vector<2x16xf32>
    %c1_93 = arith.constant 1 : index
    %c0_94 = arith.constant 0 : index
    %c0_95 = arith.constant 0 : index
    %104 = vector.load %arg2[%c1_93, %c0_94, %c0_95] : memref<2x16x96xf32, #tpu.memory_space<vmem>>, vector<1x16x96xf32>
    %105 = vector.shape_cast %104 : vector<1x16x96xf32> to vector<16x96xf32>
    %cst_96 = arith.constant dense<0.000000e+00> : vector<2x96xf32>
    %106 = tpu.matmul %103, %105, %cst_96 {dimension_numbers = #tpu.dot_dimension_numbers<[1], [0], [0], [1], [0, 0, 1, 1], [], []>} : vector<2x16xf32>, vector<16x96xf32>, vector<2x96xf32> -> vector<2x96xf32>
    %c1_97 = arith.constant 1 : index
    %c0_98 = arith.constant 0 : index
    %c0_99 = arith.constant 0 : index
    %107 = vector.load %arg4[%c1_97, %c0_98, %c0_99] : memref<2x1x96xf32, #tpu.memory_space<vmem>>, vector<1x1x96xf32>
    %108 = vector.shape_cast %107 : vector<1x1x96xf32> to vector<1x96xf32>
    %109 = vector.broadcast %108 : vector<1x96xf32> to vector<2x96xf32>
    %110 = arith.addf %106, %109 : vector<2x96xf32>
    %c1_100 = arith.constant 1 : index
    %111 = arith.index_cast %c3_i32 : i32 to index
    %c0_101 = arith.constant 0 : index
    %c0_102 = arith.constant 0 : index
    %112 = vector.load %arg8[%c1_100, %111, %c0_101, %c0_102] : memref<2x4x2x96xf32, #tpu.memory_space<vmem>>, vector<1x1x2x96xf32>
    %113 = vector.shape_cast %112 : vector<1x1x2x96xf32> to vector<2x96xf32>
    %114 = vector.shape_cast %110 : vector<2x96xf32> to vector<1x1x2x96xf32>
    tpu.vector_store %arg8[%c1_100, %111, %c0_101, %c0_102], %114 {strides = array<i32>} : memref<2x4x2x96xf32, #tpu.memory_space<vmem>>, vector<1x1x2x96xf32>,
    %c4_i32 = arith.constant 4 : i32
    %c0_103 = arith.constant 0 : index
    %c0_104 = arith.constant 0 : index
    %c0_105 = arith.constant 0 : index
    %115 = vector.load %arg5[%c0_103, %c0_104, %c0_105] : memref<2x1x32xf32, #tpu.memory_space<vmem>>, vector<1x1x32xf32>
    %116 = vector.shape_cast %115 : vector<1x1x32xf32> to vector<1x32xf32>
    %c1_106 = arith.constant 1 : index
    %c0_107 = arith.constant 0 : index
    %c0_108 = arith.constant 0 : index
    %117 = vector.load %arg5[%c1_106, %c0_107, %c0_108] : memref<2x1x32xf32, #tpu.memory_space<vmem>>, vector<1x1x32xf32>
    %118 = vector.shape_cast %117 : vector<1x1x32xf32> to vector<1x32xf32>
    %c0_109 = arith.constant 0 : index
    %c0_110 = arith.constant 0 : index
    %c0_111 = arith.constant 0 : index
    %119 = vector.load %arg7[%c0_109, %c0_110, %c0_111] : memref<2x2x32xf32, #tpu.memory_space<vmem>>, vector<1x2x32xf32>
    %120 = vector.shape_cast %119 : vector<1x2x32xf32> to vector<2x32xf32>
    %c1_112 = arith.constant 1 : index
    %c0_113 = arith.constant 0 : index
    %c0_114 = arith.constant 0 : index
    %121 = vector.load %arg7[%c1_112, %c0_113, %c0_114] : memref<2x2x32xf32, #tpu.memory_space<vmem>>, vector<1x2x32xf32>
    %122 = vector.shape_cast %121 : vector<1x2x32xf32> to vector<2x32xf32>
    %c0_i32_115 = arith.constant 0 : i32
    %c0_116 = arith.constant 0 : index
    %c0_117 = arith.constant 0 : index
    %c0_118 = arith.constant 0 : index
    %123 = vector.load %arg3[%c0_116, %c0_117, %c0_118] : memref<2x32x96xf32, #tpu.memory_space<vmem>>, vector<1x32x96xf32>
    %124 = vector.shape_cast %123 : vector<1x32x96xf32> to vector<32x96xf32>
    %cst_119 = arith.constant dense<0.000000e+00> : vector<2x96xf32>
    %125 = tpu.matmul %120, %124, %cst_119 {dimension_numbers = #tpu.dot_dimension_numbers<[1], [0], [0], [1], [0, 0, 1, 1], [], []>} : vector<2x32xf32>, vector<32x96xf32>, vector<2x96xf32> -> vector<2x96xf32>
    %c1_120 = arith.constant 1 : index
    %c0_121 = arith.constant 0 : index
    %c0_122 = arith.constant 0 : index
    %126 = vector.load %arg3[%c1_120, %c0_121, %c0_122] : memref<2x32x96xf32, #tpu.memory_space<vmem>>, vector<1x32x96xf32>
    %127 = vector.shape_cast %126 : vector<1x32x96xf32> to vector<32x96xf32>
    %cst_123 = arith.constant dense<0.000000e+00> : vector<2x96xf32>
    %128 = tpu.matmul %122, %127, %cst_123 {dimension_numbers = #tpu.dot_dimension_numbers<[1], [0], [0], [1], [0, 0, 1, 1], [], []>} : vector<2x32xf32>, vector<32x96xf32>, vector<2x96xf32> -> vector<2x96xf32>
    %c0_124 = arith.constant 0 : index
    %129 = arith.index_cast %c0_i32_115 : i32 to index
    %c0_125 = arith.constant 0 : index
    %c0_126 = arith.constant 0 : index
    %130 = vector.load %arg8[%c0_124, %129, %c0_125, %c0_126] : memref<2x4x2x96xf32, #tpu.memory_space<vmem>>, vector<1x1x2x96xf32>
    %131 = vector.shape_cast %130 : vector<1x1x2x96xf32> to vector<2x96xf32>
    %132 = vector.extract_strided_slice %131 {offsets = [0, 0], sizes = [2, 32], strides = [1, 1]} : vector<2x96xf32> to vector<2x32xf32>
    %133 = vector.extract_strided_slice %125 {offsets = [0, 0], sizes = [2, 32], strides = [1, 1]} : vector<2x96xf32> to vector<2x32xf32>
    %134 = arith.addf %132, %133 : vector<2x32xf32>
    %135 = arith.negf %134 : vector<2x32xf32>
    %136 = math.exp %135 : vector<2x32xf32>
    %cst_127 = arith.constant 1.000000e+00 : f32
    %137 = vector.broadcast %cst_127 : f32 to vector<2x32xf32>
    %138 = arith.addf %137, %136 : vector<2x32xf32>
    %139 = arith.divf %137, %138 : vector<2x32xf32>
    %140 = vector.extract_strided_slice %131 {offsets = [0, 32], sizes = [2, 32], strides = [1, 1]} : vector<2x96xf32> to vector<2x32xf32>
    %141 = vector.extract_strided_slice %125 {offsets = [0, 32], sizes = [2, 32], strides = [1, 1]} : vector<2x96xf32> to vector<2x32xf32>
    %142 = arith.addf %140, %141 : vector<2x32xf32>
    %143 = arith.negf %142 : vector<2x32xf32>
    %144 = math.exp %143 : vector<2x32xf32>
    %cst_128 = arith.constant 1.000000e+00 : f32
    %145 = vector.broadcast %cst_128 : f32 to vector<2x32xf32>
    %146 = arith.addf %145, %144 : vector<2x32xf32>
    %147 = arith.divf %145, %146 : vector<2x32xf32>
    %148 = vector.extract_strided_slice %131 {offsets = [0, 64], sizes = [2, 32], strides = [1, 1]} : vector<2x96xf32> to vector<2x32xf32>
    %149 = vector.extract_strided_slice %125 {offsets = [0, 64], sizes = [2, 32], strides = [1, 1]} : vector<2x96xf32> to vector<2x32xf32>
    %150 = vector.broadcast %116 : vector<1x32xf32> to vector<2x32xf32>
    %151 = arith.addf %149, %150 : vector<2x32xf32>
    %152 = arith.mulf %139, %151 : vector<2x32xf32>
    %153 = arith.addf %148, %152 : vector<2x32xf32>
    %154 = math.tanh %153 : vector<2x32xf32>
    %cst_129 = arith.constant 1.000000e+00 : f32
    %155 = vector.broadcast %cst_129 : f32 to vector<2x32xf32>
    %156 = arith.subf %155, %147 : vector<2x32xf32>
    %157 = arith.mulf %156, %154 : vector<2x32xf32>
    %158 = arith.mulf %147, %120 : vector<2x32xf32>
    %159 = arith.addf %157, %158 : vector<2x32xf32>
    %c1_130 = arith.constant 1 : index
    %160 = arith.index_cast %c0_i32_115 : i32 to index
    %c0_131 = arith.constant 0 : index
    %c0_132 = arith.constant 0 : index
    %161 = vector.load %arg8[%c1_130, %160, %c0_131, %c0_132] : memref<2x4x2x96xf32, #tpu.memory_space<vmem>>, vector<1x1x2x96xf32>
    %162 = vector.shape_cast %161 : vector<1x1x2x96xf32> to vector<2x96xf32>
    %163 = vector.extract_strided_slice %162 {offsets = [0, 0], sizes = [2, 32], strides = [1, 1]} : vector<2x96xf32> to vector<2x32xf32>
    %164 = vector.extract_strided_slice %128 {offsets = [0, 0], sizes = [2, 32], strides = [1, 1]} : vector<2x96xf32> to vector<2x32xf32>
    %165 = arith.addf %163, %164 : vector<2x32xf32>
    %166 = arith.negf %165 : vector<2x32xf32>
    %167 = math.exp %166 : vector<2x32xf32>
    %cst_133 = arith.constant 1.000000e+00 : f32
    %168 = vector.broadcast %cst_133 : f32 to vector<2x32xf32>
    %169 = arith.addf %168, %167 : vector<2x32xf32>
    %170 = arith.divf %168, %169 : vector<2x32xf32>
    %171 = vector.extract_strided_slice %162 {offsets = [0, 32], sizes = [2, 32], strides = [1, 1]} : vector<2x96xf32> to vector<2x32xf32>
    %172 = vector.extract_strided_slice %128 {offsets = [0, 32], sizes = [2, 32], strides = [1, 1]} : vector<2x96xf32> to vector<2x32xf32>
    %173 = arith.addf %171, %172 : vector<2x32xf32>
    %174 = arith.negf %173 : vector<2x32xf32>
    %175 = math.exp %174 : vector<2x32xf32>
    %cst_134 = arith.constant 1.000000e+00 : f32
    %176 = vector.broadcast %cst_134 : f32 to vector<2x32xf32>
    %177 = arith.addf %176, %175 : vector<2x32xf32>
    %178 = arith.divf %176, %177 : vector<2x32xf32>
    %179 = vector.extract_strided_slice %162 {offsets = [0, 64], sizes = [2, 32], strides = [1, 1]} : vector<2x96xf32> to vector<2x32xf32>
    %180 = vector.extract_strided_slice %128 {offsets = [0, 64], sizes = [2, 32], strides = [1, 1]} : vector<2x96xf32> to vector<2x32xf32>
    %181 = vector.broadcast %118 : vector<1x32xf32> to vector<2x32xf32>
    %182 = arith.addf %180, %181 : vector<2x32xf32>
    %183 = arith.mulf %170, %182 : vector<2x32xf32>
    %184 = arith.addf %179, %183 : vector<2x32xf32>
    %185 = math.tanh %184 : vector<2x32xf32>
    %cst_135 = arith.constant 1.000000e+00 : f32
    %186 = vector.broadcast %cst_135 : f32 to vector<2x32xf32>
    %187 = arith.subf %186, %178 : vector<2x32xf32>
    %188 = arith.mulf %187, %185 : vector<2x32xf32>
    %189 = arith.mulf %178, %122 : vector<2x32xf32>
    %190 = arith.addf %188, %189 : vector<2x32xf32>
    %c0_136 = arith.constant 0 : index
    %191 = arith.index_cast %c0_i32_115 : i32 to index
    %c0_137 = arith.constant 0 : index
    %c0_138 = arith.constant 0 : index
    %192 = vector.load %arg6[%c0_136, %191, %c0_137, %c0_138] : memref<2x4x2x32xf32, #tpu.memory_space<vmem>>, vector<1x1x2x32xf32>
    %193 = vector.shape_cast %192 : vector<1x1x2x32xf32> to vector<2x32xf32>
    %194 = vector.shape_cast %159 : vector<2x32xf32> to vector<1x1x2x32xf32>
    tpu.vector_store %arg6[%c0_136, %191, %c0_137, %c0_138], %194 {strides = array<i32>} : memref<2x4x2x32xf32, #tpu.memory_space<vmem>>, vector<1x1x2x32xf32>,
    %c1_139 = arith.constant 1 : index
    %195 = arith.index_cast %c0_i32_115 : i32 to index
    %c0_140 = arith.constant 0 : index
    %c0_141 = arith.constant 0 : index
    %196 = vector.load %arg6[%c1_139, %195, %c0_140, %c0_141] : memref<2x4x2x32xf32, #tpu.memory_space<vmem>>, vector<1x1x2x32xf32>
    %197 = vector.shape_cast %196 : vector<1x1x2x32xf32> to vector<2x32xf32>
    %198 = vector.shape_cast %190 : vector<2x32xf32> to vector<1x1x2x32xf32>
    tpu.vector_store %arg6[%c1_139, %195, %c0_140, %c0_141], %198 {strides = array<i32>} : memref<2x4x2x32xf32, #tpu.memory_space<vmem>>, vector<1x1x2x32xf32>,
    %c1_i32_142 = arith.constant 1 : i32
    %c0_143 = arith.constant 0 : index
    %c0_144 = arith.constant 0 : index
    %c0_145 = arith.constant 0 : index
    %199 = vector.load %arg3[%c0_143, %c0_144, %c0_145] : memref<2x32x96xf32, #tpu.memory_space<vmem>>, vector<1x32x96xf32>
    %200 = vector.shape_cast %199 : vector<1x32x96xf32> to vector<32x96xf32>
    %cst_146 = arith.constant dense<0.000000e+00> : vector<2x96xf32>
    %201 = tpu.matmul %159, %200, %cst_146 {dimension_numbers = #tpu.dot_dimension_numbers<[1], [0], [0], [1], [0, 0, 1, 1], [], []>} : vector<2x32xf32>, vector<32x96xf32>, vector<2x96xf32> -> vector<2x96xf32>
    %c1_147 = arith.constant 1 : index
    %c0_148 = arith.constant 0 : index
    %c0_149 = arith.constant 0 : index
    %202 = vector.load %arg3[%c1_147, %c0_148, %c0_149] : memref<2x32x96xf32, #tpu.memory_space<vmem>>, vector<1x32x96xf32>
    %203 = vector.shape_cast %202 : vector<1x32x96xf32> to vector<32x96xf32>
    %cst_150 = arith.constant dense<0.000000e+00> : vector<2x96xf32>
    %204 = tpu.matmul %190, %203, %cst_150 {dimension_numbers = #tpu.dot_dimension_numbers<[1], [0], [0], [1], [0, 0, 1, 1], [], []>} : vector<2x32xf32>, vector<32x96xf32>, vector<2x96xf32> -> vector<2x96xf32>
    %c0_151 = arith.constant 0 : index
    %205 = arith.index_cast %c1_i32_142 : i32 to index
    %c0_152 = arith.constant 0 : index
    %c0_153 = arith.constant 0 : index
    %206 = vector.load %arg8[%c0_151, %205, %c0_152, %c0_153] : memref<2x4x2x96xf32, #tpu.memory_space<vmem>>, vector<1x1x2x96xf32>
    %207 = vector.shape_cast %206 : vector<1x1x2x96xf32> to vector<2x96xf32>
    %208 = vector.extract_strided_slice %207 {offsets = [0, 0], sizes = [2, 32], strides = [1, 1]} : vector<2x96xf32> to vector<2x32xf32>
    %209 = vector.extract_strided_slice %201 {offsets = [0, 0], sizes = [2, 32], strides = [1, 1]} : vector<2x96xf32> to vector<2x32xf32>
    %210 = arith.addf %208, %209 : vector<2x32xf32>
    %211 = arith.negf %210 : vector<2x32xf32>
    %212 = math.exp %211 : vector<2x32xf32>
    %cst_154 = arith.constant 1.000000e+00 : f32
    %213 = vector.broadcast %cst_154 : f32 to vector<2x32xf32>
    %214 = arith.addf %213, %212 : vector<2x32xf32>
    %215 = arith.divf %213, %214 : vector<2x32xf32>
    %216 = vector.extract_strided_slice %207 {offsets = [0, 32], sizes = [2, 32], strides = [1, 1]} : vector<2x96xf32> to vector<2x32xf32>
    %217 = vector.extract_strided_slice %201 {offsets = [0, 32], sizes = [2, 32], strides = [1, 1]} : vector<2x96xf32> to vector<2x32xf32>
    %218 = arith.addf %216, %217 : vector<2x32xf32>
    %219 = arith.negf %218 : vector<2x32xf32>
    %220 = math.exp %219 : vector<2x32xf32>
    %cst_155 = arith.constant 1.000000e+00 : f32
    %221 = vector.broadcast %cst_155 : f32 to vector<2x32xf32>
    %222 = arith.addf %221, %220 : vector<2x32xf32>
    %223 = arith.divf %221, %222 : vector<2x32xf32>
    %224 = vector.extract_strided_slice %207 {offsets = [0, 64], sizes = [2, 32], strides = [1, 1]} : vector<2x96xf32> to vector<2x32xf32>
    %225 = vector.extract_strided_slice %201 {offsets = [0, 64], sizes = [2, 32], strides = [1, 1]} : vector<2x96xf32> to vector<2x32xf32>
    %226 = vector.broadcast %116 : vector<1x32xf32> to vector<2x32xf32>
    %227 = arith.addf %225, %226 : vector<2x32xf32>
    %228 = arith.mulf %215, %227 : vector<2x32xf32>
    %229 = arith.addf %224, %228 : vector<2x32xf32>
    %230 = math.tanh %229 : vector<2x32xf32>
    %cst_156 = arith.constant 1.000000e+00 : f32
    %231 = vector.broadcast %cst_156 : f32 to vector<2x32xf32>
    %232 = arith.subf %231, %223 : vector<2x32xf32>
    %233 = arith.mulf %232, %230 : vector<2x32xf32>
    %234 = arith.mulf %223, %159 : vector<2x32xf32>
    %235 = arith.addf %233, %234 : vector<2x32xf32>
    %c1_157 = arith.constant 1 : index
    %236 = arith.index_cast %c1_i32_142 : i32 to index
    %c0_158 = arith.constant 0 : index
    %c0_159 = arith.constant 0 : index
    %237 = vector.load %arg8[%c1_157, %236, %c0_158, %c0_159] : memref<2x4x2x96xf32, #tpu.memory_space<vmem>>, vector<1x1x2x96xf32>
    %238 = vector.shape_cast %237 : vector<1x1x2x96xf32> to vector<2x96xf32>
    %239 = vector.extract_strided_slice %238 {offsets = [0, 0], sizes = [2, 32], strides = [1, 1]} : vector<2x96xf32> to vector<2x32xf32>
    %240 = vector.extract_strided_slice %204 {offsets = [0, 0], sizes = [2, 32], strides = [1, 1]} : vector<2x96xf32> to vector<2x32xf32>
    %241 = arith.addf %239, %240 : vector<2x32xf32>
    %242 = arith.negf %241 : vector<2x32xf32>
    %243 = math.exp %242 : vector<2x32xf32>
    %cst_160 = arith.constant 1.000000e+00 : f32
    %244 = vector.broadcast %cst_160 : f32 to vector<2x32xf32>
    %245 = arith.addf %244, %243 : vector<2x32xf32>
    %246 = arith.divf %244, %245 : vector<2x32xf32>
    %247 = vector.extract_strided_slice %238 {offsets = [0, 32], sizes = [2, 32], strides = [1, 1]} : vector<2x96xf32> to vector<2x32xf32>
    %248 = vector.extract_strided_slice %204 {offsets = [0, 32], sizes = [2, 32], strides = [1, 1]} : vector<2x96xf32> to vector<2x32xf32>
    %249 = arith.addf %247, %248 : vector<2x32xf32>
    %250 = arith.negf %249 : vector<2x32xf32>
    %251 = math.exp %250 : vector<2x32xf32>
    %cst_161 = arith.constant 1.000000e+00 : f32
    %252 = vector.broadcast %cst_161 : f32 to vector<2x32xf32>
    %253 = arith.addf %252, %251 : vector<2x32xf32>
    %254 = arith.divf %252, %253 : vector<2x32xf32>
    %255 = vector.extract_strided_slice %238 {offsets = [0, 64], sizes = [2, 32], strides = [1, 1]} : vector<2x96xf32> to vector<2x32xf32>
    %256 = vector.extract_strided_slice %204 {offsets = [0, 64], sizes = [2, 32], strides = [1, 1]} : vector<2x96xf32> to vector<2x32xf32>
    %257 = vector.broadcast %118 : vector<1x32xf32> to vector<2x32xf32>
    %258 = arith.addf %256, %257 : vector<2x32xf32>
    %259 = arith.mulf %246, %258 : vector<2x32xf32>
    %260 = arith.addf %255, %259 : vector<2x32xf32>
    %261 = math.tanh %260 : vector<2x32xf32>
    %cst_162 = arith.constant 1.000000e+00 : f32
    %262 = vector.broadcast %cst_162 : f32 to vector<2x32xf32>
    %263 = arith.subf %262, %254 : vector<2x32xf32>
    %264 = arith.mulf %263, %261 : vector<2x32xf32>
    %265 = arith.mulf %254, %190 : vector<2x32xf32>
    %266 = arith.addf %264, %265 : vector<2x32xf32>
    %c0_163 = arith.constant 0 : index
    %267 = arith.index_cast %c1_i32_142 : i32 to index
    %c0_164 = arith.constant 0 : index
    %c0_165 = arith.constant 0 : index
    %268 = vector.load %arg6[%c0_163, %267, %c0_164, %c0_165] : memref<2x4x2x32xf32, #tpu.memory_space<vmem>>, vector<1x1x2x32xf32>
    %269 = vector.shape_cast %268 : vector<1x1x2x32xf32> to vector<2x32xf32>
    %270 = vector.shape_cast %235 : vector<2x32xf32> to vector<1x1x2x32xf32>
    tpu.vector_store %arg6[%c0_163, %267, %c0_164, %c0_165], %270 {strides = array<i32>} : memref<2x4x2x32xf32, #tpu.memory_space<vmem>>, vector<1x1x2x32xf32>,
    %c1_166 = arith.constant 1 : index
    %271 = arith.index_cast %c1_i32_142 : i32 to index
    %c0_167 = arith.constant 0 : index
    %c0_168 = arith.constant 0 : index
    %272 = vector.load %arg6[%c1_166, %271, %c0_167, %c0_168] : memref<2x4x2x32xf32, #tpu.memory_space<vmem>>, vector<1x1x2x32xf32>
    %273 = vector.shape_cast %272 : vector<1x1x2x32xf32> to vector<2x32xf32>
    %274 = vector.shape_cast %266 : vector<2x32xf32> to vector<1x1x2x32xf32>
    tpu.vector_store %arg6[%c1_166, %271, %c0_167, %c0_168], %274 {strides = array<i32>} : memref<2x4x2x32xf32, #tpu.memory_space<vmem>>, vector<1x1x2x32xf32>,
    %c2_i32_169 = arith.constant 2 : i32
    %c0_170 = arith.constant 0 : index
    %c0_171 = arith.constant 0 : index
    %c0_172 = arith.constant 0 : index
    %275 = vector.load %arg3[%c0_170, %c0_171, %c0_172] : memref<2x32x96xf32, #tpu.memory_space<vmem>>, vector<1x32x96xf32>
    %276 = vector.shape_cast %275 : vector<1x32x96xf32> to vector<32x96xf32>
    %cst_173 = arith.constant dense<0.000000e+00> : vector<2x96xf32>
    %277 = tpu.matmul %235, %276, %cst_173 {dimension_numbers = #tpu.dot_dimension_numbers<[1], [0], [0], [1], [0, 0, 1, 1], [], []>} : vector<2x32xf32>, vector<32x96xf32>, vector<2x96xf32> -> vector<2x96xf32>
    %c1_174 = arith.constant 1 : index
    %c0_175 = arith.constant 0 : index
    %c0_176 = arith.constant 0 : index
    %278 = vector.load %arg3[%c1_174, %c0_175, %c0_176] : memref<2x32x96xf32, #tpu.memory_space<vmem>>, vector<1x32x96xf32>
    %279 = vector.shape_cast %278 : vector<1x32x96xf32> to vector<32x96xf32>
    %cst_177 = arith.constant dense<0.000000e+00> : vector<2x96xf32>
    %280 = tpu.matmul %266, %279, %cst_177 {dimension_numbers = #tpu.dot_dimension_numbers<[1], [0], [0], [1], [0, 0, 1, 1], [], []>} : vector<2x32xf32>, vector<32x96xf32>, vector<2x96xf32> -> vector<2x96xf32>
    %c0_178 = arith.constant 0 : index
    %281 = arith.index_cast %c2_i32_169 : i32 to index
    %c0_179 = arith.constant 0 : index
    %c0_180 = arith.constant 0 : index
    %282 = vector.load %arg8[%c0_178, %281, %c0_179, %c0_180] : memref<2x4x2x96xf32, #tpu.memory_space<vmem>>, vector<1x1x2x96xf32>
    %283 = vector.shape_cast %282 : vector<1x1x2x96xf32> to vector<2x96xf32>
    %284 = vector.extract_strided_slice %283 {offsets = [0, 0], sizes = [2, 32], strides = [1, 1]} : vector<2x96xf32> to vector<2x32xf32>
    %285 = vector.extract_strided_slice %277 {offsets = [0, 0], sizes = [2, 32], strides = [1, 1]} : vector<2x96xf32> to vector<2x32xf32>
    %286 = arith.addf %284, %285 : vector<2x32xf32>
    %287 = arith.negf %286 : vector<2x32xf32>
    %288 = math.exp %287 : vector<2x32xf32>
    %cst_181 = arith.constant 1.000000e+00 : f32
    %289 = vector.broadcast %cst_181 : f32 to vector<2x32xf32>
    %290 = arith.addf %289, %288 : vector<2x32xf32>
    %291 = arith.divf %289, %290 : vector<2x32xf32>
    %292 = vector.extract_strided_slice %283 {offsets = [0, 32], sizes = [2, 32], strides = [1, 1]} : vector<2x96xf32> to vector<2x32xf32>
    %293 = vector.extract_strided_slice %277 {offsets = [0, 32], sizes = [2, 32], strides = [1, 1]} : vector<2x96xf32> to vector<2x32xf32>
    %294 = arith.addf %292, %293 : vector<2x32xf32>
    %295 = arith.negf %294 : vector<2x32xf32>
    %296 = math.exp %295 : vector<2x32xf32>
    %cst_182 = arith.constant 1.000000e+00 : f32
    %297 = vector.broadcast %cst_182 : f32 to vector<2x32xf32>
    %298 = arith.addf %297, %296 : vector<2x32xf32>
    %299 = arith.divf %297, %298 : vector<2x32xf32>
    %300 = vector.extract_strided_slice %283 {offsets = [0, 64], sizes = [2, 32], strides = [1, 1]} : vector<2x96xf32> to vector<2x32xf32>
    %301 = vector.extract_strided_slice %277 {offsets = [0, 64], sizes = [2, 32], strides = [1, 1]} : vector<2x96xf32> to vector<2x32xf32>
    %302 = vector.broadcast %116 : vector<1x32xf32> to vector<2x32xf32>
    %303 = arith.addf %301, %302 : vector<2x32xf32>
    %304 = arith.mulf %291, %303 : vector<2x32xf32>
    %305 = arith.addf %300, %304 : vector<2x32xf32>
    %306 = math.tanh %305 : vector<2x32xf32>
    %cst_183 = arith.constant 1.000000e+00 : f32
    %307 = vector.broadcast %cst_183 : f32 to vector<2x32xf32>
    %308 = arith.subf %307, %299 : vector<2x32xf32>
    %309 = arith.mulf %308, %306 : vector<2x32xf32>
    %310 = arith.mulf %299, %235 : vector<2x32xf32>
    %311 = arith.addf %309, %310 : vector<2x32xf32>
    %c1_184 = arith.constant 1 : index
    %312 = arith.index_cast %c2_i32_169 : i32 to index
    %c0_185 = arith.constant 0 : index
    %c0_186 = arith.constant 0 : index
    %313 = vector.load %arg8[%c1_184, %312, %c0_185, %c0_186] : memref<2x4x2x96xf32, #tpu.memory_space<vmem>>, vector<1x1x2x96xf32>
    %314 = vector.shape_cast %313 : vector<1x1x2x96xf32> to vector<2x96xf32>
    %315 = vector.extract_strided_slice %314 {offsets = [0, 0], sizes = [2, 32], strides = [1, 1]} : vector<2x96xf32> to vector<2x32xf32>
    %316 = vector.extract_strided_slice %280 {offsets = [0, 0], sizes = [2, 32], strides = [1, 1]} : vector<2x96xf32> to vector<2x32xf32>
    %317 = arith.addf %315, %316 : vector<2x32xf32>
    %318 = arith.negf %317 : vector<2x32xf32>
    %319 = math.exp %318 : vector<2x32xf32>
    %cst_187 = arith.constant 1.000000e+00 : f32
    %320 = vector.broadcast %cst_187 : f32 to vector<2x32xf32>
    %321 = arith.addf %320, %319 : vector<2x32xf32>
    %322 = arith.divf %320, %321 : vector<2x32xf32>
    %323 = vector.extract_strided_slice %314 {offsets = [0, 32], sizes = [2, 32], strides = [1, 1]} : vector<2x96xf32> to vector<2x32xf32>
    %324 = vector.extract_strided_slice %280 {offsets = [0, 32], sizes = [2, 32], strides = [1, 1]} : vector<2x96xf32> to vector<2x32xf32>
    %325 = arith.addf %323, %324 : vector<2x32xf32>
    %326 = arith.negf %325 : vector<2x32xf32>
    %327 = math.exp %326 : vector<2x32xf32>
    %cst_188 = arith.constant 1.000000e+00 : f32
    %328 = vector.broadcast %cst_188 : f32 to vector<2x32xf32>
    %329 = arith.addf %328, %327 : vector<2x32xf32>
    %330 = arith.divf %328, %329 : vector<2x32xf32>
    %331 = vector.extract_strided_slice %314 {offsets = [0, 64], sizes = [2, 32], strides = [1, 1]} : vector<2x96xf32> to vector<2x32xf32>
    %332 = vector.extract_strided_slice %280 {offsets = [0, 64], sizes = [2, 32], strides = [1, 1]} : vector<2x96xf32> to vector<2x32xf32>
    %333 = vector.broadcast %118 : vector<1x32xf32> to vector<2x32xf32>
    %334 = arith.addf %332, %333 : vector<2x32xf32>
    %335 = arith.mulf %322, %334 : vector<2x32xf32>
    %336 = arith.addf %331, %335 : vector<2x32xf32>
    %337 = math.tanh %336 : vector<2x32xf32>
    %cst_189 = arith.constant 1.000000e+00 : f32
    %338 = vector.broadcast %cst_189 : f32 to vector<2x32xf32>
    %339 = arith.subf %338, %330 : vector<2x32xf32>
    %340 = arith.mulf %339, %337 : vector<2x32xf32>
    %341 = arith.mulf %330, %266 : vector<2x32xf32>
    %342 = arith.addf %340, %341 : vector<2x32xf32>
    %c0_190 = arith.constant 0 : index
    %343 = arith.index_cast %c2_i32_169 : i32 to index
    %c0_191 = arith.constant 0 : index
    %c0_192 = arith.constant 0 : index
    %344 = vector.load %arg6[%c0_190, %343, %c0_191, %c0_192] : memref<2x4x2x32xf32, #tpu.memory_space<vmem>>, vector<1x1x2x32xf32>
    %345 = vector.shape_cast %344 : vector<1x1x2x32xf32> to vector<2x32xf32>
    %346 = vector.shape_cast %311 : vector<2x32xf32> to vector<1x1x2x32xf32>
    tpu.vector_store %arg6[%c0_190, %343, %c0_191, %c0_192], %346 {strides = array<i32>} : memref<2x4x2x32xf32, #tpu.memory_space<vmem>>, vector<1x1x2x32xf32>,
    %c1_193 = arith.constant 1 : index
    %347 = arith.index_cast %c2_i32_169 : i32 to index
    %c0_194 = arith.constant 0 : index
    %c0_195 = arith.constant 0 : index
    %348 = vector.load %arg6[%c1_193, %347, %c0_194, %c0_195] : memref<2x4x2x32xf32, #tpu.memory_space<vmem>>, vector<1x1x2x32xf32>
    %349 = vector.shape_cast %348 : vector<1x1x2x32xf32> to vector<2x32xf32>
    %350 = vector.shape_cast %342 : vector<2x32xf32> to vector<1x1x2x32xf32>
    tpu.vector_store %arg6[%c1_193, %347, %c0_194, %c0_195], %350 {strides = array<i32>} : memref<2x4x2x32xf32, #tpu.memory_space<vmem>>, vector<1x1x2x32xf32>,
    %c3_i32_196 = arith.constant 3 : i32
    %c0_197 = arith.constant 0 : index
    %c0_198 = arith.constant 0 : index
    %c0_199 = arith.constant 0 : index
    %351 = vector.load %arg3[%c0_197, %c0_198, %c0_199] : memref<2x32x96xf32, #tpu.memory_space<vmem>>, vector<1x32x96xf32>
    %352 = vector.shape_cast %351 : vector<1x32x96xf32> to vector<32x96xf32>
    %cst_200 = arith.constant dense<0.000000e+00> : vector<2x96xf32>
    %353 = tpu.matmul %311, %352, %cst_200 {dimension_numbers = #tpu.dot_dimension_numbers<[1], [0], [0], [1], [0, 0, 1, 1], [], []>} : vector<2x32xf32>, vector<32x96xf32>, vector<2x96xf32> -> vector<2x96xf32>
    %c1_201 = arith.constant 1 : index
    %c0_202 = arith.constant 0 : index
    %c0_203 = arith.constant 0 : index
    %354 = vector.load %arg3[%c1_201, %c0_202, %c0_203] : memref<2x32x96xf32, #tpu.memory_space<vmem>>, vector<1x32x96xf32>
    %355 = vector.shape_cast %354 : vector<1x32x96xf32> to vector<32x96xf32>
    %cst_204 = arith.constant dense<0.000000e+00> : vector<2x96xf32>
    %356 = tpu.matmul %342, %355, %cst_204 {dimension_numbers = #tpu.dot_dimension_numbers<[1], [0], [0], [1], [0, 0, 1, 1], [], []>} : vector<2x32xf32>, vector<32x96xf32>, vector<2x96xf32> -> vector<2x96xf32>
    %c0_205 = arith.constant 0 : index
    %357 = arith.index_cast %c3_i32_196 : i32 to index
    %c0_206 = arith.constant 0 : index
    %c0_207 = arith.constant 0 : index
    %358 = vector.load %arg8[%c0_205, %357, %c0_206, %c0_207] : memref<2x4x2x96xf32, #tpu.memory_space<vmem>>, vector<1x1x2x96xf32>
    %359 = vector.shape_cast %358 : vector<1x1x2x96xf32> to vector<2x96xf32>
    %360 = vector.extract_strided_slice %359 {offsets = [0, 0], sizes = [2, 32], strides = [1, 1]} : vector<2x96xf32> to vector<2x32xf32>
    %361 = vector.extract_strided_slice %353 {offsets = [0, 0], sizes = [2, 32], strides = [1, 1]} : vector<2x96xf32> to vector<2x32xf32>
    %362 = arith.addf %360, %361 : vector<2x32xf32>
    %363 = arith.negf %362 : vector<2x32xf32>
    %364 = math.exp %363 : vector<2x32xf32>
    %cst_208 = arith.constant 1.000000e+00 : f32
    %365 = vector.broadcast %cst_208 : f32 to vector<2x32xf32>
    %366 = arith.addf %365, %364 : vector<2x32xf32>
    %367 = arith.divf %365, %366 : vector<2x32xf32>
    %368 = vector.extract_strided_slice %359 {offsets = [0, 32], sizes = [2, 32], strides = [1, 1]} : vector<2x96xf32> to vector<2x32xf32>
    %369 = vector.extract_strided_slice %353 {offsets = [0, 32], sizes = [2, 32], strides = [1, 1]} : vector<2x96xf32> to vector<2x32xf32>
    %370 = arith.addf %368, %369 : vector<2x32xf32>
    %371 = arith.negf %370 : vector<2x32xf32>
    %372 = math.exp %371 : vector<2x32xf32>
    %cst_209 = arith.constant 1.000000e+00 : f32
    %373 = vector.broadcast %cst_209 : f32 to vector<2x32xf32>
    %374 = arith.addf %373, %372 : vector<2x32xf32>
    %375 = arith.divf %373, %374 : vector<2x32xf32>
    %376 = vector.extract_strided_slice %359 {offsets = [0, 64], sizes = [2, 32], strides = [1, 1]} : vector<2x96xf32> to vector<2x32xf32>
    %377 = vector.extract_strided_slice %353 {offsets = [0, 64], sizes = [2, 32], strides = [1, 1]} : vector<2x96xf32> to vector<2x32xf32>
    %378 = vector.broadcast %116 : vector<1x32xf32> to vector<2x32xf32>
    %379 = arith.addf %377, %378 : vector<2x32xf32>
    %380 = arith.mulf %367, %379 : vector<2x32xf32>
    %381 = arith.addf %376, %380 : vector<2x32xf32>
    %382 = math.tanh %381 : vector<2x32xf32>
    %cst_210 = arith.constant 1.000000e+00 : f32
    %383 = vector.broadcast %cst_210 : f32 to vector<2x32xf32>
    %384 = arith.subf %383, %375 : vector<2x32xf32>
    %385 = arith.mulf %384, %382 : vector<2x32xf32>
    %386 = arith.mulf %375, %311 : vector<2x32xf32>
    %387 = arith.addf %385, %386 : vector<2x32xf32>
    %c1_211 = arith.constant 1 : index
    %388 = arith.index_cast %c3_i32_196 : i32 to index
    %c0_212 = arith.constant 0 : index
    %c0_213 = arith.constant 0 : index
    %389 = vector.load %arg8[%c1_211, %388, %c0_212, %c0_213] : memref<2x4x2x96xf32, #tpu.memory_space<vmem>>, vector<1x1x2x96xf32>
    %390 = vector.shape_cast %389 : vector<1x1x2x96xf32> to vector<2x96xf32>
    %391 = vector.extract_strided_slice %390 {offsets = [0, 0], sizes = [2, 32], strides = [1, 1]} : vector<2x96xf32> to vector<2x32xf32>
    %392 = vector.extract_strided_slice %356 {offsets = [0, 0], sizes = [2, 32], strides = [1, 1]} : vector<2x96xf32> to vector<2x32xf32>
    %393 = arith.addf %391, %392 : vector<2x32xf32>
    %394 = arith.negf %393 : vector<2x32xf32>
    %395 = math.exp %394 : vector<2x32xf32>
    %cst_214 = arith.constant 1.000000e+00 : f32
    %396 = vector.broadcast %cst_214 : f32 to vector<2x32xf32>
    %397 = arith.addf %396, %395 : vector<2x32xf32>
    %398 = arith.divf %396, %397 : vector<2x32xf32>
    %399 = vector.extract_strided_slice %390 {offsets = [0, 32], sizes = [2, 32], strides = [1, 1]} : vector<2x96xf32> to vector<2x32xf32>
    %400 = vector.extract_strided_slice %356 {offsets = [0, 32], sizes = [2, 32], strides = [1, 1]} : vector<2x96xf32> to vector<2x32xf32>
    %401 = arith.addf %399, %400 : vector<2x32xf32>
    %402 = arith.negf %401 : vector<2x32xf32>
    %403 = math.exp %402 : vector<2x32xf32>
    %cst_215 = arith.constant 1.000000e+00 : f32
    %404 = vector.broadcast %cst_215 : f32 to vector<2x32xf32>
    %405 = arith.addf %404, %403 : vector<2x32xf32>
    %406 = arith.divf %404, %405 : vector<2x32xf32>
    %407 = vector.extract_strided_slice %390 {offsets = [0, 64], sizes = [2, 32], strides = [1, 1]} : vector<2x96xf32> to vector<2x32xf32>
    %408 = vector.extract_strided_slice %356 {offsets = [0, 64], sizes = [2, 32], strides = [1, 1]} : vector<2x96xf32> to vector<2x32xf32>
    %409 = vector.broadcast %118 : vector<1x32xf32> to vector<2x32xf32>
    %410 = arith.addf %408, %409 : vector<2x32xf32>
    %411 = arith.mulf %398, %410 : vector<2x32xf32>
    %412 = arith.addf %407, %411 : vector<2x32xf32>
    %413 = math.tanh %412 : vector<2x32xf32>
    %cst_216 = arith.constant 1.000000e+00 : f32
    %414 = vector.broadcast %cst_216 : f32 to vector<2x32xf32>
    %415 = arith.subf %414, %406 : vector<2x32xf32>
    %416 = arith.mulf %415, %413 : vector<2x32xf32>
    %417 = arith.mulf %406, %342 : vector<2x32xf32>
    %418 = arith.addf %416, %417 : vector<2x32xf32>
    %c0_217 = arith.constant 0 : index
    %419 = arith.index_cast %c3_i32_196 : i32 to index
    %c0_218 = arith.constant 0 : index
    %c0_219 = arith.constant 0 : index
    %420 = vector.load %arg6[%c0_217, %419, %c0_218, %c0_219] : memref<2x4x2x32xf32, #tpu.memory_space<vmem>>, vector<1x1x2x32xf32>
    %421 = vector.shape_cast %420 : vector<1x1x2x32xf32> to vector<2x32xf32>
    %422 = vector.shape_cast %387 : vector<2x32xf32> to vector<1x1x2x32xf32>
    tpu.vector_store %arg6[%c0_217, %419, %c0_218, %c0_219], %422 {strides = array<i32>} : memref<2x4x2x32xf32, #tpu.memory_space<vmem>>, vector<1x1x2x32xf32>,
    %c1_220 = arith.constant 1 : index
    %423 = arith.index_cast %c3_i32_196 : i32 to index
    %c0_221 = arith.constant 0 : index
    %c0_222 = arith.constant 0 : index
    %424 = vector.load %arg6[%c1_220, %423, %c0_221, %c0_222] : memref<2x4x2x32xf32, #tpu.memory_space<vmem>>, vector<1x1x2x32xf32>
    %425 = vector.shape_cast %424 : vector<1x1x2x32xf32> to vector<2x32xf32>
    %426 = vector.shape_cast %418 : vector<2x32xf32> to vector<1x1x2x32xf32>
    tpu.vector_store %arg6[%c1_220, %423, %c0_221, %c0_222], %426 {strides = array<i32>} : memref<2x4x2x32xf32, #tpu.memory_space<vmem>>, vector<1x1x2x32xf32>,
    %c4_i32_223 = arith.constant 4 : i32
    %c0_224 = arith.constant 0 : index
    %c0_225 = arith.constant 0 : index
    %c0_226 = arith.constant 0 : index
    %427 = vector.load %arg7[%c0_224, %c0_225, %c0_226] : memref<2x2x32xf32, #tpu.memory_space<vmem>>, vector<1x2x32xf32>
    %428 = vector.shape_cast %427 : vector<1x2x32xf32> to vector<2x32xf32>
    %429 = vector.shape_cast %387 : vector<2x32xf32> to vector<1x2x32xf32>
    tpu.vector_store %arg7[%c0_224, %c0_225, %c0_226], %429 {strides = array<i32>} : memref<2x2x32xf32, #tpu.memory_space<vmem>>, vector<1x2x32xf32>,
    %c1_227 = arith.constant 1 : index
    %c0_228 = arith.constant 0 : index
    %c0_229 = arith.constant 0 : index
    %430 = vector.load %arg7[%c1_227, %c0_228, %c0_229] : memref<2x2x32xf32, #tpu.memory_space<vmem>>, vector<1x2x32xf32>
    %431 = vector.shape_cast %430 : vector<1x2x32xf32> to vector<2x32xf32>
    %432 = vector.shape_cast %418 : vector<2x32xf32> to vector<1x2x32xf32>
    tpu.vector_store %arg7[%c1_227, %c0_228, %c0_229], %432 {strides = array<i32>} : memref<2x2x32xf32, #tpu.memory_space<vmem>>, vector<1x2x32xf32>,
    return
  }
  func.func @transform_0(%arg0: i32) -> (i32, i32, i32, i32) {
    %c0_i32 = arith.constant 0 : i32
    %c0_i32_0 = arith.constant 0 : i32
    %c0_i32_1 = arith.constant 0 : i32
    %c0_i32_2 = arith.constant 0 : i32
    return %c0_i32, %arg0, %c0_i32_0, %c0_i32_1 : i32, i32, i32, i32
  }
  func.func @transform_1(%arg0: i32) -> (i32, i32, i32) {
    %c0_i32 = arith.constant 0 : i32
    %c0_i32_0 = arith.constant 0 : i32
    %c0_i32_1 = arith.constant 0 : i32
    %c0_i32_2 = arith.constant 0 : i32
    return %c0_i32, %c0_i32_0, %c0_i32_1 : i32, i32, i32
  }
  func.func @transform_2(%arg0: i32) -> (i32, i32, i32) {
    %c0_i32 = arith.constant 0 : i32
    %c0_i32_0 = arith.constant 0 : i32
    %c0_i32_1 = arith.constant 0 : i32
    %c0_i32_2 = arith.constant 0 : i32
    return %c0_i32, %c0_i32_0, %c0_i32_1 : i32, i32, i32
  }
  func.func @transform_3(%arg0: i32) -> (i32, i32, i32) {
    %c0_i32 = arith.constant 0 : i32
    %c0_i32_0 = arith.constant 0 : i32
    %c0_i32_1 = arith.constant 0 : i32
    %c0_i32_2 = arith.constant 0 : i32
    return %c0_i32, %c0_i32_0, %c0_i32_1 : i32, i32, i32
  }
  func.func @transform_4(%arg0: i32) -> (i32, i32, i32) {
    %c0_i32 = arith.constant 0 : i32
    %c0_i32_0 = arith.constant 0 : i32
    %c0_i32_1 = arith.constant 0 : i32
    %c0_i32_2 = arith.constant 0 : i32
    return %c0_i32, %c0_i32_0, %c0_i32_1 : i32, i32, i32
  }
  func.func @transform_5(%arg0: i32) -> (i32, i32, i32, i32) {
    %c0_i32 = arith.constant 0 : i32
    %c0_i32_0 = arith.constant 0 : i32
    %c0_i32_1 = arith.constant 0 : i32
    %c0_i32_2 = arith.constant 0 : i32
    return %c0_i32, %arg0, %c0_i32_0, %c0_i32_1 : i32, i32, i32, i32
  }
}

module attributes {stable_mosaic.version = 11 : i64} {
  func.func @_gru_chunk_kernel(%arg0: i32, %arg1: memref<2x4x2x32xf32, #tpu.memory_space<vmem>>, %arg2: memref<2x32x96xf32, #tpu.memory_space<vmem>>, %arg3: memref<2x32x96xf32, #tpu.memory_space<vmem>>, %arg4: memref<2x1x96xf32, #tpu.memory_space<vmem>>, %arg5: memref<2x1x32xf32, #tpu.memory_space<vmem>>, %arg6: memref<2x4x2x32xf32, #tpu.memory_space<vmem>>, %arg7: memref<2x2x32xf32, #tpu.memory_space<vmem>>, %arg8: memref<2x4x2x96xf32, #tpu.memory_space<vmem>>) attributes {dimension_semantics = [#tpu.dimension_semantics<arbitrary>], iteration_bounds = array<i64: 2>, scalar_prefetch = 0 : i64, scratch_operands = 2 : i64, tpu.core_type = #tpu.core_type<tc>, window_params = [{transform_indices = @transform_0, window_bounds = array<i64: 2, 4, 2, 32>}, {pipeline_mode = #tpu.pipeline_mode<synchronous>, transform_indices = @transform_1, window_bounds = array<i64: 2, 32, 96>}, {pipeline_mode = #tpu.pipeline_mode<synchronous>, transform_indices = @transform_2, window_bounds = array<i64: 2, 32, 96>}, {pipeline_mode = #tpu.pipeline_mode<synchronous>, transform_indices = @transform_3, window_bounds = array<i64: 2, 1, 96>}, {pipeline_mode = #tpu.pipeline_mode<synchronous>, transform_indices = @transform_4, window_bounds = array<i64: 2, 1, 32>}, {transform_indices = @transform_5, window_bounds = array<i64: 2, 4, 2, 32>}]} {
    %c0_i32 = arith.constant 0 : i32
    %0 = arith.cmpi eq, %arg0, %c0_i32 : i32
    %1 = arith.extui %0 : i1 to i32
    %c0_i32_0 = arith.constant 0 : i32
    %2 = arith.cmpi ne, %1, %c0_i32_0 : i32
    scf.if %2 {
      %cst_230 = arith.constant 0.000000e+00 : f32
      %433 = vector.broadcast %cst_230 : f32 to vector<2x2x32xf32>
      %c0_231 = arith.constant 0 : index
      %c0_232 = arith.constant 0 : index
      %c0_233 = arith.constant 0 : index
      %434 = vector.load %arg7[%c0_231, %c0_232, %c0_233] : memref<2x2x32xf32, #tpu.memory_space<vmem>>, vector<2x2x32xf32>
      tpu.vector_store %arg7[%c0_231, %c0_232, %c0_233], %433 {strides = array<i32>} : memref<2x2x32xf32, #tpu.memory_space<vmem>>, vector<2x2x32xf32>,
    } else {
    }
    %c0_i32_1 = arith.constant 0 : i32
    %c0 = arith.constant 0 : index
    %3 = arith.index_cast %c0_i32_1 : i32 to index
    %c0_2 = arith.constant 0 : index
    %c0_3 = arith.constant 0 : index
    %4 = vector.load %arg1[%c0, %3, %c0_2, %c0_3] : memref<2x4x2x32xf32, #tpu.memory_space<vmem>>, vector<1x1x2x32xf32>
    %5 = vector.shape_cast %4 : vector<1x1x2x32xf32> to vector<2x32xf32>
    %c0_4 = arith.constant 0 : index
    %c0_5 = arith.constant 0 : index
    %c0_6 = arith.constant 0 : index
    %6 = vector.load %arg2[%c0_4, %c0_5, %c0_6] : memref<2x32x96xf32, #tpu.memory_space<vmem>>, vector<1x32x96xf32>
    %7 = vector.shape_cast %6 : vector<1x32x96xf32> to vector<32x96xf32>
    %cst = arith.constant dense<0.000000e+00> : vector<2x96xf32>
    %8 = tpu.matmul %5, %7, %cst {dimension_numbers = #tpu.dot_dimension_numbers<[1], [0], [0], [1], [0, 0, 1, 1], [], []>} : vector<2x32xf32>, vector<32x96xf32>, vector<2x96xf32> -> vector<2x96xf32>
    %c0_7 = arith.constant 0 : index
    %c0_8 = arith.constant 0 : index
    %c0_9 = arith.constant 0 : index
    %9 = vector.load %arg4[%c0_7, %c0_8, %c0_9] : memref<2x1x96xf32, #tpu.memory_space<vmem>>, vector<1x1x96xf32>
    %10 = vector.shape_cast %9 : vector<1x1x96xf32> to vector<1x96xf32>
    %11 = vector.broadcast %10 : vector<1x96xf32> to vector<2x96xf32>
    %12 = arith.addf %8, %11 : vector<2x96xf32>
    %c0_10 = arith.constant 0 : index
    %13 = arith.index_cast %c0_i32_1 : i32 to index
    %c0_11 = arith.constant 0 : index
    %c0_12 = arith.constant 0 : index
    %14 = vector.load %arg8[%c0_10, %13, %c0_11, %c0_12] : memref<2x4x2x96xf32, #tpu.memory_space<vmem>>, vector<1x1x2x96xf32>
    %15 = vector.shape_cast %14 : vector<1x1x2x96xf32> to vector<2x96xf32>
    %16 = vector.shape_cast %12 : vector<2x96xf32> to vector<1x1x2x96xf32>
    tpu.vector_store %arg8[%c0_10, %13, %c0_11, %c0_12], %16 {strides = array<i32>} : memref<2x4x2x96xf32, #tpu.memory_space<vmem>>, vector<1x1x2x96xf32>,
    %c1 = arith.constant 1 : index
    %17 = arith.index_cast %c0_i32_1 : i32 to index
    %c0_13 = arith.constant 0 : index
    %c0_14 = arith.constant 0 : index
    %18 = vector.load %arg1[%c1, %17, %c0_13, %c0_14] : memref<2x4x2x32xf32, #tpu.memory_space<vmem>>, vector<1x1x2x32xf32>
    %19 = vector.shape_cast %18 : vector<1x1x2x32xf32> to vector<2x32xf32>
    %c1_15 = arith.constant 1 : index
    %c0_16 = arith.constant 0 : index
    %c0_17 = arith.constant 0 : index
    %20 = vector.load %arg2[%c1_15, %c0_16, %c0_17] : memref<2x32x96xf32, #tpu.memory_space<vmem>>, vector<1x32x96xf32>
    %21 = vector.shape_cast %20 : vector<1x32x96xf32> to vector<32x96xf32>
    %cst_18 = arith.constant dense<0.000000e+00> : vector<2x96xf32>
    %22 = tpu.matmul %19, %21, %cst_18 {dimension_numbers = #tpu.dot_dimension_numbers<[1], [0], [0], [1], [0, 0, 1, 1], [], []>} : vector<2x32xf32>, vector<32x96xf32>, vector<2x96xf32> -> vector<2x96xf32>
    %c1_19 = arith.constant 1 : index
    %c0_20 = arith.constant 0 : index
    %c0_21 = arith.constant 0 : index
    %23 = vector.load %arg4[%c1_19, %c0_20, %c0_21] : memref<2x1x96xf32, #tpu.memory_space<vmem>>, vector<1x1x96xf32>
    %24 = vector.shape_cast %23 : vector<1x1x96xf32> to vector<1x96xf32>
    %25 = vector.broadcast %24 : vector<1x96xf32> to vector<2x96xf32>
    %26 = arith.addf %22, %25 : vector<2x96xf32>
    %c1_22 = arith.constant 1 : index
    %27 = arith.index_cast %c0_i32_1 : i32 to index
    %c0_23 = arith.constant 0 : index
    %c0_24 = arith.constant 0 : index
    %28 = vector.load %arg8[%c1_22, %27, %c0_23, %c0_24] : memref<2x4x2x96xf32, #tpu.memory_space<vmem>>, vector<1x1x2x96xf32>
    %29 = vector.shape_cast %28 : vector<1x1x2x96xf32> to vector<2x96xf32>
    %30 = vector.shape_cast %26 : vector<2x96xf32> to vector<1x1x2x96xf32>
    tpu.vector_store %arg8[%c1_22, %27, %c0_23, %c0_24], %30 {strides = array<i32>} : memref<2x4x2x96xf32, #tpu.memory_space<vmem>>, vector<1x1x2x96xf32>,
    %c1_i32 = arith.constant 1 : i32
    %c0_25 = arith.constant 0 : index
    %31 = arith.index_cast %c1_i32 : i32 to index
    %c0_26 = arith.constant 0 : index
    %c0_27 = arith.constant 0 : index
    %32 = vector.load %arg1[%c0_25, %31, %c0_26, %c0_27] : memref<2x4x2x32xf32, #tpu.memory_space<vmem>>, vector<1x1x2x32xf32>
    %33 = vector.shape_cast %32 : vector<1x1x2x32xf32> to vector<2x32xf32>
    %c0_28 = arith.constant 0 : index
    %c0_29 = arith.constant 0 : index
    %c0_30 = arith.constant 0 : index
    %34 = vector.load %arg2[%c0_28, %c0_29, %c0_30] : memref<2x32x96xf32, #tpu.memory_space<vmem>>, vector<1x32x96xf32>
    %35 = vector.shape_cast %34 : vector<1x32x96xf32> to vector<32x96xf32>
    %cst_31 = arith.constant dense<0.000000e+00> : vector<2x96xf32>
    %36 = tpu.matmul %33, %35, %cst_31 {dimension_numbers = #tpu.dot_dimension_numbers<[1], [0], [0], [1], [0, 0, 1, 1], [], []>} : vector<2x32xf32>, vector<32x96xf32>, vector<2x96xf32> -> vector<2x96xf32>
    %c0_32 = arith.constant 0 : index
    %c0_33 = arith.constant 0 : index
    %c0_34 = arith.constant 0 : index
    %37 = vector.load %arg4[%c0_32, %c0_33, %c0_34] : memref<2x1x96xf32, #tpu.memory_space<vmem>>, vector<1x1x96xf32>
    %38 = vector.shape_cast %37 : vector<1x1x96xf32> to vector<1x96xf32>
    %39 = vector.broadcast %38 : vector<1x96xf32> to vector<2x96xf32>
    %40 = arith.addf %36, %39 : vector<2x96xf32>
    %c0_35 = arith.constant 0 : index
    %41 = arith.index_cast %c1_i32 : i32 to index
    %c0_36 = arith.constant 0 : index
    %c0_37 = arith.constant 0 : index
    %42 = vector.load %arg8[%c0_35, %41, %c0_36, %c0_37] : memref<2x4x2x96xf32, #tpu.memory_space<vmem>>, vector<1x1x2x96xf32>
    %43 = vector.shape_cast %42 : vector<1x1x2x96xf32> to vector<2x96xf32>
    %44 = vector.shape_cast %40 : vector<2x96xf32> to vector<1x1x2x96xf32>
    tpu.vector_store %arg8[%c0_35, %41, %c0_36, %c0_37], %44 {strides = array<i32>} : memref<2x4x2x96xf32, #tpu.memory_space<vmem>>, vector<1x1x2x96xf32>,
    %c1_38 = arith.constant 1 : index
    %45 = arith.index_cast %c1_i32 : i32 to index
    %c0_39 = arith.constant 0 : index
    %c0_40 = arith.constant 0 : index
    %46 = vector.load %arg1[%c1_38, %45, %c0_39, %c0_40] : memref<2x4x2x32xf32, #tpu.memory_space<vmem>>, vector<1x1x2x32xf32>
    %47 = vector.shape_cast %46 : vector<1x1x2x32xf32> to vector<2x32xf32>
    %c1_41 = arith.constant 1 : index
    %c0_42 = arith.constant 0 : index
    %c0_43 = arith.constant 0 : index
    %48 = vector.load %arg2[%c1_41, %c0_42, %c0_43] : memref<2x32x96xf32, #tpu.memory_space<vmem>>, vector<1x32x96xf32>
    %49 = vector.shape_cast %48 : vector<1x32x96xf32> to vector<32x96xf32>
    %cst_44 = arith.constant dense<0.000000e+00> : vector<2x96xf32>
    %50 = tpu.matmul %47, %49, %cst_44 {dimension_numbers = #tpu.dot_dimension_numbers<[1], [0], [0], [1], [0, 0, 1, 1], [], []>} : vector<2x32xf32>, vector<32x96xf32>, vector<2x96xf32> -> vector<2x96xf32>
    %c1_45 = arith.constant 1 : index
    %c0_46 = arith.constant 0 : index
    %c0_47 = arith.constant 0 : index
    %51 = vector.load %arg4[%c1_45, %c0_46, %c0_47] : memref<2x1x96xf32, #tpu.memory_space<vmem>>, vector<1x1x96xf32>
    %52 = vector.shape_cast %51 : vector<1x1x96xf32> to vector<1x96xf32>
    %53 = vector.broadcast %52 : vector<1x96xf32> to vector<2x96xf32>
    %54 = arith.addf %50, %53 : vector<2x96xf32>
    %c1_48 = arith.constant 1 : index
    %55 = arith.index_cast %c1_i32 : i32 to index
    %c0_49 = arith.constant 0 : index
    %c0_50 = arith.constant 0 : index
    %56 = vector.load %arg8[%c1_48, %55, %c0_49, %c0_50] : memref<2x4x2x96xf32, #tpu.memory_space<vmem>>, vector<1x1x2x96xf32>
    %57 = vector.shape_cast %56 : vector<1x1x2x96xf32> to vector<2x96xf32>
    %58 = vector.shape_cast %54 : vector<2x96xf32> to vector<1x1x2x96xf32>
    tpu.vector_store %arg8[%c1_48, %55, %c0_49, %c0_50], %58 {strides = array<i32>} : memref<2x4x2x96xf32, #tpu.memory_space<vmem>>, vector<1x1x2x96xf32>,
    %c2_i32 = arith.constant 2 : i32
    %c0_51 = arith.constant 0 : index
    %59 = arith.index_cast %c2_i32 : i32 to index
    %c0_52 = arith.constant 0 : index
    %c0_53 = arith.constant 0 : index
    %60 = vector.load %arg1[%c0_51, %59, %c0_52, %c0_53] : memref<2x4x2x32xf32, #tpu.memory_space<vmem>>, vector<1x1x2x32xf32>
    %61 = vector.shape_cast %60 : vector<1x1x2x32xf32> to vector<2x32xf32>
    %c0_54 = arith.constant 0 : index
    %c0_55 = arith.constant 0 : index
    %c0_56 = arith.constant 0 : index
    %62 = vector.load %arg2[%c0_54, %c0_55, %c0_56] : memref<2x32x96xf32, #tpu.memory_space<vmem>>, vector<1x32x96xf32>
    %63 = vector.shape_cast %62 : vector<1x32x96xf32> to vector<32x96xf32>
    %cst_57 = arith.constant dense<0.000000e+00> : vector<2x96xf32>
    %64 = tpu.matmul %61, %63, %cst_57 {dimension_numbers = #tpu.dot_dimension_numbers<[1], [0], [0], [1], [0, 0, 1, 1], [], []>} : vector<2x32xf32>, vector<32x96xf32>, vector<2x96xf32> -> vector<2x96xf32>
    %c0_58 = arith.constant 0 : index
    %c0_59 = arith.constant 0 : index
    %c0_60 = arith.constant 0 : index
    %65 = vector.load %arg4[%c0_58, %c0_59, %c0_60] : memref<2x1x96xf32, #tpu.memory_space<vmem>>, vector<1x1x96xf32>
    %66 = vector.shape_cast %65 : vector<1x1x96xf32> to vector<1x96xf32>
    %67 = vector.broadcast %66 : vector<1x96xf32> to vector<2x96xf32>
    %68 = arith.addf %64, %67 : vector<2x96xf32>
    %c0_61 = arith.constant 0 : index
    %69 = arith.index_cast %c2_i32 : i32 to index
    %c0_62 = arith.constant 0 : index
    %c0_63 = arith.constant 0 : index
    %70 = vector.load %arg8[%c0_61, %69, %c0_62, %c0_63] : memref<2x4x2x96xf32, #tpu.memory_space<vmem>>, vector<1x1x2x96xf32>
    %71 = vector.shape_cast %70 : vector<1x1x2x96xf32> to vector<2x96xf32>
    %72 = vector.shape_cast %68 : vector<2x96xf32> to vector<1x1x2x96xf32>
    tpu.vector_store %arg8[%c0_61, %69, %c0_62, %c0_63], %72 {strides = array<i32>} : memref<2x4x2x96xf32, #tpu.memory_space<vmem>>, vector<1x1x2x96xf32>,
    %c1_64 = arith.constant 1 : index
    %73 = arith.index_cast %c2_i32 : i32 to index
    %c0_65 = arith.constant 0 : index
    %c0_66 = arith.constant 0 : index
    %74 = vector.load %arg1[%c1_64, %73, %c0_65, %c0_66] : memref<2x4x2x32xf32, #tpu.memory_space<vmem>>, vector<1x1x2x32xf32>
    %75 = vector.shape_cast %74 : vector<1x1x2x32xf32> to vector<2x32xf32>
    %c1_67 = arith.constant 1 : index
    %c0_68 = arith.constant 0 : index
    %c0_69 = arith.constant 0 : index
    %76 = vector.load %arg2[%c1_67, %c0_68, %c0_69] : memref<2x32x96xf32, #tpu.memory_space<vmem>>, vector<1x32x96xf32>
    %77 = vector.shape_cast %76 : vector<1x32x96xf32> to vector<32x96xf32>
    %cst_70 = arith.constant dense<0.000000e+00> : vector<2x96xf32>
    %78 = tpu.matmul %75, %77, %cst_70 {dimension_numbers = #tpu.dot_dimension_numbers<[1], [0], [0], [1], [0, 0, 1, 1], [], []>} : vector<2x32xf32>, vector<32x96xf32>, vector<2x96xf32> -> vector<2x96xf32>
    %c1_71 = arith.constant 1 : index
    %c0_72 = arith.constant 0 : index
    %c0_73 = arith.constant 0 : index
    %79 = vector.load %arg4[%c1_71, %c0_72, %c0_73] : memref<2x1x96xf32, #tpu.memory_space<vmem>>, vector<1x1x96xf32>
    %80 = vector.shape_cast %79 : vector<1x1x96xf32> to vector<1x96xf32>
    %81 = vector.broadcast %80 : vector<1x96xf32> to vector<2x96xf32>
    %82 = arith.addf %78, %81 : vector<2x96xf32>
    %c1_74 = arith.constant 1 : index
    %83 = arith.index_cast %c2_i32 : i32 to index
    %c0_75 = arith.constant 0 : index
    %c0_76 = arith.constant 0 : index
    %84 = vector.load %arg8[%c1_74, %83, %c0_75, %c0_76] : memref<2x4x2x96xf32, #tpu.memory_space<vmem>>, vector<1x1x2x96xf32>
    %85 = vector.shape_cast %84 : vector<1x1x2x96xf32> to vector<2x96xf32>
    %86 = vector.shape_cast %82 : vector<2x96xf32> to vector<1x1x2x96xf32>
    tpu.vector_store %arg8[%c1_74, %83, %c0_75, %c0_76], %86 {strides = array<i32>} : memref<2x4x2x96xf32, #tpu.memory_space<vmem>>, vector<1x1x2x96xf32>,
    %c3_i32 = arith.constant 3 : i32
    %c0_77 = arith.constant 0 : index
    %87 = arith.index_cast %c3_i32 : i32 to index
    %c0_78 = arith.constant 0 : index
    %c0_79 = arith.constant 0 : index
    %88 = vector.load %arg1[%c0_77, %87, %c0_78, %c0_79] : memref<2x4x2x32xf32, #tpu.memory_space<vmem>>, vector<1x1x2x32xf32>
    %89 = vector.shape_cast %88 : vector<1x1x2x32xf32> to vector<2x32xf32>
    %c0_80 = arith.constant 0 : index
    %c0_81 = arith.constant 0 : index
    %c0_82 = arith.constant 0 : index
    %90 = vector.load %arg2[%c0_80, %c0_81, %c0_82] : memref<2x32x96xf32, #tpu.memory_space<vmem>>, vector<1x32x96xf32>
    %91 = vector.shape_cast %90 : vector<1x32x96xf32> to vector<32x96xf32>
    %cst_83 = arith.constant dense<0.000000e+00> : vector<2x96xf32>
    %92 = tpu.matmul %89, %91, %cst_83 {dimension_numbers = #tpu.dot_dimension_numbers<[1], [0], [0], [1], [0, 0, 1, 1], [], []>} : vector<2x32xf32>, vector<32x96xf32>, vector<2x96xf32> -> vector<2x96xf32>
    %c0_84 = arith.constant 0 : index
    %c0_85 = arith.constant 0 : index
    %c0_86 = arith.constant 0 : index
    %93 = vector.load %arg4[%c0_84, %c0_85, %c0_86] : memref<2x1x96xf32, #tpu.memory_space<vmem>>, vector<1x1x96xf32>
    %94 = vector.shape_cast %93 : vector<1x1x96xf32> to vector<1x96xf32>
    %95 = vector.broadcast %94 : vector<1x96xf32> to vector<2x96xf32>
    %96 = arith.addf %92, %95 : vector<2x96xf32>
    %c0_87 = arith.constant 0 : index
    %97 = arith.index_cast %c3_i32 : i32 to index
    %c0_88 = arith.constant 0 : index
    %c0_89 = arith.constant 0 : index
    %98 = vector.load %arg8[%c0_87, %97, %c0_88, %c0_89] : memref<2x4x2x96xf32, #tpu.memory_space<vmem>>, vector<1x1x2x96xf32>
    %99 = vector.shape_cast %98 : vector<1x1x2x96xf32> to vector<2x96xf32>
    %100 = vector.shape_cast %96 : vector<2x96xf32> to vector<1x1x2x96xf32>
    tpu.vector_store %arg8[%c0_87, %97, %c0_88, %c0_89], %100 {strides = array<i32>} : memref<2x4x2x96xf32, #tpu.memory_space<vmem>>, vector<1x1x2x96xf32>,
    %c1_90 = arith.constant 1 : index
    %101 = arith.index_cast %c3_i32 : i32 to index
    %c0_91 = arith.constant 0 : index
    %c0_92 = arith.constant 0 : index
    %102 = vector.load %arg1[%c1_90, %101, %c0_91, %c0_92] : memref<2x4x2x32xf32, #tpu.memory_space<vmem>>, vector<1x1x2x32xf32>
    %103 = vector.shape_cast %102 : vector<1x1x2x32xf32> to vector<2x32xf32>
    %c1_93 = arith.constant 1 : index
    %c0_94 = arith.constant 0 : index
    %c0_95 = arith.constant 0 : index
    %104 = vector.load %arg2[%c1_93, %c0_94, %c0_95] : memref<2x32x96xf32, #tpu.memory_space<vmem>>, vector<1x32x96xf32>
    %105 = vector.shape_cast %104 : vector<1x32x96xf32> to vector<32x96xf32>
    %cst_96 = arith.constant dense<0.000000e+00> : vector<2x96xf32>
    %106 = tpu.matmul %103, %105, %cst_96 {dimension_numbers = #tpu.dot_dimension_numbers<[1], [0], [0], [1], [0, 0, 1, 1], [], []>} : vector<2x32xf32>, vector<32x96xf32>, vector<2x96xf32> -> vector<2x96xf32>
    %c1_97 = arith.constant 1 : index
    %c0_98 = arith.constant 0 : index
    %c0_99 = arith.constant 0 : index
    %107 = vector.load %arg4[%c1_97, %c0_98, %c0_99] : memref<2x1x96xf32, #tpu.memory_space<vmem>>, vector<1x1x96xf32>
    %108 = vector.shape_cast %107 : vector<1x1x96xf32> to vector<1x96xf32>
    %109 = vector.broadcast %108 : vector<1x96xf32> to vector<2x96xf32>
    %110 = arith.addf %106, %109 : vector<2x96xf32>
    %c1_100 = arith.constant 1 : index
    %111 = arith.index_cast %c3_i32 : i32 to index
    %c0_101 = arith.constant 0 : index
    %c0_102 = arith.constant 0 : index
    %112 = vector.load %arg8[%c1_100, %111, %c0_101, %c0_102] : memref<2x4x2x96xf32, #tpu.memory_space<vmem>>, vector<1x1x2x96xf32>
    %113 = vector.shape_cast %112 : vector<1x1x2x96xf32> to vector<2x96xf32>
    %114 = vector.shape_cast %110 : vector<2x96xf32> to vector<1x1x2x96xf32>
    tpu.vector_store %arg8[%c1_100, %111, %c0_101, %c0_102], %114 {strides = array<i32>} : memref<2x4x2x96xf32, #tpu.memory_space<vmem>>, vector<1x1x2x96xf32>,
    %c4_i32 = arith.constant 4 : i32
    %c0_103 = arith.constant 0 : index
    %c0_104 = arith.constant 0 : index
    %c0_105 = arith.constant 0 : index
    %115 = vector.load %arg5[%c0_103, %c0_104, %c0_105] : memref<2x1x32xf32, #tpu.memory_space<vmem>>, vector<1x1x32xf32>
    %116 = vector.shape_cast %115 : vector<1x1x32xf32> to vector<1x32xf32>
    %c1_106 = arith.constant 1 : index
    %c0_107 = arith.constant 0 : index
    %c0_108 = arith.constant 0 : index
    %117 = vector.load %arg5[%c1_106, %c0_107, %c0_108] : memref<2x1x32xf32, #tpu.memory_space<vmem>>, vector<1x1x32xf32>
    %118 = vector.shape_cast %117 : vector<1x1x32xf32> to vector<1x32xf32>
    %c0_109 = arith.constant 0 : index
    %c0_110 = arith.constant 0 : index
    %c0_111 = arith.constant 0 : index
    %119 = vector.load %arg7[%c0_109, %c0_110, %c0_111] : memref<2x2x32xf32, #tpu.memory_space<vmem>>, vector<1x2x32xf32>
    %120 = vector.shape_cast %119 : vector<1x2x32xf32> to vector<2x32xf32>
    %c1_112 = arith.constant 1 : index
    %c0_113 = arith.constant 0 : index
    %c0_114 = arith.constant 0 : index
    %121 = vector.load %arg7[%c1_112, %c0_113, %c0_114] : memref<2x2x32xf32, #tpu.memory_space<vmem>>, vector<1x2x32xf32>
    %122 = vector.shape_cast %121 : vector<1x2x32xf32> to vector<2x32xf32>
    %c0_i32_115 = arith.constant 0 : i32
    %c0_116 = arith.constant 0 : index
    %c0_117 = arith.constant 0 : index
    %c0_118 = arith.constant 0 : index
    %123 = vector.load %arg3[%c0_116, %c0_117, %c0_118] : memref<2x32x96xf32, #tpu.memory_space<vmem>>, vector<1x32x96xf32>
    %124 = vector.shape_cast %123 : vector<1x32x96xf32> to vector<32x96xf32>
    %cst_119 = arith.constant dense<0.000000e+00> : vector<2x96xf32>
    %125 = tpu.matmul %120, %124, %cst_119 {dimension_numbers = #tpu.dot_dimension_numbers<[1], [0], [0], [1], [0, 0, 1, 1], [], []>} : vector<2x32xf32>, vector<32x96xf32>, vector<2x96xf32> -> vector<2x96xf32>
    %c1_120 = arith.constant 1 : index
    %c0_121 = arith.constant 0 : index
    %c0_122 = arith.constant 0 : index
    %126 = vector.load %arg3[%c1_120, %c0_121, %c0_122] : memref<2x32x96xf32, #tpu.memory_space<vmem>>, vector<1x32x96xf32>
    %127 = vector.shape_cast %126 : vector<1x32x96xf32> to vector<32x96xf32>
    %cst_123 = arith.constant dense<0.000000e+00> : vector<2x96xf32>
    %128 = tpu.matmul %122, %127, %cst_123 {dimension_numbers = #tpu.dot_dimension_numbers<[1], [0], [0], [1], [0, 0, 1, 1], [], []>} : vector<2x32xf32>, vector<32x96xf32>, vector<2x96xf32> -> vector<2x96xf32>
    %c0_124 = arith.constant 0 : index
    %129 = arith.index_cast %c0_i32_115 : i32 to index
    %c0_125 = arith.constant 0 : index
    %c0_126 = arith.constant 0 : index
    %130 = vector.load %arg8[%c0_124, %129, %c0_125, %c0_126] : memref<2x4x2x96xf32, #tpu.memory_space<vmem>>, vector<1x1x2x96xf32>
    %131 = vector.shape_cast %130 : vector<1x1x2x96xf32> to vector<2x96xf32>
    %132 = vector.extract_strided_slice %131 {offsets = [0, 0], sizes = [2, 32], strides = [1, 1]} : vector<2x96xf32> to vector<2x32xf32>
    %133 = vector.extract_strided_slice %125 {offsets = [0, 0], sizes = [2, 32], strides = [1, 1]} : vector<2x96xf32> to vector<2x32xf32>
    %134 = arith.addf %132, %133 : vector<2x32xf32>
    %135 = arith.negf %134 : vector<2x32xf32>
    %136 = math.exp %135 : vector<2x32xf32>
    %cst_127 = arith.constant 1.000000e+00 : f32
    %137 = vector.broadcast %cst_127 : f32 to vector<2x32xf32>
    %138 = arith.addf %137, %136 : vector<2x32xf32>
    %139 = arith.divf %137, %138 : vector<2x32xf32>
    %140 = vector.extract_strided_slice %131 {offsets = [0, 32], sizes = [2, 32], strides = [1, 1]} : vector<2x96xf32> to vector<2x32xf32>
    %141 = vector.extract_strided_slice %125 {offsets = [0, 32], sizes = [2, 32], strides = [1, 1]} : vector<2x96xf32> to vector<2x32xf32>
    %142 = arith.addf %140, %141 : vector<2x32xf32>
    %143 = arith.negf %142 : vector<2x32xf32>
    %144 = math.exp %143 : vector<2x32xf32>
    %cst_128 = arith.constant 1.000000e+00 : f32
    %145 = vector.broadcast %cst_128 : f32 to vector<2x32xf32>
    %146 = arith.addf %145, %144 : vector<2x32xf32>
    %147 = arith.divf %145, %146 : vector<2x32xf32>
    %148 = vector.extract_strided_slice %131 {offsets = [0, 64], sizes = [2, 32], strides = [1, 1]} : vector<2x96xf32> to vector<2x32xf32>
    %149 = vector.extract_strided_slice %125 {offsets = [0, 64], sizes = [2, 32], strides = [1, 1]} : vector<2x96xf32> to vector<2x32xf32>
    %150 = vector.broadcast %116 : vector<1x32xf32> to vector<2x32xf32>
    %151 = arith.addf %149, %150 : vector<2x32xf32>
    %152 = arith.mulf %139, %151 : vector<2x32xf32>
    %153 = arith.addf %148, %152 : vector<2x32xf32>
    %154 = math.tanh %153 : vector<2x32xf32>
    %cst_129 = arith.constant 1.000000e+00 : f32
    %155 = vector.broadcast %cst_129 : f32 to vector<2x32xf32>
    %156 = arith.subf %155, %147 : vector<2x32xf32>
    %157 = arith.mulf %156, %154 : vector<2x32xf32>
    %158 = arith.mulf %147, %120 : vector<2x32xf32>
    %159 = arith.addf %157, %158 : vector<2x32xf32>
    %c1_130 = arith.constant 1 : index
    %160 = arith.index_cast %c0_i32_115 : i32 to index
    %c0_131 = arith.constant 0 : index
    %c0_132 = arith.constant 0 : index
    %161 = vector.load %arg8[%c1_130, %160, %c0_131, %c0_132] : memref<2x4x2x96xf32, #tpu.memory_space<vmem>>, vector<1x1x2x96xf32>
    %162 = vector.shape_cast %161 : vector<1x1x2x96xf32> to vector<2x96xf32>
    %163 = vector.extract_strided_slice %162 {offsets = [0, 0], sizes = [2, 32], strides = [1, 1]} : vector<2x96xf32> to vector<2x32xf32>
    %164 = vector.extract_strided_slice %128 {offsets = [0, 0], sizes = [2, 32], strides = [1, 1]} : vector<2x96xf32> to vector<2x32xf32>
    %165 = arith.addf %163, %164 : vector<2x32xf32>
    %166 = arith.negf %165 : vector<2x32xf32>
    %167 = math.exp %166 : vector<2x32xf32>
    %cst_133 = arith.constant 1.000000e+00 : f32
    %168 = vector.broadcast %cst_133 : f32 to vector<2x32xf32>
    %169 = arith.addf %168, %167 : vector<2x32xf32>
    %170 = arith.divf %168, %169 : vector<2x32xf32>
    %171 = vector.extract_strided_slice %162 {offsets = [0, 32], sizes = [2, 32], strides = [1, 1]} : vector<2x96xf32> to vector<2x32xf32>
    %172 = vector.extract_strided_slice %128 {offsets = [0, 32], sizes = [2, 32], strides = [1, 1]} : vector<2x96xf32> to vector<2x32xf32>
    %173 = arith.addf %171, %172 : vector<2x32xf32>
    %174 = arith.negf %173 : vector<2x32xf32>
    %175 = math.exp %174 : vector<2x32xf32>
    %cst_134 = arith.constant 1.000000e+00 : f32
    %176 = vector.broadcast %cst_134 : f32 to vector<2x32xf32>
    %177 = arith.addf %176, %175 : vector<2x32xf32>
    %178 = arith.divf %176, %177 : vector<2x32xf32>
    %179 = vector.extract_strided_slice %162 {offsets = [0, 64], sizes = [2, 32], strides = [1, 1]} : vector<2x96xf32> to vector<2x32xf32>
    %180 = vector.extract_strided_slice %128 {offsets = [0, 64], sizes = [2, 32], strides = [1, 1]} : vector<2x96xf32> to vector<2x32xf32>
    %181 = vector.broadcast %118 : vector<1x32xf32> to vector<2x32xf32>
    %182 = arith.addf %180, %181 : vector<2x32xf32>
    %183 = arith.mulf %170, %182 : vector<2x32xf32>
    %184 = arith.addf %179, %183 : vector<2x32xf32>
    %185 = math.tanh %184 : vector<2x32xf32>
    %cst_135 = arith.constant 1.000000e+00 : f32
    %186 = vector.broadcast %cst_135 : f32 to vector<2x32xf32>
    %187 = arith.subf %186, %178 : vector<2x32xf32>
    %188 = arith.mulf %187, %185 : vector<2x32xf32>
    %189 = arith.mulf %178, %122 : vector<2x32xf32>
    %190 = arith.addf %188, %189 : vector<2x32xf32>
    %c0_136 = arith.constant 0 : index
    %191 = arith.index_cast %c0_i32_115 : i32 to index
    %c0_137 = arith.constant 0 : index
    %c0_138 = arith.constant 0 : index
    %192 = vector.load %arg6[%c0_136, %191, %c0_137, %c0_138] : memref<2x4x2x32xf32, #tpu.memory_space<vmem>>, vector<1x1x2x32xf32>
    %193 = vector.shape_cast %192 : vector<1x1x2x32xf32> to vector<2x32xf32>
    %194 = vector.shape_cast %159 : vector<2x32xf32> to vector<1x1x2x32xf32>
    tpu.vector_store %arg6[%c0_136, %191, %c0_137, %c0_138], %194 {strides = array<i32>} : memref<2x4x2x32xf32, #tpu.memory_space<vmem>>, vector<1x1x2x32xf32>,
    %c1_139 = arith.constant 1 : index
    %195 = arith.index_cast %c0_i32_115 : i32 to index
    %c0_140 = arith.constant 0 : index
    %c0_141 = arith.constant 0 : index
    %196 = vector.load %arg6[%c1_139, %195, %c0_140, %c0_141] : memref<2x4x2x32xf32, #tpu.memory_space<vmem>>, vector<1x1x2x32xf32>
    %197 = vector.shape_cast %196 : vector<1x1x2x32xf32> to vector<2x32xf32>
    %198 = vector.shape_cast %190 : vector<2x32xf32> to vector<1x1x2x32xf32>
    tpu.vector_store %arg6[%c1_139, %195, %c0_140, %c0_141], %198 {strides = array<i32>} : memref<2x4x2x32xf32, #tpu.memory_space<vmem>>, vector<1x1x2x32xf32>,
    %c1_i32_142 = arith.constant 1 : i32
    %c0_143 = arith.constant 0 : index
    %c0_144 = arith.constant 0 : index
    %c0_145 = arith.constant 0 : index
    %199 = vector.load %arg3[%c0_143, %c0_144, %c0_145] : memref<2x32x96xf32, #tpu.memory_space<vmem>>, vector<1x32x96xf32>
    %200 = vector.shape_cast %199 : vector<1x32x96xf32> to vector<32x96xf32>
    %cst_146 = arith.constant dense<0.000000e+00> : vector<2x96xf32>
    %201 = tpu.matmul %159, %200, %cst_146 {dimension_numbers = #tpu.dot_dimension_numbers<[1], [0], [0], [1], [0, 0, 1, 1], [], []>} : vector<2x32xf32>, vector<32x96xf32>, vector<2x96xf32> -> vector<2x96xf32>
    %c1_147 = arith.constant 1 : index
    %c0_148 = arith.constant 0 : index
    %c0_149 = arith.constant 0 : index
    %202 = vector.load %arg3[%c1_147, %c0_148, %c0_149] : memref<2x32x96xf32, #tpu.memory_space<vmem>>, vector<1x32x96xf32>
    %203 = vector.shape_cast %202 : vector<1x32x96xf32> to vector<32x96xf32>
    %cst_150 = arith.constant dense<0.000000e+00> : vector<2x96xf32>
    %204 = tpu.matmul %190, %203, %cst_150 {dimension_numbers = #tpu.dot_dimension_numbers<[1], [0], [0], [1], [0, 0, 1, 1], [], []>} : vector<2x32xf32>, vector<32x96xf32>, vector<2x96xf32> -> vector<2x96xf32>
    %c0_151 = arith.constant 0 : index
    %205 = arith.index_cast %c1_i32_142 : i32 to index
    %c0_152 = arith.constant 0 : index
    %c0_153 = arith.constant 0 : index
    %206 = vector.load %arg8[%c0_151, %205, %c0_152, %c0_153] : memref<2x4x2x96xf32, #tpu.memory_space<vmem>>, vector<1x1x2x96xf32>
    %207 = vector.shape_cast %206 : vector<1x1x2x96xf32> to vector<2x96xf32>
    %208 = vector.extract_strided_slice %207 {offsets = [0, 0], sizes = [2, 32], strides = [1, 1]} : vector<2x96xf32> to vector<2x32xf32>
    %209 = vector.extract_strided_slice %201 {offsets = [0, 0], sizes = [2, 32], strides = [1, 1]} : vector<2x96xf32> to vector<2x32xf32>
    %210 = arith.addf %208, %209 : vector<2x32xf32>
    %211 = arith.negf %210 : vector<2x32xf32>
    %212 = math.exp %211 : vector<2x32xf32>
    %cst_154 = arith.constant 1.000000e+00 : f32
    %213 = vector.broadcast %cst_154 : f32 to vector<2x32xf32>
    %214 = arith.addf %213, %212 : vector<2x32xf32>
    %215 = arith.divf %213, %214 : vector<2x32xf32>
    %216 = vector.extract_strided_slice %207 {offsets = [0, 32], sizes = [2, 32], strides = [1, 1]} : vector<2x96xf32> to vector<2x32xf32>
    %217 = vector.extract_strided_slice %201 {offsets = [0, 32], sizes = [2, 32], strides = [1, 1]} : vector<2x96xf32> to vector<2x32xf32>
    %218 = arith.addf %216, %217 : vector<2x32xf32>
    %219 = arith.negf %218 : vector<2x32xf32>
    %220 = math.exp %219 : vector<2x32xf32>
    %cst_155 = arith.constant 1.000000e+00 : f32
    %221 = vector.broadcast %cst_155 : f32 to vector<2x32xf32>
    %222 = arith.addf %221, %220 : vector<2x32xf32>
    %223 = arith.divf %221, %222 : vector<2x32xf32>
    %224 = vector.extract_strided_slice %207 {offsets = [0, 64], sizes = [2, 32], strides = [1, 1]} : vector<2x96xf32> to vector<2x32xf32>
    %225 = vector.extract_strided_slice %201 {offsets = [0, 64], sizes = [2, 32], strides = [1, 1]} : vector<2x96xf32> to vector<2x32xf32>
    %226 = vector.broadcast %116 : vector<1x32xf32> to vector<2x32xf32>
    %227 = arith.addf %225, %226 : vector<2x32xf32>
    %228 = arith.mulf %215, %227 : vector<2x32xf32>
    %229 = arith.addf %224, %228 : vector<2x32xf32>
    %230 = math.tanh %229 : vector<2x32xf32>
    %cst_156 = arith.constant 1.000000e+00 : f32
    %231 = vector.broadcast %cst_156 : f32 to vector<2x32xf32>
    %232 = arith.subf %231, %223 : vector<2x32xf32>
    %233 = arith.mulf %232, %230 : vector<2x32xf32>
    %234 = arith.mulf %223, %159 : vector<2x32xf32>
    %235 = arith.addf %233, %234 : vector<2x32xf32>
    %c1_157 = arith.constant 1 : index
    %236 = arith.index_cast %c1_i32_142 : i32 to index
    %c0_158 = arith.constant 0 : index
    %c0_159 = arith.constant 0 : index
    %237 = vector.load %arg8[%c1_157, %236, %c0_158, %c0_159] : memref<2x4x2x96xf32, #tpu.memory_space<vmem>>, vector<1x1x2x96xf32>
    %238 = vector.shape_cast %237 : vector<1x1x2x96xf32> to vector<2x96xf32>
    %239 = vector.extract_strided_slice %238 {offsets = [0, 0], sizes = [2, 32], strides = [1, 1]} : vector<2x96xf32> to vector<2x32xf32>
    %240 = vector.extract_strided_slice %204 {offsets = [0, 0], sizes = [2, 32], strides = [1, 1]} : vector<2x96xf32> to vector<2x32xf32>
    %241 = arith.addf %239, %240 : vector<2x32xf32>
    %242 = arith.negf %241 : vector<2x32xf32>
    %243 = math.exp %242 : vector<2x32xf32>
    %cst_160 = arith.constant 1.000000e+00 : f32
    %244 = vector.broadcast %cst_160 : f32 to vector<2x32xf32>
    %245 = arith.addf %244, %243 : vector<2x32xf32>
    %246 = arith.divf %244, %245 : vector<2x32xf32>
    %247 = vector.extract_strided_slice %238 {offsets = [0, 32], sizes = [2, 32], strides = [1, 1]} : vector<2x96xf32> to vector<2x32xf32>
    %248 = vector.extract_strided_slice %204 {offsets = [0, 32], sizes = [2, 32], strides = [1, 1]} : vector<2x96xf32> to vector<2x32xf32>
    %249 = arith.addf %247, %248 : vector<2x32xf32>
    %250 = arith.negf %249 : vector<2x32xf32>
    %251 = math.exp %250 : vector<2x32xf32>
    %cst_161 = arith.constant 1.000000e+00 : f32
    %252 = vector.broadcast %cst_161 : f32 to vector<2x32xf32>
    %253 = arith.addf %252, %251 : vector<2x32xf32>
    %254 = arith.divf %252, %253 : vector<2x32xf32>
    %255 = vector.extract_strided_slice %238 {offsets = [0, 64], sizes = [2, 32], strides = [1, 1]} : vector<2x96xf32> to vector<2x32xf32>
    %256 = vector.extract_strided_slice %204 {offsets = [0, 64], sizes = [2, 32], strides = [1, 1]} : vector<2x96xf32> to vector<2x32xf32>
    %257 = vector.broadcast %118 : vector<1x32xf32> to vector<2x32xf32>
    %258 = arith.addf %256, %257 : vector<2x32xf32>
    %259 = arith.mulf %246, %258 : vector<2x32xf32>
    %260 = arith.addf %255, %259 : vector<2x32xf32>
    %261 = math.tanh %260 : vector<2x32xf32>
    %cst_162 = arith.constant 1.000000e+00 : f32
    %262 = vector.broadcast %cst_162 : f32 to vector<2x32xf32>
    %263 = arith.subf %262, %254 : vector<2x32xf32>
    %264 = arith.mulf %263, %261 : vector<2x32xf32>
    %265 = arith.mulf %254, %190 : vector<2x32xf32>
    %266 = arith.addf %264, %265 : vector<2x32xf32>
    %c0_163 = arith.constant 0 : index
    %267 = arith.index_cast %c1_i32_142 : i32 to index
    %c0_164 = arith.constant 0 : index
    %c0_165 = arith.constant 0 : index
    %268 = vector.load %arg6[%c0_163, %267, %c0_164, %c0_165] : memref<2x4x2x32xf32, #tpu.memory_space<vmem>>, vector<1x1x2x32xf32>
    %269 = vector.shape_cast %268 : vector<1x1x2x32xf32> to vector<2x32xf32>
    %270 = vector.shape_cast %235 : vector<2x32xf32> to vector<1x1x2x32xf32>
    tpu.vector_store %arg6[%c0_163, %267, %c0_164, %c0_165], %270 {strides = array<i32>} : memref<2x4x2x32xf32, #tpu.memory_space<vmem>>, vector<1x1x2x32xf32>,
    %c1_166 = arith.constant 1 : index
    %271 = arith.index_cast %c1_i32_142 : i32 to index
    %c0_167 = arith.constant 0 : index
    %c0_168 = arith.constant 0 : index
    %272 = vector.load %arg6[%c1_166, %271, %c0_167, %c0_168] : memref<2x4x2x32xf32, #tpu.memory_space<vmem>>, vector<1x1x2x32xf32>
    %273 = vector.shape_cast %272 : vector<1x1x2x32xf32> to vector<2x32xf32>
    %274 = vector.shape_cast %266 : vector<2x32xf32> to vector<1x1x2x32xf32>
    tpu.vector_store %arg6[%c1_166, %271, %c0_167, %c0_168], %274 {strides = array<i32>} : memref<2x4x2x32xf32, #tpu.memory_space<vmem>>, vector<1x1x2x32xf32>,
    %c2_i32_169 = arith.constant 2 : i32
    %c0_170 = arith.constant 0 : index
    %c0_171 = arith.constant 0 : index
    %c0_172 = arith.constant 0 : index
    %275 = vector.load %arg3[%c0_170, %c0_171, %c0_172] : memref<2x32x96xf32, #tpu.memory_space<vmem>>, vector<1x32x96xf32>
    %276 = vector.shape_cast %275 : vector<1x32x96xf32> to vector<32x96xf32>
    %cst_173 = arith.constant dense<0.000000e+00> : vector<2x96xf32>
    %277 = tpu.matmul %235, %276, %cst_173 {dimension_numbers = #tpu.dot_dimension_numbers<[1], [0], [0], [1], [0, 0, 1, 1], [], []>} : vector<2x32xf32>, vector<32x96xf32>, vector<2x96xf32> -> vector<2x96xf32>
    %c1_174 = arith.constant 1 : index
    %c0_175 = arith.constant 0 : index
    %c0_176 = arith.constant 0 : index
    %278 = vector.load %arg3[%c1_174, %c0_175, %c0_176] : memref<2x32x96xf32, #tpu.memory_space<vmem>>, vector<1x32x96xf32>
    %279 = vector.shape_cast %278 : vector<1x32x96xf32> to vector<32x96xf32>
    %cst_177 = arith.constant dense<0.000000e+00> : vector<2x96xf32>
    %280 = tpu.matmul %266, %279, %cst_177 {dimension_numbers = #tpu.dot_dimension_numbers<[1], [0], [0], [1], [0, 0, 1, 1], [], []>} : vector<2x32xf32>, vector<32x96xf32>, vector<2x96xf32> -> vector<2x96xf32>
    %c0_178 = arith.constant 0 : index
    %281 = arith.index_cast %c2_i32_169 : i32 to index
    %c0_179 = arith.constant 0 : index
    %c0_180 = arith.constant 0 : index
    %282 = vector.load %arg8[%c0_178, %281, %c0_179, %c0_180] : memref<2x4x2x96xf32, #tpu.memory_space<vmem>>, vector<1x1x2x96xf32>
    %283 = vector.shape_cast %282 : vector<1x1x2x96xf32> to vector<2x96xf32>
    %284 = vector.extract_strided_slice %283 {offsets = [0, 0], sizes = [2, 32], strides = [1, 1]} : vector<2x96xf32> to vector<2x32xf32>
    %285 = vector.extract_strided_slice %277 {offsets = [0, 0], sizes = [2, 32], strides = [1, 1]} : vector<2x96xf32> to vector<2x32xf32>
    %286 = arith.addf %284, %285 : vector<2x32xf32>
    %287 = arith.negf %286 : vector<2x32xf32>
    %288 = math.exp %287 : vector<2x32xf32>
    %cst_181 = arith.constant 1.000000e+00 : f32
    %289 = vector.broadcast %cst_181 : f32 to vector<2x32xf32>
    %290 = arith.addf %289, %288 : vector<2x32xf32>
    %291 = arith.divf %289, %290 : vector<2x32xf32>
    %292 = vector.extract_strided_slice %283 {offsets = [0, 32], sizes = [2, 32], strides = [1, 1]} : vector<2x96xf32> to vector<2x32xf32>
    %293 = vector.extract_strided_slice %277 {offsets = [0, 32], sizes = [2, 32], strides = [1, 1]} : vector<2x96xf32> to vector<2x32xf32>
    %294 = arith.addf %292, %293 : vector<2x32xf32>
    %295 = arith.negf %294 : vector<2x32xf32>
    %296 = math.exp %295 : vector<2x32xf32>
    %cst_182 = arith.constant 1.000000e+00 : f32
    %297 = vector.broadcast %cst_182 : f32 to vector<2x32xf32>
    %298 = arith.addf %297, %296 : vector<2x32xf32>
    %299 = arith.divf %297, %298 : vector<2x32xf32>
    %300 = vector.extract_strided_slice %283 {offsets = [0, 64], sizes = [2, 32], strides = [1, 1]} : vector<2x96xf32> to vector<2x32xf32>
    %301 = vector.extract_strided_slice %277 {offsets = [0, 64], sizes = [2, 32], strides = [1, 1]} : vector<2x96xf32> to vector<2x32xf32>
    %302 = vector.broadcast %116 : vector<1x32xf32> to vector<2x32xf32>
    %303 = arith.addf %301, %302 : vector<2x32xf32>
    %304 = arith.mulf %291, %303 : vector<2x32xf32>
    %305 = arith.addf %300, %304 : vector<2x32xf32>
    %306 = math.tanh %305 : vector<2x32xf32>
    %cst_183 = arith.constant 1.000000e+00 : f32
    %307 = vector.broadcast %cst_183 : f32 to vector<2x32xf32>
    %308 = arith.subf %307, %299 : vector<2x32xf32>
    %309 = arith.mulf %308, %306 : vector<2x32xf32>
    %310 = arith.mulf %299, %235 : vector<2x32xf32>
    %311 = arith.addf %309, %310 : vector<2x32xf32>
    %c1_184 = arith.constant 1 : index
    %312 = arith.index_cast %c2_i32_169 : i32 to index
    %c0_185 = arith.constant 0 : index
    %c0_186 = arith.constant 0 : index
    %313 = vector.load %arg8[%c1_184, %312, %c0_185, %c0_186] : memref<2x4x2x96xf32, #tpu.memory_space<vmem>>, vector<1x1x2x96xf32>
    %314 = vector.shape_cast %313 : vector<1x1x2x96xf32> to vector<2x96xf32>
    %315 = vector.extract_strided_slice %314 {offsets = [0, 0], sizes = [2, 32], strides = [1, 1]} : vector<2x96xf32> to vector<2x32xf32>
    %316 = vector.extract_strided_slice %280 {offsets = [0, 0], sizes = [2, 32], strides = [1, 1]} : vector<2x96xf32> to vector<2x32xf32>
    %317 = arith.addf %315, %316 : vector<2x32xf32>
    %318 = arith.negf %317 : vector<2x32xf32>
    %319 = math.exp %318 : vector<2x32xf32>
    %cst_187 = arith.constant 1.000000e+00 : f32
    %320 = vector.broadcast %cst_187 : f32 to vector<2x32xf32>
    %321 = arith.addf %320, %319 : vector<2x32xf32>
    %322 = arith.divf %320, %321 : vector<2x32xf32>
    %323 = vector.extract_strided_slice %314 {offsets = [0, 32], sizes = [2, 32], strides = [1, 1]} : vector<2x96xf32> to vector<2x32xf32>
    %324 = vector.extract_strided_slice %280 {offsets = [0, 32], sizes = [2, 32], strides = [1, 1]} : vector<2x96xf32> to vector<2x32xf32>
    %325 = arith.addf %323, %324 : vector<2x32xf32>
    %326 = arith.negf %325 : vector<2x32xf32>
    %327 = math.exp %326 : vector<2x32xf32>
    %cst_188 = arith.constant 1.000000e+00 : f32
    %328 = vector.broadcast %cst_188 : f32 to vector<2x32xf32>
    %329 = arith.addf %328, %327 : vector<2x32xf32>
    %330 = arith.divf %328, %329 : vector<2x32xf32>
    %331 = vector.extract_strided_slice %314 {offsets = [0, 64], sizes = [2, 32], strides = [1, 1]} : vector<2x96xf32> to vector<2x32xf32>
    %332 = vector.extract_strided_slice %280 {offsets = [0, 64], sizes = [2, 32], strides = [1, 1]} : vector<2x96xf32> to vector<2x32xf32>
    %333 = vector.broadcast %118 : vector<1x32xf32> to vector<2x32xf32>
    %334 = arith.addf %332, %333 : vector<2x32xf32>
    %335 = arith.mulf %322, %334 : vector<2x32xf32>
    %336 = arith.addf %331, %335 : vector<2x32xf32>
    %337 = math.tanh %336 : vector<2x32xf32>
    %cst_189 = arith.constant 1.000000e+00 : f32
    %338 = vector.broadcast %cst_189 : f32 to vector<2x32xf32>
    %339 = arith.subf %338, %330 : vector<2x32xf32>
    %340 = arith.mulf %339, %337 : vector<2x32xf32>
    %341 = arith.mulf %330, %266 : vector<2x32xf32>
    %342 = arith.addf %340, %341 : vector<2x32xf32>
    %c0_190 = arith.constant 0 : index
    %343 = arith.index_cast %c2_i32_169 : i32 to index
    %c0_191 = arith.constant 0 : index
    %c0_192 = arith.constant 0 : index
    %344 = vector.load %arg6[%c0_190, %343, %c0_191, %c0_192] : memref<2x4x2x32xf32, #tpu.memory_space<vmem>>, vector<1x1x2x32xf32>
    %345 = vector.shape_cast %344 : vector<1x1x2x32xf32> to vector<2x32xf32>
    %346 = vector.shape_cast %311 : vector<2x32xf32> to vector<1x1x2x32xf32>
    tpu.vector_store %arg6[%c0_190, %343, %c0_191, %c0_192], %346 {strides = array<i32>} : memref<2x4x2x32xf32, #tpu.memory_space<vmem>>, vector<1x1x2x32xf32>,
    %c1_193 = arith.constant 1 : index
    %347 = arith.index_cast %c2_i32_169 : i32 to index
    %c0_194 = arith.constant 0 : index
    %c0_195 = arith.constant 0 : index
    %348 = vector.load %arg6[%c1_193, %347, %c0_194, %c0_195] : memref<2x4x2x32xf32, #tpu.memory_space<vmem>>, vector<1x1x2x32xf32>
    %349 = vector.shape_cast %348 : vector<1x1x2x32xf32> to vector<2x32xf32>
    %350 = vector.shape_cast %342 : vector<2x32xf32> to vector<1x1x2x32xf32>
    tpu.vector_store %arg6[%c1_193, %347, %c0_194, %c0_195], %350 {strides = array<i32>} : memref<2x4x2x32xf32, #tpu.memory_space<vmem>>, vector<1x1x2x32xf32>,
    %c3_i32_196 = arith.constant 3 : i32
    %c0_197 = arith.constant 0 : index
    %c0_198 = arith.constant 0 : index
    %c0_199 = arith.constant 0 : index
    %351 = vector.load %arg3[%c0_197, %c0_198, %c0_199] : memref<2x32x96xf32, #tpu.memory_space<vmem>>, vector<1x32x96xf32>
    %352 = vector.shape_cast %351 : vector<1x32x96xf32> to vector<32x96xf32>
    %cst_200 = arith.constant dense<0.000000e+00> : vector<2x96xf32>
    %353 = tpu.matmul %311, %352, %cst_200 {dimension_numbers = #tpu.dot_dimension_numbers<[1], [0], [0], [1], [0, 0, 1, 1], [], []>} : vector<2x32xf32>, vector<32x96xf32>, vector<2x96xf32> -> vector<2x96xf32>
    %c1_201 = arith.constant 1 : index
    %c0_202 = arith.constant 0 : index
    %c0_203 = arith.constant 0 : index
    %354 = vector.load %arg3[%c1_201, %c0_202, %c0_203] : memref<2x32x96xf32, #tpu.memory_space<vmem>>, vector<1x32x96xf32>
    %355 = vector.shape_cast %354 : vector<1x32x96xf32> to vector<32x96xf32>
    %cst_204 = arith.constant dense<0.000000e+00> : vector<2x96xf32>
    %356 = tpu.matmul %342, %355, %cst_204 {dimension_numbers = #tpu.dot_dimension_numbers<[1], [0], [0], [1], [0, 0, 1, 1], [], []>} : vector<2x32xf32>, vector<32x96xf32>, vector<2x96xf32> -> vector<2x96xf32>
    %c0_205 = arith.constant 0 : index
    %357 = arith.index_cast %c3_i32_196 : i32 to index
    %c0_206 = arith.constant 0 : index
    %c0_207 = arith.constant 0 : index
    %358 = vector.load %arg8[%c0_205, %357, %c0_206, %c0_207] : memref<2x4x2x96xf32, #tpu.memory_space<vmem>>, vector<1x1x2x96xf32>
    %359 = vector.shape_cast %358 : vector<1x1x2x96xf32> to vector<2x96xf32>
    %360 = vector.extract_strided_slice %359 {offsets = [0, 0], sizes = [2, 32], strides = [1, 1]} : vector<2x96xf32> to vector<2x32xf32>
    %361 = vector.extract_strided_slice %353 {offsets = [0, 0], sizes = [2, 32], strides = [1, 1]} : vector<2x96xf32> to vector<2x32xf32>
    %362 = arith.addf %360, %361 : vector<2x32xf32>
    %363 = arith.negf %362 : vector<2x32xf32>
    %364 = math.exp %363 : vector<2x32xf32>
    %cst_208 = arith.constant 1.000000e+00 : f32
    %365 = vector.broadcast %cst_208 : f32 to vector<2x32xf32>
    %366 = arith.addf %365, %364 : vector<2x32xf32>
    %367 = arith.divf %365, %366 : vector<2x32xf32>
    %368 = vector.extract_strided_slice %359 {offsets = [0, 32], sizes = [2, 32], strides = [1, 1]} : vector<2x96xf32> to vector<2x32xf32>
    %369 = vector.extract_strided_slice %353 {offsets = [0, 32], sizes = [2, 32], strides = [1, 1]} : vector<2x96xf32> to vector<2x32xf32>
    %370 = arith.addf %368, %369 : vector<2x32xf32>
    %371 = arith.negf %370 : vector<2x32xf32>
    %372 = math.exp %371 : vector<2x32xf32>
    %cst_209 = arith.constant 1.000000e+00 : f32
    %373 = vector.broadcast %cst_209 : f32 to vector<2x32xf32>
    %374 = arith.addf %373, %372 : vector<2x32xf32>
    %375 = arith.divf %373, %374 : vector<2x32xf32>
    %376 = vector.extract_strided_slice %359 {offsets = [0, 64], sizes = [2, 32], strides = [1, 1]} : vector<2x96xf32> to vector<2x32xf32>
    %377 = vector.extract_strided_slice %353 {offsets = [0, 64], sizes = [2, 32], strides = [1, 1]} : vector<2x96xf32> to vector<2x32xf32>
    %378 = vector.broadcast %116 : vector<1x32xf32> to vector<2x32xf32>
    %379 = arith.addf %377, %378 : vector<2x32xf32>
    %380 = arith.mulf %367, %379 : vector<2x32xf32>
    %381 = arith.addf %376, %380 : vector<2x32xf32>
    %382 = math.tanh %381 : vector<2x32xf32>
    %cst_210 = arith.constant 1.000000e+00 : f32
    %383 = vector.broadcast %cst_210 : f32 to vector<2x32xf32>
    %384 = arith.subf %383, %375 : vector<2x32xf32>
    %385 = arith.mulf %384, %382 : vector<2x32xf32>
    %386 = arith.mulf %375, %311 : vector<2x32xf32>
    %387 = arith.addf %385, %386 : vector<2x32xf32>
    %c1_211 = arith.constant 1 : index
    %388 = arith.index_cast %c3_i32_196 : i32 to index
    %c0_212 = arith.constant 0 : index
    %c0_213 = arith.constant 0 : index
    %389 = vector.load %arg8[%c1_211, %388, %c0_212, %c0_213] : memref<2x4x2x96xf32, #tpu.memory_space<vmem>>, vector<1x1x2x96xf32>
    %390 = vector.shape_cast %389 : vector<1x1x2x96xf32> to vector<2x96xf32>
    %391 = vector.extract_strided_slice %390 {offsets = [0, 0], sizes = [2, 32], strides = [1, 1]} : vector<2x96xf32> to vector<2x32xf32>
    %392 = vector.extract_strided_slice %356 {offsets = [0, 0], sizes = [2, 32], strides = [1, 1]} : vector<2x96xf32> to vector<2x32xf32>
    %393 = arith.addf %391, %392 : vector<2x32xf32>
    %394 = arith.negf %393 : vector<2x32xf32>
    %395 = math.exp %394 : vector<2x32xf32>
    %cst_214 = arith.constant 1.000000e+00 : f32
    %396 = vector.broadcast %cst_214 : f32 to vector<2x32xf32>
    %397 = arith.addf %396, %395 : vector<2x32xf32>
    %398 = arith.divf %396, %397 : vector<2x32xf32>
    %399 = vector.extract_strided_slice %390 {offsets = [0, 32], sizes = [2, 32], strides = [1, 1]} : vector<2x96xf32> to vector<2x32xf32>
    %400 = vector.extract_strided_slice %356 {offsets = [0, 32], sizes = [2, 32], strides = [1, 1]} : vector<2x96xf32> to vector<2x32xf32>
    %401 = arith.addf %399, %400 : vector<2x32xf32>
    %402 = arith.negf %401 : vector<2x32xf32>
    %403 = math.exp %402 : vector<2x32xf32>
    %cst_215 = arith.constant 1.000000e+00 : f32
    %404 = vector.broadcast %cst_215 : f32 to vector<2x32xf32>
    %405 = arith.addf %404, %403 : vector<2x32xf32>
    %406 = arith.divf %404, %405 : vector<2x32xf32>
    %407 = vector.extract_strided_slice %390 {offsets = [0, 64], sizes = [2, 32], strides = [1, 1]} : vector<2x96xf32> to vector<2x32xf32>
    %408 = vector.extract_strided_slice %356 {offsets = [0, 64], sizes = [2, 32], strides = [1, 1]} : vector<2x96xf32> to vector<2x32xf32>
    %409 = vector.broadcast %118 : vector<1x32xf32> to vector<2x32xf32>
    %410 = arith.addf %408, %409 : vector<2x32xf32>
    %411 = arith.mulf %398, %410 : vector<2x32xf32>
    %412 = arith.addf %407, %411 : vector<2x32xf32>
    %413 = math.tanh %412 : vector<2x32xf32>
    %cst_216 = arith.constant 1.000000e+00 : f32
    %414 = vector.broadcast %cst_216 : f32 to vector<2x32xf32>
    %415 = arith.subf %414, %406 : vector<2x32xf32>
    %416 = arith.mulf %415, %413 : vector<2x32xf32>
    %417 = arith.mulf %406, %342 : vector<2x32xf32>
    %418 = arith.addf %416, %417 : vector<2x32xf32>
    %c0_217 = arith.constant 0 : index
    %419 = arith.index_cast %c3_i32_196 : i32 to index
    %c0_218 = arith.constant 0 : index
    %c0_219 = arith.constant 0 : index
    %420 = vector.load %arg6[%c0_217, %419, %c0_218, %c0_219] : memref<2x4x2x32xf32, #tpu.memory_space<vmem>>, vector<1x1x2x32xf32>
    %421 = vector.shape_cast %420 : vector<1x1x2x32xf32> to vector<2x32xf32>
    %422 = vector.shape_cast %387 : vector<2x32xf32> to vector<1x1x2x32xf32>
    tpu.vector_store %arg6[%c0_217, %419, %c0_218, %c0_219], %422 {strides = array<i32>} : memref<2x4x2x32xf32, #tpu.memory_space<vmem>>, vector<1x1x2x32xf32>,
    %c1_220 = arith.constant 1 : index
    %423 = arith.index_cast %c3_i32_196 : i32 to index
    %c0_221 = arith.constant 0 : index
    %c0_222 = arith.constant 0 : index
    %424 = vector.load %arg6[%c1_220, %423, %c0_221, %c0_222] : memref<2x4x2x32xf32, #tpu.memory_space<vmem>>, vector<1x1x2x32xf32>
    %425 = vector.shape_cast %424 : vector<1x1x2x32xf32> to vector<2x32xf32>
    %426 = vector.shape_cast %418 : vector<2x32xf32> to vector<1x1x2x32xf32>
    tpu.vector_store %arg6[%c1_220, %423, %c0_221, %c0_222], %426 {strides = array<i32>} : memref<2x4x2x32xf32, #tpu.memory_space<vmem>>, vector<1x1x2x32xf32>,
    %c4_i32_223 = arith.constant 4 : i32
    %c0_224 = arith.constant 0 : index
    %c0_225 = arith.constant 0 : index
    %c0_226 = arith.constant 0 : index
    %427 = vector.load %arg7[%c0_224, %c0_225, %c0_226] : memref<2x2x32xf32, #tpu.memory_space<vmem>>, vector<1x2x32xf32>
    %428 = vector.shape_cast %427 : vector<1x2x32xf32> to vector<2x32xf32>
    %429 = vector.shape_cast %387 : vector<2x32xf32> to vector<1x2x32xf32>
    tpu.vector_store %arg7[%c0_224, %c0_225, %c0_226], %429 {strides = array<i32>} : memref<2x2x32xf32, #tpu.memory_space<vmem>>, vector<1x2x32xf32>,
    %c1_227 = arith.constant 1 : index
    %c0_228 = arith.constant 0 : index
    %c0_229 = arith.constant 0 : index
    %430 = vector.load %arg7[%c1_227, %c0_228, %c0_229] : memref<2x2x32xf32, #tpu.memory_space<vmem>>, vector<1x2x32xf32>
    %431 = vector.shape_cast %430 : vector<1x2x32xf32> to vector<2x32xf32>
    %432 = vector.shape_cast %418 : vector<2x32xf32> to vector<1x2x32xf32>
    tpu.vector_store %arg7[%c1_227, %c0_228, %c0_229], %432 {strides = array<i32>} : memref<2x2x32xf32, #tpu.memory_space<vmem>>, vector<1x2x32xf32>,
    return
  }
  func.func @transform_0(%arg0: i32) -> (i32, i32, i32, i32) {
    %c0_i32 = arith.constant 0 : i32
    %c0_i32_0 = arith.constant 0 : i32
    %c0_i32_1 = arith.constant 0 : i32
    %c0_i32_2 = arith.constant 0 : i32
    return %c0_i32, %arg0, %c0_i32_0, %c0_i32_1 : i32, i32, i32, i32
  }
  func.func @transform_1(%arg0: i32) -> (i32, i32, i32) {
    %c0_i32 = arith.constant 0 : i32
    %c0_i32_0 = arith.constant 0 : i32
    %c0_i32_1 = arith.constant 0 : i32
    %c0_i32_2 = arith.constant 0 : i32
    return %c0_i32, %c0_i32_0, %c0_i32_1 : i32, i32, i32
  }
  func.func @transform_2(%arg0: i32) -> (i32, i32, i32) {
    %c0_i32 = arith.constant 0 : i32
    %c0_i32_0 = arith.constant 0 : i32
    %c0_i32_1 = arith.constant 0 : i32
    %c0_i32_2 = arith.constant 0 : i32
    return %c0_i32, %c0_i32_0, %c0_i32_1 : i32, i32, i32
  }
  func.func @transform_3(%arg0: i32) -> (i32, i32, i32) {
    %c0_i32 = arith.constant 0 : i32
    %c0_i32_0 = arith.constant 0 : i32
    %c0_i32_1 = arith.constant 0 : i32
    %c0_i32_2 = arith.constant 0 : i32
    return %c0_i32, %c0_i32_0, %c0_i32_1 : i32, i32, i32
  }
  func.func @transform_4(%arg0: i32) -> (i32, i32, i32) {
    %c0_i32 = arith.constant 0 : i32
    %c0_i32_0 = arith.constant 0 : i32
    %c0_i32_1 = arith.constant 0 : i32
    %c0_i32_2 = arith.constant 0 : i32
    return %c0_i32, %c0_i32_0, %c0_i32_1 : i32, i32, i32
  }
  func.func @transform_5(%arg0: i32) -> (i32, i32, i32, i32) {
    %c0_i32 = arith.constant 0 : i32
    %c0_i32_0 = arith.constant 0 : i32
    %c0_i32_1 = arith.constant 0 : i32
    %c0_i32_2 = arith.constant 0 : i32
    return %c0_i32, %arg0, %c0_i32_0, %c0_i32_1 : i32, i32, i32, i32
  }
}

</mosaic_0001>

<llo_original>
// kernel: birnn_wrapper_forward.2
$region0: #{birnn_wrapper_forward.2}
  #allocation0 [shape = 'u32[]', space=smem, size = 0x4, offset = 0x4, fixed_abs, tag = 'smem constant byte address 0x4 - core index']
  #allocation1 [shape = 'u32[144,128]{1,0:T(1,128)}', space=vmem, size = 0x12000, scoped, tag = 'internal scratch']
  #allocation2 [shape = 'f32[2,2,32]{2,1,0:T(2,128)}', space=vmem, size = 0x800, scoped, tag = 'scratch operand']
  #allocation3 [shape = 'f32[2,4,2,96]{3,2,1,0:T(2,128)}', space=vmem, size = 0x2000, scoped, tag = 'scratch operand']
  %s0 = inlined_call_operand.vmem [shape: f32[2,8,2,16], index: 0, kind: input, shape index: {}]
  %s1 = inlined_call_operand.vmem [shape: f32[2,16,96], index: 1, kind: input, shape index: {}]
  %s2 = inlined_call_operand.vmem [shape: f32[2,32,96], index: 2, kind: input, shape index: {}]
  %s3 = inlined_call_operand.vmem [shape: f32[2,1,96], index: 3, kind: input, shape index: {}]
  %s4 = inlined_call_operand.vmem [shape: f32[2,1,32], index: 4, kind: input, shape index: {}]
  %s5 = inlined_call_operand.vmem [shape: f32[2,8,2,32], index: 5, kind: output, shape index: {}]
  %s6 = sld [smem:[#allocation0]]
  $region135: #{birnn_wrapper_forward.2} parent=0
    _
  %s8 = ssub.s32 1, %s6
  %s9 = scalar_select 0, %s8, %s6
  $region1: #{birnn_wrapper_forward.2} parent=0
    #allocation4 [shape = 'u8[16384]{0}', space=vmem, size = 0x4000, scoped, tag = 'input window, operand 0']
    #allocation5 [shape = 'u8[16384]{0}', space=vmem, size = 0x4000, scoped, tag = 'output window, operand 0']
    loop: start=0, step=1, limit=4
    $region2: #{birnn_wrapper_forward.2} parent=1 // loop_pre_header
      _
    $region3: #{birnn_wrapper_forward.2} parent=1 // loop_header
      %s11 = sphi 0, %s15
      %p12 = scmp.ge.s32.totalorder %s11, 4
      %s21 = sphi 0, %s23
      %s24 = sphi 0, %s21
      %s25 = sphi 0, %s24
      %s41 = sphi 0, %s25
      %s45 = sphi 0, %s45
      %s47 = sphi 0, %s45
      %s48 = sphi 0, %s47
      %s62 = sphi 0, %s48
      %s66 = sphi 0, %s66
      %s68 = sphi 0, %s66
      %s69 = sphi 0, %s68
      %s83 = sphi 0, %s69
      %s87 = sphi 0, %s87
      %s89 = sphi 0, %s87
      %s90 = sphi 0, %s89
      %s104 = sphi 0, %s90
      %s108 = sphi 0, %s108
      %s110 = sphi 0, %s108
      %s111 = sphi 0, %s110
      %s125 = sphi 0, %s111
      %s131 = sphi 0, %s133
      %s134 = sphi 0, %s131
      %s135 = sphi 0, %s134
      %s151 = sphi 0, %s135
    $region4: #{birnn_wrapper_forward.2} parent=1 // loop_header_branch
      %14 = sbr.rel (%p12) target = $region8
    $region5: #{birnn_wrapper_forward.2} parent=1 // loop_body
      %s16 = ssub.s32 %s11, 1
      %s17 = ssub.s32 %s11, 2
      %s18 = sadd.s32 %s11, 1
      %s19 = ssub.s32 %s11, %s18
      %p20 = scmp.eq.s32.totalorder %s19, 0
      %s22 = sadd.s32 %s21, 1
      %s23 = scalar_select %p20, %s21, %s22
      %p26 = pneg %p20
      %p27 = scmp.eq.s32.totalorder %s11, 1
      %p28 = por %p26, %p27
      %p29 = scmp.ne.s32.totalorder %s21, %s24
      %p30 = scmp.eq.s32.totalorder %s11, 0
      %p31 = por %p29, %p30
      %p32 = scmp.ne.s32.totalorder %s21, %s24
      %p33 = scmp.eq.s32.totalorder %s16, 1
      %p34 = por %p32, %p33
      %p35 = scmp.ne.s32.totalorder %s24, %s25
      %p36 = scmp.eq.s32.totalorder %s16, 0
      %p37 = por %p35, %p36
      %p38 = scmp.ne.s32.totalorder %s24, %s25
      %p39 = scmp.eq.s32.totalorder %s17, 1
      %p40 = por %p38, %p39
      %p42 = scmp.ne.s32.totalorder %s25, %s41
      %p43 = scmp.eq.s32.totalorder %s17, 0
      %p44 = por %p42, %p43
      %s46 = sadd.s32 %s45, 1
      %p49 = scmp.eq.s32.totalorder %s11, 1
      %p50 = scmp.ne.s32.totalorder %s45, %s47
      %p51 = scmp.eq.s32.totalorder %s11, 0
      %p52 = por %p50, %p51
      %p53 = scmp.ne.s32.totalorder %s45, %s47
      %p54 = scmp.eq.s32.totalorder %s16, 1
      %p55 = por %p53, %p54
      %p56 = scmp.ne.s32.totalorder %s47, %s48
      %p57 = scmp.eq.s32.totalorder %s16, 0
      %p58 = por %p56, %p57
      %p59 = scmp.ne.s32.totalorder %s47, %s48
      %p60 = scmp.eq.s32.totalorder %s17, 1
      %p61 = por %p59, %p60
      %p63 = scmp.ne.s32.totalorder %s48, %s62
      %p64 = scmp.eq.s32.totalorder %s17, 0
      %p65 = por %p63, %p64
      %s67 = sadd.s32 %s66, 1
      %p70 = scmp.eq.s32.totalorder %s11, 1
      %p71 = scmp.ne.s32.totalorder %s66, %s68
      %p72 = scmp.eq.s32.totalorder %s11, 0
      %p73 = por %p71, %p72
      %p74 = scmp.ne.s32.totalorder %s66, %s68
      %p75 = scmp.eq.s32.totalorder %s16, 1
      %p76 = por %p74, %p75
      %p77 = scmp.ne.s32.totalorder %s68, %s69
      %p78 = scmp.eq.s32.totalorder %s16, 0
      %p79 = por %p77, %p78
      %p80 = scmp.ne.s32.totalorder %s68, %s69
      %p81 = scmp.eq.s32.totalorder %s17, 1
      %p82 = por %p80, %p81
      %p84 = scmp.ne.s32.totalorder %s69, %s83
      %p85 = scmp.eq.s32.totalorder %s17, 0
      %p86 = por %p84, %p85
      %s88 = sadd.s32 %s87, 1
      %p91 = scmp.eq.s32.totalorder %s11, 1
      %p92 = scmp.ne.s32.totalorder %s87, %s89
      %p93 = scmp.eq.s32.totalorder %s11, 0
      %p94 = por %p92, %p93
      %p95 = scmp.ne.s32.totalorder %s87, %s89
      %p96 = scmp.eq.s32.totalorder %s16, 1
      %p97 = por %p95, %p96
      %p98 = scmp.ne.s32.totalorder %s89, %s90
      %p99 = scmp.eq.s32.totalorder %s16, 0
      %p100 = por %p98, %p99
      %p101 = scmp.ne.s32.totalorder %s89, %s90
      %p102 = scmp.eq.s32.totalorder %s17, 1
      %p103 = por %p101, %p102
      %p105 = scmp.ne.s32.totalorder %s90, %s104
      %p106 = scmp.eq.s32.totalorder %s17, 0
      %p107 = por %p105, %p106
      %s109 = sadd.s32 %s108, 1
      %p112 = scmp.eq.s32.totalorder %s11, 1
      %p113 = scmp.ne.s32.totalorder %s108, %s110
      %p114 = scmp.eq.s32.totalorder %s11, 0
      %p115 = por %p113, %p114
      %p116 = scmp.ne.s32.totalorder %s108, %s110
      %p117 = scmp.eq.s32.totalorder %s16, 1
      %p118 = por %p116, %p117
      %p119 = scmp.ne.s32.totalorder %s110, %s111
      %p120 = scmp.eq.s32.totalorder %s16, 0
      %p121 = por %p119, %p120
      %p122 = scmp.ne.s32.totalorder %s110, %s111
      %p123 = scmp.eq.s32.totalorder %s17, 1
      %p124 = por %p122, %p123
      %p126 = scmp.ne.s32.totalorder %s111, %s125
      %p127 = scmp.eq.s32.totalorder %s17, 0
      %p128 = por %p126, %p127
      %s129 = ssub.s32 %s11, %s18
      %p130 = scmp.eq.s32.totalorder %s129, 0
      %s132 = sadd.s32 %s131, 1
      %s133 = scalar_select %p130, %s131, %s132
      %p136 = pneg %p130
      %p137 = scmp.eq.s32.totalorder %s11, 1
      %p138 = por %p136, %p137
      %p139 = scmp.ne.s32.totalorder %s131, %s134
      %p140 = scmp.eq.s32.totalorder %s11, 0
      %p141 = por %p139, %p140
      %p142 = scmp.ne.s32.totalorder %s131, %s134
      %p143 = scmp.eq.s32.totalorder %s16, 1
      %p144 = por %p142, %p143
      %p145 = scmp.ne.s32.totalorder %s134, %s135
      %p146 = scmp.eq.s32.totalorder %s16, 0
      %p147 = por %p145, %p146
      %p148 = scmp.ne.s32.totalorder %s134, %s135
      %p149 = scmp.eq.s32.totalorder %s17, 1
      %p150 = por %p148, %p149
      %p152 = scmp.ne.s32.totalorder %s135, %s151
      %p153 = scmp.eq.s32.totalorder %s17, 0
      %p154 = por %p152, %p153
      %p155 = scmp.le.s32.totalorder 1, %s11
      %p156 = scmp.lt.s32.totalorder %s11, 3
      %p157 = pnand %p155, %p156
      %p158 = pneg %p157
      // Predicated region
      $region9: #{birnn_wrapper_forward.2} parent=5 // pred_check
        _
      $region10: #{birnn_wrapper_forward.2} parent=5 // pred_check_branch
        %160 = sbr.rel (%p157) target = $region12
      $region11: #{birnn_wrapper_forward.2} parent=5 // pred_region
        %s161 = ssub.s32 %s11, 1
        // Predicated region
        $region13: #{birnn_wrapper_forward.2} parent=11 // pred_check
          %p162 = pneg %p58
        $region14: #{birnn_wrapper_forward.2} parent=11 // pred_check_branch
          %164 = sbr.rel (%p162) target = $region16
        $region15: #{birnn_wrapper_forward.2} parent=11 // pred_region
          _
        $region16: #{birnn_wrapper_forward.2} parent=11 // pred_fallthru
          _
        // Predicated region
        $region17: #{birnn_wrapper_forward.2} parent=11 // pred_check
          %p165 = pneg %p79
        $region18: #{birnn_wrapper_forward.2} parent=11 // pred_check_branch
          %167 = sbr.rel (%p165) target = $region20
        $region19: #{birnn_wrapper_forward.2} parent=11 // pred_region
          _
        $region20: #{birnn_wrapper_forward.2} parent=11 // pred_fallthru
          _
        // Predicated region
        $region21: #{birnn_wrapper_forward.2} parent=11 // pred_check
          %p168 = pneg %p100
        $region22: #{birnn_wrapper_forward.2} parent=11 // pred_check_branch
          %170 = sbr.rel (%p168) target = $region24
        $region23: #{birnn_wrapper_forward.2} parent=11 // pred_region
          _
        $region24: #{birnn_wrapper_forward.2} parent=11 // pred_fallthru
          _
        // Predicated region
        $region25: #{birnn_wrapper_forward.2} parent=11 // pred_check
          %p171 = pneg %p121
        $region26: #{birnn_wrapper_forward.2} parent=11 // pred_check_branch
          %173 = sbr.rel (%p171) target = $region28
        $region27: #{birnn_wrapper_forward.2} parent=11 // pred_region
          _
        $region28: #{birnn_wrapper_forward.2} parent=11 // pred_fallthru
          _
      $region12: #{birnn_wrapper_forward.2} parent=5 // pred_fallthru
        _
      %p174 = scmp.lt.s32.totalorder %s11, 2
      // Predicated region
      $region29: #{birnn_wrapper_forward.2} parent=5 // pred_check
        %p175 = pneg %p174
      $region30: #{birnn_wrapper_forward.2} parent=5 // pred_check_branch
        %177 = sbr.rel (%p175) target = $region32
      $region31: #{birnn_wrapper_forward.2} parent=5 // pred_region
        // Predicated region
        $region33: #{birnn_wrapper_forward.2} parent=31 // pred_check
          %p178 = pneg %p31
        $region34: #{birnn_wrapper_forward.2} parent=31 // pred_check_branch
          %180 = sbr.rel (%p178) target = $region36
        $region35: #{birnn_wrapper_forward.2} parent=31 // pred_region
          %s181 = sand.u32 %s21, 1
          %s182 = sand.u32 %s21, 1
          %s183 = smul.addr %s182, 16
          %s184 = scalar_lea.vmem [#allocation4], %s183
          %s185 = smul.u32 4, %s11
          %s186 = smul.addr %s185, 2
          %s187 = scalar_lea.vmem %s0, %s186
          // Predicated region
          $region37: #{birnn_wrapper_forward.2} parent=35 // pred_check
            _
          $region38: #{birnn_wrapper_forward.2} parent=35 // pred_check_branch
            %189 = sbr.rel (0) target = $region40
          $region39: #{birnn_wrapper_forward.2} parent=35 // pred_region
            // Predicated region
            $region41: #{birnn_wrapper_forward.2} parent=39 // pred_check
              _
            $region42: #{birnn_wrapper_forward.2} parent=39 // pred_check_branch
              %191 = sbr.rel target = $region44
            $region43: #{birnn_wrapper_forward.2} parent=39 // pred_region
              // Predicated region
              $region56: #{birnn_wrapper_forward.2} parent=43 // pred_check
                _
              $region57: #{birnn_wrapper_forward.2} parent=43 // pred_check_branch
                %221 = sbr.rel (0) target = $region59
              $region58: #{birnn_wrapper_forward.2} parent=43 // pred_region
                loop: start=0, step=1, limit=1
                $region60: #{birnn_wrapper_forward.2} parent=58 // loop_pre_header
                  _
                $region61: #{birnn_wrapper_forward.2} parent=58 // loop_header
                  %s223 = sphi 0, %s227
                  %p224 = scmp.ge.s32.totalorder %s223, 1
                  %s228 = sphi %s187, %s187
                  %s229 = sphi %s184, %s184
                $region62: #{birnn_wrapper_forward.2} parent=58 // loop_header_branch
                  %226 = sbr.rel (%p224) target = $region66
                $region63: #{birnn_wrapper_forward.2} parent=58 // loop_body
                  _
                $region64: #{birnn_wrapper_forward.2} parent=58 // loop_footer
                  %s227 = sadd.s32 1, %s223
                $region65: #{birnn_wrapper_forward.2} parent=58 // loop_footer_branch
                  %222 = sbr.rel target = $region61
                $region66: #{birnn_wrapper_forward.2} parent=58 // loop_exit
                  _
                %s231 = ssub.s32 4, 1
                loop: start=0, step=1, limit=1
                $region67: #{birnn_wrapper_forward.2} parent=58 // loop_pre_header
                  _
                $region68: #{birnn_wrapper_forward.2} parent=58 // loop_header
                  %s233 = sphi 0, %s237
                  %p234 = scmp.ge.s32.totalorder %s233, 1
                  %s238 = sphi %s187, %s187
                  %s239 = sphi %s184, %s184
                $region69: #{birnn_wrapper_forward.2} parent=58 // loop_header_branch
                  %236 = sbr.rel (%p234) target = $region73
                $region70: #{birnn_wrapper_forward.2} parent=58 // loop_body
                  %v240 = vld [vmem:[%s238] sm:%s231]
                  %241 = vst [vmem:[%s239] sm:%s231] %v240
                  %v242 = vld [vmem:[%s238 + $0x2] sm:%s231]
                  %243 = vst [vmem:[%s239 + $0x2] sm:%s231] %v242
                  %v244 = vld [vmem:[%s238 + $0x4] sm:%s231]
                  %245 = vst [vmem:[%s239 + $0x4] sm:%s231] %v244
                  %v246 = vld [vmem:[%s238 + $0x6] sm:%s231]
                  %247 = vst [vmem:[%s239 + $0x6] sm:%s231] %v246
                  %v248 = vld [vmem:[%s238 + $0x10] sm:%s231]
                  %249 = vst [vmem:[%s239 + $0x8] sm:%s231] %v248
                  %v250 = vld [vmem:[%s238 + $0x12] sm:%s231]
                  %251 = vst [vmem:[%s239 + $0xa] sm:%s231] %v250
                  %v252 = vld [vmem:[%s238 + $0x14] sm:%s231]
                  %253 = vst [vmem:[%s239 + $0xc] sm:%s231] %v252
                  %v254 = vld [vmem:[%s238 + $0x16] sm:%s231]
                  %255 = vst [vmem:[%s239 + $0xe] sm:%s231] %v254
                $region71: #{birnn_wrapper_forward.2} parent=58 // loop_footer
                  %s237 = sadd.s32 1, %s233
                $region72: #{birnn_wrapper_forward.2} parent=58 // loop_footer_branch
                  %232 = sbr.rel target = $region68
                $region73: #{birnn_wrapper_forward.2} parent=58 // loop_exit
                  _
              $region59: #{birnn_wrapper_forward.2} parent=43 // pred_fallthru
                _
            $region44: #{birnn_wrapper_forward.2} parent=39 // pred_fallthru
              _
            // Predicated region
            $region45: #{birnn_wrapper_forward.2} parent=39 // pred_check
              _
            $region46: #{birnn_wrapper_forward.2} parent=39 // pred_check_branch
              %193 = sbr.rel (0) target = $region48
            $region47: #{birnn_wrapper_forward.2} parent=39 // pred_region
              %s195 = ssub.s32 4, 1
              loop: start=0, step=1, limit=1
              $region49: #{birnn_wrapper_forward.2} parent=47 // loop_pre_header
                _
              $region50: #{birnn_wrapper_forward.2} parent=47 // loop_header
                %s197 = sphi 0, %s201
                %p198 = scmp.ge.s32.totalorder %s197, 1
                %s202 = sphi %s187, %s187
                %s203 = sphi %s184, %s184
              $region51: #{birnn_wrapper_forward.2} parent=47 // loop_header_branch
                %200 = sbr.rel (%p198) target = $region55
              $region52: #{birnn_wrapper_forward.2} parent=47 // loop_body
                %v204 = vld [vmem:[%s202] sm:%s195]
                %205 = vst [vmem:[%s203] sm:%s195] %v204
                %v206 = vld [vmem:[%s202 + $0x2] sm:%s195]
                %207 = vst [vmem:[%s203 + $0x2] sm:%s195] %v206
                %v208 = vld [vmem:[%s202 + $0x4] sm:%s195]
                %209 = vst [vmem:[%s203 + $0x4] sm:%s195] %v208
                %v210 = vld [vmem:[%s202 + $0x6] sm:%s195]
                %211 = vst [vmem:[%s203 + $0x6] sm:%s195] %v210
                %v212 = vld [vmem:[%s202 + $0x10] sm:%s195]
                %213 = vst [vmem:[%s203 + $0x8] sm:%s195] %v212
                %v214 = vld [vmem:[%s202 + $0x12] sm:%s195]
                %215 = vst [vmem:[%s203 + $0xa] sm:%s195] %v214
                %v216 = vld [vmem:[%s202 + $0x14] sm:%s195]
                %217 = vst [vmem:[%s203 + $0xc] sm:%s195] %v216
                %v218 = vld [vmem:[%s202 + $0x16] sm:%s195]
                %219 = vst [vmem:[%s203 + $0xe] sm:%s195] %v218
              $region53: #{birnn_wrapper_forward.2} parent=47 // loop_footer
                %s201 = sadd.s32 1, %s197
              $region54: #{birnn_wrapper_forward.2} parent=47 // loop_footer_branch
                %196 = sbr.rel target = $region50
              $region55: #{birnn_wrapper_forward.2} parent=47 // loop_exit
                _
            $region48: #{birnn_wrapper_forward.2} parent=39 // pred_fallthru
              _
          $region40: #{birnn_wrapper_forward.2} parent=35 // pred_fallthru
            _
          %256 = vnop
        $region36: #{birnn_wrapper_forward.2} parent=31 // pred_fallthru
          _
      $region32: #{birnn_wrapper_forward.2} parent=5 // pred_fallthru
        _
      %p257 = scmp.le.s32.totalorder 1, %s11
      %p258 = scmp.lt.s32.totalorder %s11, 3
      %p259 = pnand %p257, %p258
      %p260 = pneg %p259
      // Predicated region
      $region74: #{birnn_wrapper_forward.2} parent=5 // pred_check
        _
      $region75: #{birnn_wrapper_forward.2} parent=5 // pred_check_branch
        %262 = sbr.rel (%p259) target = $region77
      $region76: #{birnn_wrapper_forward.2} parent=5 // pred_region
        %s263 = ssub.s32 %s11, 1
        %s264 = sand.u32 %s24, 1
        %s265 = sand.u32 %s24, 1
        %s266 = smul.addr %s265, 16
        %s267 = scalar_lea.vmem [#allocation4], %s266
        // Predicated region
        $region78: #{birnn_wrapper_forward.2} parent=76 // pred_check
          %p268 = pneg %p37
        $region79: #{birnn_wrapper_forward.2} parent=76 // pred_check_branch
          %270 = sbr.rel (%p268) target = $region81
        $region80: #{birnn_wrapper_forward.2} parent=76 // pred_region
          _
        $region81: #{birnn_wrapper_forward.2} parent=76 // pred_fallthru
          _
        %s271 = sand.u32 %s24, 1
        %s272 = sand.u32 %s24, 1
        %s273 = smul.addr %s272, 16
        %s274 = scalar_lea.vmem [#allocation4], %s273
        %p275 = pneg %p37
        %p276 = pneg %p34
        %p277 = pneg %p58
        %p278 = pneg %p55
        %p279 = pneg %p79
        %p280 = pneg %p76
        %p281 = pneg %p100
        %p282 = pneg %p97
        %p283 = pneg %p121
        %p284 = pneg %p118
        %p285 = pneg %p147
        %p286 = pneg %p144
        %s287 = sand.u32 %s134, 1
        %s288 = sand.u32 %s134, 1
        %s289 = smul.addr %s288, 16
        %s290 = scalar_lea.vmem [#allocation5], %s289
        %s291 = smul.u32 4, %s16
        %s292 = smul.u32 4, %s16
        %p293 = scmp.eq.s32.totalorder %s16, 0
        // Predicated region
        $region82: #{birnn_wrapper_forward.2} parent=76 // pred_check
          %p294 = pneg %p293
        $region83: #{birnn_wrapper_forward.2} parent=76 // pred_check_branch
          %296 = sbr.rel (%p294) target = $region85
        $region84: #{birnn_wrapper_forward.2} parent=76 // pred_region
          %vm297 = vcmask 254976
          %298 = vst.msk [vmem:[#allocation2] sm:$0x3] %vm297, 0.0
          %299 = vst.msk [vmem:[#allocation2 + $0x2] sm:$0x3] %vm297, 0.0
        $region85: #{birnn_wrapper_forward.2} parent=76 // pred_fallthru
          _
        %v300 = vld [vmem:[%s267] sm:$0x3]
        %v301 = vld [vmem:[%s1] sm:$0xff]
        %v302 = vld [vmem:[%s1 + $0x8] sm:$0xff]
        %v303 = vld [vmem:[%s3] sm:$0x1]
        %v305 = vlaneseq
        %v306 = vshrl.u32 %v305, 7
        %v307 = vsub.s32 0, %v306
        %v308 = vrot.slane %v303, %v307
        %vm310 = vcmask 130048
        %v312 = vsel %vm310, %v300, 0
        %314 = vmatprep.subr.mxu0 0.0
        %315 = vmatpush1.msra.mxu0 0.0
        %316 = vmatprep.subr.mxu0 0.0
        %317 = vmatpush1.msra.mxu0 0.0
        %318 = vmatprep.subr.mxu0 0.0
        %319 = vmatpush1.msra.mxu0 0.0
        %320 = vmatprep.subr.mxu0 0.0
        %321 = vmatpush1.msra.mxu0 0.0
        %322 = vmatprep.subr.mxu0 0.0
        %323 = vmatpush1.msra.mxu0 0.0
        %324 = vmatprep.subr.mxu0 0.0
        %325 = vmatpush1.msra.mxu0 0.0
        %326 = vmatprep.subr.mxu0 0.0
        %327 = vmatpush1.msra.mxu0 0.0
        %328 = vmatprep.subr.mxu0 0.0
        %329 = vmatpush1.msra.mxu0 0.0
        %330 = vmatprep.subr.mxu0 0.0
        %331 = vmatpush1.msra.mxu0 0.0
        %332 = vmatprep.subr.mxu0 0.0
        %333 = vmatpush1.msra.mxu0 0.0
        %334 = vmatprep.subr.mxu0 0.0
        %335 = vmatpush1.msra.mxu0 0.0
        %336 = vmatprep.subr.mxu0 0.0
        %337 = vmatpush1.msra.mxu0 0.0
        %338 = vmatprep.subr.mxu0 0.0
        %339 = vmatpush1.msra.mxu0 0.0
        %340 = vmatprep.subr.mxu0 0.0
        %341 = vmatpush1.msra.mxu0 0.0
        %342 = vmatprep.subr.mxu0 0.0
        %343 = vmatpush1.msra.mxu0 %v302
        %344 = vmatprep.subr.mxu0 0.0
        %345 = vmatpush1.msra.mxu0 %v301
        %346 = vmatprep.subr.mxu0 0.0
        %347 = vmatpush2.msra.mxu0 0.0
        %348 = vmatprep.subr.mxu0 0.0
        %349 = vmatpush2.msra.mxu0 0.0
        %350 = vmatprep.subr.mxu0 0.0
        %351 = vmatpush2.msra.mxu0 0.0
        %352 = vmatprep.subr.mxu0 0.0
        %353 = vmatpush2.msra.mxu0 0.0
        %354 = vmatprep.subr.mxu0 0.0
        %355 = vmatpush2.msra.mxu0 0.0
        %356 = vmatprep.subr.mxu0 0.0
        %357 = vmatpush2.msra.mxu0 0.0
        %358 = vmatprep.subr.mxu0 0.0
        %359 = vmatpush2.msra.mxu0 0.0
        %360 = vmatprep.subr.mxu0 0.0
        %361 = vmatpush2.msra.mxu0 0.0
        %362 = vmatprep.subr.mxu0 0.0
        %363 = vmatpush2.msra.mxu0 0.0
        %364 = vmatprep.subr.mxu0 0.0
        %365 = vmatpush2.msra.mxu0 0.0
        %366 = vmatprep.subr.mxu0 0.0
        %367 = vmatpush2.msra.mxu0 0.0
        %368 = vmatprep.subr.mxu0 0.0
        %369 = vmatpush2.msra.mxu0 0.0
        %370 = vmatprep.subr.mxu0 0.0
        %371 = vmatpush2.msra.mxu0 0.0
        %372 = vmatprep.subr.mxu0 0.0
        %373 = vmatpush2.msra.mxu0 0.0
        %374 = vmatprep.subr.mxu0 0.0
        %375 = vmatpush2.msra.mxu0 0.0
        %376 = vmatprep.subr.mxu0 0.0
        %377 = vmatpush2.msra.mxu0 0.0
        %378 = vmatprep.mubr.f32.mxu0 0.0
        %379 = vmatmul.mubr.f32.gmra.mxu0 %v312
        %v380 = vpop.f32.mrf.mxu0
        %v381 = vadd.f32 %v308, %v380
        %v382 = vpop.f32.mrf.mxu0
        %383 = vdwg.mxu0
        %vm384 = vcmask 779264
        %385 = vst.msk [vmem:[#allocation3] sm:$0x3] %vm384, %v381
        %s386 = scalar_lea.vmem %s267, 8 [#allocation4]
        %v387 = vld [vmem:[%s386] sm:$0x3]
        %s388 = scalar_lea.vmem %s1, 16
        %v389 = vld [vmem:[%s388] sm:$0xff]
        %v390 = vld [vmem:[%s388 + $0x8] sm:$0xff]
        %s391 = scalar_lea.vmem %s3, 1
        %v392 = vld [vmem:[%s391] sm:$0x1]
        %v394 = vlaneseq
        %v395 = vshrl.u32 %v394, 7
        %v396 = vsub.s32 0, %v395
        %v397 = vrot.slane %v392, %v396
        %v400 = vsel %vm310, %v387, 0
        %402 = vmatprep.subr.mxu0 0.0
        %403 = vmatpush1.msra.mxu0 0.0
        %404 = vmatprep.subr.mxu0 0.0
        %405 = vmatpush1.msra.mxu0 0.0
        %406 = vmatprep.subr.mxu0 0.0
        %407 = vmatpush1.msra.mxu0 0.0
        %408 = vmatprep.subr.mxu0 0.0
        %409 = vmatpush1.msra.mxu0 0.0
        %410 = vmatprep.subr.mxu0 0.0
        %411 = vmatpush1.msra.mxu0 0.0
        %412 = vmatprep.subr.mxu0 0.0
        %413 = vmatpush1.msra.mxu0 0.0
        %414 = vmatprep.subr.mxu0 0.0
        %415 = vmatpush1.msra.mxu0 0.0
        %416 = vmatprep.subr.mxu0 0.0
        %417 = vmatpush1.msra.mxu0 0.0
        %418 = vmatprep.subr.mxu0 0.0
        %419 = vmatpush1.msra.mxu0 0.0
        %420 = vmatprep.subr.mxu0 0.0
        %421 = vmatpush1.msra.mxu0 0.0
        %422 = vmatprep.subr.mxu0 0.0
        %423 = vmatpush1.msra.mxu0 0.0
        %424 = vmatprep.subr.mxu0 0.0
        %425 = vmatpush1.msra.mxu0 0.0
        %426 = vmatprep.subr.mxu0 0.0
        %427 = vmatpush1.msra.mxu0 0.0
        %428 = vmatprep.subr.mxu0 0.0
        %429 = vmatpush1.msra.mxu0 0.0
        %430 = vmatprep.subr.mxu0 0.0
        %431 = vmatpush1.msra.mxu0 %v390
        %432 = vmatprep.subr.mxu0 0.0
        %433 = vmatpush1.msra.mxu0 %v389
        %434 = vmatprep.subr.mxu0 0.0
        %435 = vmatpush2.msra.mxu0 0.0
        %436 = vmatprep.subr.mxu0 0.0
        %437 = vmatpush2.msra.mxu0 0.0
        %438 = vmatprep.subr.mxu0 0.0
        %439 = vmatpush2.msra.mxu0 0.0
        %440 = vmatprep.subr.mxu0 0.0
        %441 = vmatpush2.msra.mxu0 0.0
        %442 = vmatprep.subr.mxu0 0.0
        %443 = vmatpush2.msra.mxu0 0.0
        %444 = vmatprep.subr.mxu0 0.0
        %445 = vmatpush2.msra.mxu0 0.0
        %446 = vmatprep.subr.mxu0 0.0
        %447 = vmatpush2.msra.mxu0 0.0
        %448 = vmatprep.subr.mxu0 0.0
        %449 = vmatpush2.msra.mxu0 0.0
        %450 = vmatprep.subr.mxu0 0.0
        %451 = vmatpush2.msra.mxu0 0.0
        %452 = vmatprep.subr.mxu0 0.0
        %453 = vmatpush2.msra.mxu0 0.0
        %454 = vmatprep.subr.mxu0 0.0
        %455 = vmatpush2.msra.mxu0 0.0
        %456 = vmatprep.subr.mxu0 0.0
        %457 = vmatpush2.msra.mxu0 0.0
        %458 = vmatprep.subr.mxu0 0.0
        %459 = vmatpush2.msra.mxu0 0.0
        %460 = vmatprep.subr.mxu0 0.0
        %461 = vmatpush2.msra.mxu0 0.0
        %462 = vmatprep.subr.mxu0 0.0
        %463 = vmatpush2.msra.mxu0 0.0
        %464 = vmatprep.subr.mxu0 0.0
        %465 = vmatpush2.msra.mxu0 0.0
        %466 = vmatprep.mubr.f32.mxu0 0.0
        %467 = vmatmul.mubr.f32.gmra.mxu0 %v400
        %v468 = vpop.f32.mrf.mxu0
        %v469 = vadd.f32 %v397, %v468
        %v470 = vpop.f32.mrf.mxu0
        %471 = vdwg.mxu0
        %s472 = scalar_lea.vmem [#allocation3], 8
        %473 = vst.msk [vmem:[%s472] sm:$0x3] %vm384, %v469
        %s474 = scalar_lea.vmem %s267, 2 [#allocation4]
        %v475 = vld [vmem:[%s474] sm:$0x3]
        %v476 = vld [vmem:[%s1] sm:$0xff]
        %v477 = vld [vmem:[%s1 + $0x8] sm:$0xff]
        %v478 = vld [vmem:[%s3] sm:$0x1]
        %v480 = vlaneseq
        %v481 = vshrl.u32 %v480, 7
        %v482 = vsub.s32 0, %v481
        %v483 = vrot.slane %v478, %v482
        %v486 = vsel %vm310, %v475, 0
        %488 = vmatprep.subr.mxu0 0.0
        %489 = vmatpush1.msra.mxu0 0.0
        %490 = vmatprep.subr.mxu0 0.0
        %491 = vmatpush1.msra.mxu0 0.0
        %492 = vmatprep.subr.mxu0 0.0
        %493 = vmatpush1.msra.mxu0 0.0
        %494 = vmatprep.subr.mxu0 0.0
        %495 = vmatpush1.msra.mxu0 0.0
        %496 = vmatprep.subr.mxu0 0.0
        %497 = vmatpush1.msra.mxu0 0.0
        %498 = vmatprep.subr.mxu0 0.0
        %499 = vmatpush1.msra.mxu0 0.0
        %500 = vmatprep.subr.mxu0 0.0
        %501 = vmatpush1.msra.mxu0 0.0
        %502 = vmatprep.subr.mxu0 0.0
        %503 = vmatpush1.msra.mxu0 0.0
        %504 = vmatprep.subr.mxu0 0.0
        %505 = vmatpush1.msra.mxu0 0.0
        %506 = vmatprep.subr.mxu0 0.0
        %507 = vmatpush1.msra.mxu0 0.0
        %508 = vmatprep.subr.mxu0 0.0
        %509 = vmatpush1.msra.mxu0 0.0
        %510 = vmatprep.subr.mxu0 0.0
        %511 = vmatpush1.msra.mxu0 0.0
        %512 = vmatprep.subr.mxu0 0.0
        %513 = vmatpush1.msra.mxu0 0.0
        %514 = vmatprep.subr.mxu0 0.0
        %515 = vmatpush1.msra.mxu0 0.0
        %516 = vmatprep.subr.mxu0 0.0
        %517 = vmatpush1.msra.mxu0 %v477
        %518 = vmatprep.subr.mxu0 0.0
        %519 = vmatpush1.msra.mxu0 %v476
        %520 = vmatprep.subr.mxu0 0.0
        %521 = vmatpush2.msra.mxu0 0.0
        %522 = vmatprep.subr.mxu0 0.0
        %523 = vmatpush2.msra.mxu0 0.0
        %524 = vmatprep.subr.mxu0 0.0
        %525 = vmatpush2.msra.mxu0 0.0
        %526 = vmatprep.subr.mxu0 0.0
        %527 = vmatpush2.msra.mxu0 0.0
        %528 = vmatprep.subr.mxu0 0.0
        %529 = vmatpush2.msra.mxu0 0.0
        %530 = vmatprep.subr.mxu0 0.0
        %531 = vmatpush2.msra.mxu0 0.0
        %532 = vmatprep.subr.mxu0 0.0
        %533 = vmatpush2.msra.mxu0 0.0
        %534 = vmatprep.subr.mxu0 0.0
        %535 = vmatpush2.msra.mxu0 0.0
        %536 = vmatprep.subr.mxu0 0.0
        %537 = vmatpush2.msra.mxu0 0.0
        %538 = vmatprep.subr.mxu0 0.0
        %539 = vmatpush2.msra.mxu0 0.0
        %540 = vmatprep.subr.mxu0 0.0
        %541 = vmatpush2.msra.mxu0 0.0
        %542 = vmatprep.subr.mxu0 0.0
        %543 = vmatpush2.msra.mxu0 0.0
        %544 = vmatprep.subr.mxu0 0.0
        %545 = vmatpush2.msra.mxu0 0.0
        %546 = vmatprep.subr.mxu0 0.0
        %547 = vmatpush2.msra.mxu0 0.0
        %548 = vmatprep.subr.mxu0 0.0
        %549 = vmatpush2.msra.mxu0 0.0
        %550 = vmatprep.subr.mxu0 0.0
        %551 = vmatpush2.msra.mxu0 0.0
        %552 = vmatprep.mubr.f32.mxu0 0.0
        %553 = vmatmul.mubr.f32.gmra.mxu0 %v486
        %v554 = vpop.f32.mrf.mxu0
        %v555 = vadd.f32 %v483, %v554
        %v556 = vpop.f32.mrf.mxu0
        %557 = vdwg.mxu0
        %s558 = scalar_lea.vmem [#allocation3], 2
        %559 = vst.msk [vmem:[%s558] sm:$0x3] %vm384, %v555
        %s560 = scalar_lea.vmem %s267, 10 [#allocation4]
        %v561 = vld [vmem:[%s560] sm:$0x3]
        %v562 = vld [vmem:[%s388] sm:$0xff]
        %v563 = vld [vmem:[%s388 + $0x8] sm:$0xff]
        %v564 = vld [vmem:[%s391] sm:$0x1]
        %v566 = vlaneseq
        %v567 = vshrl.u32 %v566, 7
        %v568 = vsub.s32 0, %v567
        %v569 = vrot.slane %v564, %v568
        %v572 = vsel %vm310, %v561, 0
        %574 = vmatprep.subr.mxu0 0.0
        %575 = vmatpush1.msra.mxu0 0.0
        %576 = vmatprep.subr.mxu0 0.0
        %577 = vmatpush1.msra.mxu0 0.0
        %578 = vmatprep.subr.mxu0 0.0
        %579 = vmatpush1.msra.mxu0 0.0
        %580 = vmatprep.subr.mxu0 0.0
        %581 = vmatpush1.msra.mxu0 0.0
        %582 = vmatprep.subr.mxu0 0.0
        %583 = vmatpush1.msra.mxu0 0.0
        %584 = vmatprep.subr.mxu0 0.0
        %585 = vmatpush1.msra.mxu0 0.0
        %586 = vmatprep.subr.mxu0 0.0
        %587 = vmatpush1.msra.mxu0 0.0
        %588 = vmatprep.subr.mxu0 0.0
        %589 = vmatpush1.msra.mxu0 0.0
        %590 = vmatprep.subr.mxu0 0.0
        %591 = vmatpush1.msra.mxu0 0.0
        %592 = vmatprep.subr.mxu0 0.0
        %593 = vmatpush1.msra.mxu0 0.0
        %594 = vmatprep.subr.mxu0 0.0
        %595 = vmatpush1.msra.mxu0 0.0
        %596 = vmatprep.subr.mxu0 0.0
        %597 = vmatpush1.msra.mxu0 0.0
        %598 = vmatprep.subr.mxu0 0.0
        %599 = vmatpush1.msra.mxu0 0.0
        %600 = vmatprep.subr.mxu0 0.0
        %601 = vmatpush1.msra.mxu0 0.0
        %602 = vmatprep.subr.mxu0 0.0
        %603 = vmatpush1.msra.mxu0 %v563
        %604 = vmatprep.subr.mxu0 0.0
        %605 = vmatpush1.msra.mxu0 %v562
        %606 = vmatprep.subr.mxu0 0.0
        %607 = vmatpush2.msra.mxu0 0.0
        %608 = vmatprep.subr.mxu0 0.0
        %609 = vmatpush2.msra.mxu0 0.0
        %610 = vmatprep.subr.mxu0 0.0
        %611 = vmatpush2.msra.mxu0 0.0
        %612 = vmatprep.subr.mxu0 0.0
        %613 = vmatpush2.msra.mxu0 0.0
        %614 = vmatprep.subr.mxu0 0.0
        %615 = vmatpush2.msra.mxu0 0.0
        %616 = vmatprep.subr.mxu0 0.0
        %617 = vmatpush2.msra.mxu0 0.0
        %618 = vmatprep.subr.mxu0 0.0
        %619 = vmatpush2.msra.mxu0 0.0
        %620 = vmatprep.subr.mxu0 0.0
        %621 = vmatpush2.msra.mxu0 0.0
        %622 = vmatprep.subr.mxu0 0.0
        %623 = vmatpush2.msra.mxu0 0.0
        %624 = vmatprep.subr.mxu0 0.0
        %625 = vmatpush2.msra.mxu0 0.0
        %626 = vmatprep.subr.mxu0 0.0
        %627 = vmatpush2.msra.mxu0 0.0
        %628 = vmatprep.subr.mxu0 0.0
        %629 = vmatpush2.msra.mxu0 0.0
        %630 = vmatprep.subr.mxu0 0.0
        %631 = vmatpush2.msra.mxu0 0.0
        %632 = vmatprep.subr.mxu0 0.0
        %633 = vmatpush2.msra.mxu0 0.0
        %634 = vmatprep.subr.mxu0 0.0
        %635 = vmatpush2.msra.mxu0 0.0
        %636 = vmatprep.subr.mxu0 0.0
        %637 = vmatpush2.msra.mxu0 0.0
        %638 = vmatprep.mubr.f32.mxu0 0.0
        %639 = vmatmul.mubr.f32.gmra.mxu0 %v572
        %v640 = vpop.f32.mrf.mxu0
        %v641 = vadd.f32 %v569, %v640
        %v642 = vpop.f32.mrf.mxu0
        %643 = vdwg.mxu0
        %s644 = scalar_lea.vmem [#allocation3], 10
        %645 = vst.msk [vmem:[%s644] sm:$0x3] %vm384, %v641
        %s646 = scalar_lea.vmem %s267, 4 [#allocation4]
        %v647 = vld [vmem:[%s646] sm:$0x3]
        %v648 = vld [vmem:[%s1] sm:$0xff]
        %v649 = vld [vmem:[%s1 + $0x8] sm:$0xff]
        %v650 = vld [vmem:[%s3] sm:$0x1]
        %v652 = vlaneseq
        %v653 = vshrl.u32 %v652, 7
        %v654 = vsub.s32 0, %v653
        %v655 = vrot.slane %v650, %v654
        %v658 = vsel %vm310, %v647, 0
        %660 = vmatprep.subr.mxu0 0.0
        %661 = vmatpush1.msra.mxu0 0.0
        %662 = vmatprep.subr.mxu0 0.0
        %663 = vmatpush1.msra.mxu0 0.0
        %664 = vmatprep.subr.mxu0 0.0
        %665 = vmatpush1.msra.mxu0 0.0
        %666 = vmatprep.subr.mxu0 0.0
        %667 = vmatpush1.msra.mxu0 0.0
        %668 = vmatprep.subr.mxu0 0.0
        %669 = vmatpush1.msra.mxu0 0.0
        %670 = vmatprep.subr.mxu0 0.0
        %671 = vmatpush1.msra.mxu0 0.0
        %672 = vmatprep.subr.mxu0 0.0
        %673 = vmatpush1.msra.mxu0 0.0
        %674 = vmatprep.subr.mxu0 0.0
        %675 = vmatpush1.msra.mxu0 0.0
        %676 = vmatprep.subr.mxu0 0.0
        %677 = vmatpush1.msra.mxu0 0.0
        %678 = vmatprep.subr.mxu0 0.0
        %679 = vmatpush1.msra.mxu0 0.0
        %680 = vmatprep.subr.mxu0 0.0
        %681 = vmatpush1.msra.mxu0 0.0
        %682 = vmatprep.subr.mxu0 0.0
        %683 = vmatpush1.msra.mxu0 0.0
        %684 = vmatprep.subr.mxu0 0.0
        %685 = vmatpush1.msra.mxu0 0.0
        %686 = vmatprep.subr.mxu0 0.0
        %687 = vmatpush1.msra.mxu0 0.0
        %688 = vmatprep.subr.mxu0 0.0
        %689 = vmatpush1.msra.mxu0 %v649
        %690 = vmatprep.subr.mxu0 0.0
        %691 = vmatpush1.msra.mxu0 %v648
        %692 = vmatprep.subr.mxu0 0.0
        %693 = vmatpush2.msra.mxu0 0.0
        %694 = vmatprep.subr.mxu0 0.0
        %695 = vmatpush2.msra.mxu0 0.0
        %696 = vmatprep.subr.mxu0 0.0
        %697 = vmatpush2.msra.mxu0 0.0
        %698 = vmatprep.subr.mxu0 0.0
        %699 = vmatpush2.msra.mxu0 0.0
        %700 = vmatprep.subr.mxu0 0.0
        %701 = vmatpush2.msra.mxu0 0.0
        %702 = vmatprep.subr.mxu0 0.0
        %703 = vmatpush2.msra.mxu0 0.0
        %704 = vmatprep.subr.mxu0 0.0
        %705 = vmatpush2.msra.mxu0 0.0
        %706 = vmatprep.subr.mxu0 0.0
        %707 = vmatpush2.msra.mxu0 0.0
        %708 = vmatprep.subr.mxu0 0.0
        %709 = vmatpush2.msra.mxu0 0.0
        %710 = vmatprep.subr.mxu0 0.0
        %711 = vmatpush2.msra.mxu0 0.0
        %712 = vmatprep.subr.mxu0 0.0
        %713 = vmatpush2.msra.mxu0 0.0
        %714 = vmatprep.subr.mxu0 0.0
        %715 = vmatpush2.msra.mxu0 0.0
        %716 = vmatprep.subr.mxu0 0.0
        %717 = vmatpush2.msra.mxu0 0.0
        %718 = vmatprep.subr.mxu0 0.0
        %719 = vmatpush2.msra.mxu0 0.0
        %720 = vmatprep.subr.mxu0 0.0
        %721 = vmatpush2.msra.mxu0 0.0
        %722 = vmatprep.subr.mxu0 0.0
        %723 = vmatpush2.msra.mxu0 0.0
        %724 = vmatprep.mubr.f32.mxu0 0.0
        %725 = vmatmul.mubr.f32.gmra.mxu0 %v658
        %v726 = vpop.f32.mrf.mxu0
        %v727 = vadd.f32 %v655, %v726
        %v728 = vpop.f32.mrf.mxu0
        %729 = vdwg.mxu0
        %s730 = scalar_lea.vmem [#allocation3], 4
        %731 = vst.msk [vmem:[%s730] sm:$0x3] %vm384, %v727
        %s732 = scalar_lea.vmem %s267, 12 [#allocation4]
        %v733 = vld [vmem:[%s732] sm:$0x3]
        %v734 = vld [vmem:[%s388] sm:$0xff]
        %v735 = vld [vmem:[%s388 + $0x8] sm:$0xff]
        %v736 = vld [vmem:[%s391] sm:$0x1]
        %v738 = vlaneseq
        %v739 = vshrl.u32 %v738, 7
        %v740 = vsub.s32 0, %v739
        %v741 = vrot.slane %v736, %v740
        %v744 = vsel %vm310, %v733, 0
        %746 = vmatprep.subr.mxu0 0.0
        %747 = vmatpush1.msra.mxu0 0.0
        %748 = vmatprep.subr.mxu0 0.0
        %749 = vmatpush1.msra.mxu0 0.0
        %750 = vmatprep.subr.mxu0 0.0
        %751 = vmatpush1.msra.mxu0 0.0
        %752 = vmatprep.subr.mxu0 0.0
        %753 = vmatpush1.msra.mxu0 0.0
        %754 = vmatprep.subr.mxu0 0.0
        %755 = vmatpush1.msra.mxu0 0.0
        %756 = vmatprep.subr.mxu0 0.0
        %757 = vmatpush1.msra.mxu0 0.0
        %758 = vmatprep.subr.mxu0 0.0
        %759 = vmatpush1.msra.mxu0 0.0
        %760 = vmatprep.subr.mxu0 0.0
        %761 = vmatpush1.msra.mxu0 0.0
        %762 = vmatprep.subr.mxu0 0.0
        %763 = vmatpush1.msra.mxu0 0.0
        %764 = vmatprep.subr.mxu0 0.0
        %765 = vmatpush1.msra.mxu0 0.0
        %766 = vmatprep.subr.mxu0 0.0
        %767 = vmatpush1.msra.mxu0 0.0
        %768 = vmatprep.subr.mxu0 0.0
        %769 = vmatpush1.msra.mxu0 0.0
        %770 = vmatprep.subr.mxu0 0.0
        %771 = vmatpush1.msra.mxu0 0.0
        %772 = vmatprep.subr.mxu0 0.0
        %773 = vmatpush1.msra.mxu0 0.0
        %774 = vmatprep.subr.mxu0 0.0
        %775 = vmatpush1.msra.mxu0 %v735
        %776 = vmatprep.subr.mxu0 0.0
        %777 = vmatpush1.msra.mxu0 %v734
        %778 = vmatprep.subr.mxu0 0.0
        %779 = vmatpush2.msra.mxu0 0.0
        %780 = vmatprep.subr.mxu0 0.0
        %781 = vmatpush2.msra.mxu0 0.0
        %782 = vmatprep.subr.mxu0 0.0
        %783 = vmatpush2.msra.mxu0 0.0
        %784 = vmatprep.subr.mxu0 0.0
        %785 = vmatpush2.msra.mxu0 0.0
        %786 = vmatprep.subr.mxu0 0.0
        %787 = vmatpush2.msra.mxu0 0.0
        %788 = vmatprep.subr.mxu0 0.0
        %789 = vmatpush2.msra.mxu0 0.0
        %790 = vmatprep.subr.mxu0 0.0
        %791 = vmatpush2.msra.mxu0 0.0
        %792 = vmatprep.subr.mxu0 0.0
        %793 = vmatpush2.msra.mxu0 0.0
        %794 = vmatprep.subr.mxu0 0.0
        %795 = vmatpush2.msra.mxu0 0.0
        %796 = vmatprep.subr.mxu0 0.0
        %797 = vmatpush2.msra.mxu0 0.0
        %798 = vmatprep.subr.mxu0 0.0
        %799 = vmatpush2.msra.mxu0 0.0
        %800 = vmatprep.subr.mxu0 0.0
        %801 = vmatpush2.msra.mxu0 0.0
        %802 = vmatprep.subr.mxu0 0.0
        %803 = vmatpush2.msra.mxu0 0.0
        %804 = vmatprep.subr.mxu0 0.0
        %805 = vmatpush2.msra.mxu0 0.0
        %806 = vmatprep.subr.mxu0 0.0
        %807 = vmatpush2.msra.mxu0 0.0
        %808 = vmatprep.subr.mxu0 0.0
        %809 = vmatpush2.msra.mxu0 0.0
        %810 = vmatprep.mubr.f32.mxu0 0.0
        %811 = vmatmul.mubr.f32.gmra.mxu0 %v744
        %v812 = vpop.f32.mrf.mxu0
        %v813 = vadd.f32 %v741, %v812
        %v814 = vpop.f32.mrf.mxu0
        %815 = vdwg.mxu0
        %s816 = scalar_lea.vmem [#allocation3], 12
        %817 = vst.msk [vmem:[%s816] sm:$0x3] %vm384, %v813
        %s818 = scalar_lea.vmem %s267, 6 [#allocation4]
        %v819 = vld [vmem:[%s818] sm:$0x3]
        %v820 = vld [vmem:[%s1] sm:$0xff]
        %v821 = vld [vmem:[%s1 + $0x8] sm:$0xff]
        %v822 = vld [vmem:[%s3] sm:$0x1]
        %v824 = vlaneseq
        %v825 = vshrl.u32 %v824, 7
        %v826 = vsub.s32 0, %v825
        %v827 = vrot.slane %v822, %v826
        %v830 = vsel %vm310, %v819, 0
        %832 = vmatprep.subr.mxu0 0.0
        %833 = vmatpush1.msra.mxu0 0.0
        %834 = vmatprep.subr.mxu0 0.0
        %835 = vmatpush1.msra.mxu0 0.0
        %836 = vmatprep.subr.mxu0 0.0
        %837 = vmatpush1.msra.mxu0 0.0
        %838 = vmatprep.subr.mxu0 0.0
        %839 = vmatpush1.msra.mxu0 0.0
        %840 = vmatprep.subr.mxu0 0.0
        %841 = vmatpush1.msra.mxu0 0.0
        %842 = vmatprep.subr.mxu0 0.0
        %843 = vmatpush1.msra.mxu0 0.0
        %844 = vmatprep.subr.mxu0 0.0
        %845 = vmatpush1.msra.mxu0 0.0
        %846 = vmatprep.subr.mxu0 0.0
        %847 = vmatpush1.msra.mxu0 0.0
        %848 = vmatprep.subr.mxu0 0.0
        %849 = vmatpush1.msra.mxu0 0.0
        %850 = vmatprep.subr.mxu0 0.0
        %851 = vmatpush1.msra.mxu0 0.0
        %852 = vmatprep.subr.mxu0 0.0
        %853 = vmatpush1.msra.mxu0 0.0
        %854 = vmatprep.subr.mxu0 0.0
        %855 = vmatpush1.msra.mxu0 0.0
        %856 = vmatprep.subr.mxu0 0.0
        %857 = vmatpush1.msra.mxu0 0.0
        %858 = vmatprep.subr.mxu0 0.0
        %859 = vmatpush1.msra.mxu0 0.0
        %860 = vmatprep.subr.mxu0 0.0
        %861 = vmatpush1.msra.mxu0 %v821
        %862 = vmatprep.subr.mxu0 0.0
        %863 = vmatpush1.msra.mxu0 %v820
        %864 = vmatprep.subr.mxu0 0.0
        %865 = vmatpush2.msra.mxu0 0.0
        %866 = vmatprep.subr.mxu0 0.0
        %867 = vmatpush2.msra.mxu0 0.0
        %868 = vmatprep.subr.mxu0 0.0
        %869 = vmatpush2.msra.mxu0 0.0
        %870 = vmatprep.subr.mxu0 0.0
        %871 = vmatpush2.msra.mxu0 0.0
        %872 = vmatprep.subr.mxu0 0.0
        %873 = vmatpush2.msra.mxu0 0.0
        %874 = vmatprep.subr.mxu0 0.0
        %875 = vmatpush2.msra.mxu0 0.0
        %876 = vmatprep.subr.mxu0 0.0
        %877 = vmatpush2.msra.mxu0 0.0
        %878 = vmatprep.subr.mxu0 0.0
        %879 = vmatpush2.msra.mxu0 0.0
        %880 = vmatprep.subr.mxu0 0.0
        %881 = vmatpush2.msra.mxu0 0.0
        %882 = vmatprep.subr.mxu0 0.0
        %883 = vmatpush2.msra.mxu0 0.0
        %884 = vmatprep.subr.mxu0 0.0
        %885 = vmatpush2.msra.mxu0 0.0
        %886 = vmatprep.subr.mxu0 0.0
        %887 = vmatpush2.msra.mxu0 0.0
        %888 = vmatprep.subr.mxu0 0.0
        %889 = vmatpush2.msra.mxu0 0.0
        %890 = vmatprep.subr.mxu0 0.0
        %891 = vmatpush2.msra.mxu0 0.0
        %892 = vmatprep.subr.mxu0 0.0
        %893 = vmatpush2.msra.mxu0 0.0
        %894 = vmatprep.subr.mxu0 0.0
        %895 = vmatpush2.msra.mxu0 0.0
        %896 = vmatprep.mubr.f32.mxu0 0.0
        %897 = vmatmul.mubr.f32.gmra.mxu0 %v830
        %v898 = vpop.f32.mrf.mxu0
        %v899 = vadd.f32 %v827, %v898
        %v900 = vpop.f32.mrf.mxu0
        %901 = vdwg.mxu0
        %s902 = scalar_lea.vmem [#allocation3], 6
        %903 = vst.msk [vmem:[%s902] sm:$0x3] %vm384, %v899
        %s904 = scalar_lea.vmem %s267, 14 [#allocation4]
        %v905 = vld [vmem:[%s904] sm:$0x3]
        %v906 = vld [vmem:[%s388] sm:$0xff]
        %v907 = vld [vmem:[%s388 + $0x8] sm:$0xff]
        %v908 = vld [vmem:[%s391] sm:$0x1]
        %v910 = vlaneseq
        %v911 = vshrl.u32 %v910, 7
        %v912 = vsub.s32 0, %v911
        %v913 = vrot.slane %v908, %v912
        %v916 = vsel %vm310, %v905, 0
        %918 = vmatprep.subr.mxu0 0.0
        %919 = vmatpush1.msra.mxu0 0.0
        %920 = vmatprep.subr.mxu0 0.0
        %921 = vmatpush1.msra.mxu0 0.0
        %922 = vmatprep.subr.mxu0 0.0
        %923 = vmatpush1.msra.mxu0 0.0
        %924 = vmatprep.subr.mxu0 0.0
        %925 = vmatpush1.msra.mxu0 0.0
        %926 = vmatprep.subr.mxu0 0.0
        %927 = vmatpush1.msra.mxu0 0.0
        %928 = vmatprep.subr.mxu0 0.0
        %929 = vmatpush1.msra.mxu0 0.0
        %930 = vmatprep.subr.mxu0 0.0
        %931 = vmatpush1.msra.mxu0 0.0
        %932 = vmatprep.subr.mxu0 0.0
        %933 = vmatpush1.msra.mxu0 0.0
        %934 = vmatprep.subr.mxu0 0.0
        %935 = vmatpush1.msra.mxu0 0.0
        %936 = vmatprep.subr.mxu0 0.0
        %937 = vmatpush1.msra.mxu0 0.0
        %938 = vmatprep.subr.mxu0 0.0
        %939 = vmatpush1.msra.mxu0 0.0
        %940 = vmatprep.subr.mxu0 0.0
        %941 = vmatpush1.msra.mxu0 0.0
        %942 = vmatprep.subr.mxu0 0.0
        %943 = vmatpush1.msra.mxu0 0.0
        %944 = vmatprep.subr.mxu0 0.0
        %945 = vmatpush1.msra.mxu0 0.0
        %946 = vmatprep.subr.mxu0 0.0
        %947 = vmatpush1.msra.mxu0 %v907
        %948 = vmatprep.subr.mxu0 0.0
        %949 = vmatpush1.msra.mxu0 %v906
        %950 = vmatprep.subr.mxu0 0.0
        %951 = vmatpush2.msra.mxu0 0.0
        %952 = vmatprep.subr.mxu0 0.0
        %953 = vmatpush2.msra.mxu0 0.0
        %954 = vmatprep.subr.mxu0 0.0
        %955 = vmatpush2.msra.mxu0 0.0
        %956 = vmatprep.subr.mxu0 0.0
        %957 = vmatpush2.msra.mxu0 0.0
        %958 = vmatprep.subr.mxu0 0.0
        %959 = vmatpush2.msra.mxu0 0.0
        %960 = vmatprep.subr.mxu0 0.0
        %961 = vmatpush2.msra.mxu0 0.0
        %962 = vmatprep.subr.mxu0 0.0
        %963 = vmatpush2.msra.mxu0 0.0
        %964 = vmatprep.subr.mxu0 0.0
        %965 = vmatpush2.msra.mxu0 0.0
        %966 = vmatprep.subr.mxu0 0.0
        %967 = vmatpush2.msra.mxu0 0.0
        %968 = vmatprep.subr.mxu0 0.0
        %969 = vmatpush2.msra.mxu0 0.0
        %970 = vmatprep.subr.mxu0 0.0
        %971 = vmatpush2.msra.mxu0 0.0
        %972 = vmatprep.subr.mxu0 0.0
        %973 = vmatpush2.msra.mxu0 0.0
        %974 = vmatprep.subr.mxu0 0.0
        %975 = vmatpush2.msra.mxu0 0.0
        %976 = vmatprep.subr.mxu0 0.0
        %977 = vmatpush2.msra.mxu0 0.0
        %978 = vmatprep.subr.mxu0 0.0
        %979 = vmatpush2.msra.mxu0 0.0
        %980 = vmatprep.subr.mxu0 0.0
        %981 = vmatpush2.msra.mxu0 0.0
        %982 = vmatprep.mubr.f32.mxu0 0.0
        %983 = vmatmul.mubr.f32.gmra.mxu0 %v916
        %v984 = vpop.f32.mrf.mxu0
        %v985 = vadd.f32 %v913, %v984
        %v986 = vpop.f32.mrf.mxu0
        %987 = vdwg.mxu0
        %s988 = scalar_lea.vmem [#allocation3], 14
        %989 = vst.msk [vmem:[%s988] sm:$0x3] %vm384, %v985
        %v990 = vld [vmem:[%s4] sm:$0x1]
        %s991 = scalar_lea.vmem %s4, 1
        %v992 = vld [vmem:[%s991] sm:$0x1]
        %v993 = vld [vmem:[#allocation2] sm:$0x3]
        %s994 = scalar_lea.vmem [#allocation2], 2
        %v995 = vld [vmem:[%s994] sm:$0x3]
        %v996 = vld [vmem:[%s2] sm:$0xff]
        %v997 = vld [vmem:[%s2 + $0x8] sm:$0xff]
        %v998 = vld [vmem:[%s2 + $0x10] sm:$0xff]
        %v999 = vld [vmem:[%s2 + $0x18] sm:$0xff]
        %vm1000 = vcmask 261120
        %v1002 = vsel %vm1000, %v993, 0
        %1004 = vmatprep.subr.mxu0 0.0
        %1005 = vmatpush1.msra.mxu0 0.0
        %1006 = vmatprep.subr.mxu0 0.0
        %1007 = vmatpush1.msra.mxu0 0.0
        %1008 = vmatprep.subr.mxu0 0.0
        %1009 = vmatpush1.msra.mxu0 0.0
        %1010 = vmatprep.subr.mxu0 0.0
        %1011 = vmatpush1.msra.mxu0 0.0
        %1012 = vmatprep.subr.mxu0 0.0
        %1013 = vmatpush1.msra.mxu0 0.0
        %1014 = vmatprep.subr.mxu0 0.0
        %1015 = vmatpush1.msra.mxu0 0.0
        %1016 = vmatprep.subr.mxu0 0.0
        %1017 = vmatpush1.msra.mxu0 0.0
        %1018 = vmatprep.subr.mxu0 0.0
        %1019 = vmatpush1.msra.mxu0 0.0
        %1020 = vmatprep.subr.mxu0 0.0
        %1021 = vmatpush1.msra.mxu0 0.0
        %1022 = vmatprep.subr.mxu0 0.0
        %1023 = vmatpush1.msra.mxu0 0.0
        %1024 = vmatprep.subr.mxu0 0.0
        %1025 = vmatpush1.msra.mxu0 0.0
        %1026 = vmatprep.subr.mxu0 0.0
        %1027 = vmatpush1.msra.mxu0 0.0
        %1028 = vmatprep.subr.mxu0 0.0
        %1029 = vmatpush1.msra.mxu0 %v999
        %1030 = vmatprep.subr.mxu0 0.0
        %1031 = vmatpush1.msra.mxu0 %v998
        %1032 = vmatprep.subr.mxu0 0.0
        %1033 = vmatpush1.msra.mxu0 %v997
        %1034 = vmatprep.subr.mxu0 0.0
        %1035 = vmatpush1.msra.mxu0 %v996
        %1036 = vmatprep.subr.mxu0 0.0
        %1037 = vmatpush2.msra.mxu0 0.0
        %1038 = vmatprep.subr.mxu0 0.0
        %1039 = vmatpush2.msra.mxu0 0.0
        %1040 = vmatprep.subr.mxu0 0.0
        %1041 = vmatpush2.msra.mxu0 0.0
        %1042 = vmatprep.subr.mxu0 0.0
        %1043 = vmatpush2.msra.mxu0 0.0
        %1044 = vmatprep.subr.mxu0 0.0
        %1045 = vmatpush2.msra.mxu0 0.0
        %1046 = vmatprep.subr.mxu0 0.0
        %1047 = vmatpush2.msra.mxu0 0.0
        %1048 = vmatprep.subr.mxu0 0.0
        %1049 = vmatpush2.msra.mxu0 0.0
        %1050 = vmatprep.subr.mxu0 0.0
        %1051 = vmatpush2.msra.mxu0 0.0
        %1052 = vmatprep.subr.mxu0 0.0
        %1053 = vmatpush2.msra.mxu0 0.0
        %1054 = vmatprep.subr.mxu0 0.0
        %1055 = vmatpush2.msra.mxu0 0.0
        %1056 = vmatprep.subr.mxu0 0.0
        %1057 = vmatpush2.msra.mxu0 0.0
        %1058 = vmatprep.subr.mxu0 0.0
        %1059 = vmatpush2.msra.mxu0 0.0
        %1060 = vmatprep.subr.mxu0 0.0
        %1061 = vmatpush2.msra.mxu0 0.0
        %1062 = vmatprep.subr.mxu0 0.0
        %1063 = vmatpush2.msra.mxu0 0.0
        %1064 = vmatprep.subr.mxu0 0.0
        %1065 = vmatpush2.msra.mxu0 0.0
        %1066 = vmatprep.subr.mxu0 0.0
        %1067 = vmatpush2.msra.mxu0 0.0
        %1068 = vmatprep.mubr.f32.mxu0 0.0
        %1069 = vmatmul.mubr.f32.gmra.mxu0 %v1002
        %v1070 = vpop.f32.mrf.mxu0
        %v1071 = vadd.f32 0.0, %v1070
        %v1072 = vpop.f32.mrf.mxu0
        %1073 = vdwg.mxu0
        %s1074 = scalar_lea.vmem %s2, 32
        %v1075 = vld [vmem:[%s1074] sm:$0xff]
        %v1076 = vld [vmem:[%s1074 + $0x8] sm:$0xff]
        %v1077 = vld [vmem:[%s1074 + $0x10] sm:$0xff]
        %v1078 = vld [vmem:[%s1074 + $0x18] sm:$0xff]
        %v1080 = vsel %vm1000, %v995, 0
        %1082 = vmatprep.subr.mxu0 0.0
        %1083 = vmatpush1.msra.mxu0 0.0
        %1084 = vmatprep.subr.mxu0 0.0
        %1085 = vmatpush1.msra.mxu0 0.0
        %1086 = vmatprep.subr.mxu0 0.0
        %1087 = vmatpush1.msra.mxu0 0.0
        %1088 = vmatprep.subr.mxu0 0.0
        %1089 = vmatpush1.msra.mxu0 0.0
        %1090 = vmatprep.subr.mxu0 0.0
        %1091 = vmatpush1.msra.mxu0 0.0
        %1092 = vmatprep.subr.mxu0 0.0
        %1093 = vmatpush1.msra.mxu0 0.0
        %1094 = vmatprep.subr.mxu0 0.0
        %1095 = vmatpush1.msra.mxu0 0.0
        %1096 = vmatprep.subr.mxu0 0.0
        %1097 = vmatpush1.msra.mxu0 0.0
        %1098 = vmatprep.subr.mxu0 0.0
        %1099 = vmatpush1.msra.mxu0 0.0
        %1100 = vmatprep.subr.mxu0 0.0
        %1101 = vmatpush1.msra.mxu0 0.0
        %1102 = vmatprep.subr.mxu0 0.0
        %1103 = vmatpush1.msra.mxu0 0.0
        %1104 = vmatprep.subr.mxu0 0.0
        %1105 = vmatpush1.msra.mxu0 0.0
        %1106 = vmatprep.subr.mxu0 0.0
        %1107 = vmatpush1.msra.mxu0 %v1078
        %1108 = vmatprep.subr.mxu0 0.0
        %1109 = vmatpush1.msra.mxu0 %v1077
        %1110 = vmatprep.subr.mxu0 0.0
        %1111 = vmatpush1.msra.mxu0 %v1076
        %1112 = vmatprep.subr.mxu0 0.0
        %1113 = vmatpush1.msra.mxu0 %v1075
        %1114 = vmatprep.subr.mxu0 0.0
        %1115 = vmatpush2.msra.mxu0 0.0
        %1116 = vmatprep.subr.mxu0 0.0
        %1117 = vmatpush2.msra.mxu0 0.0
        %1118 = vmatprep.subr.mxu0 0.0
        %1119 = vmatpush2.msra.mxu0 0.0
        %1120 = vmatprep.subr.mxu0 0.0
        %1121 = vmatpush2.msra.mxu0 0.0
        %1122 = vmatprep.subr.mxu0 0.0
        %1123 = vmatpush2.msra.mxu0 0.0
        %1124 = vmatprep.subr.mxu0 0.0
        %1125 = vmatpush2.msra.mxu0 0.0
        %1126 = vmatprep.subr.mxu0 0.0
        %1127 = vmatpush2.msra.mxu0 0.0
        %1128 = vmatprep.subr.mxu0 0.0
        %1129 = vmatpush2.msra.mxu0 0.0
        %1130 = vmatprep.subr.mxu0 0.0
        %1131 = vmatpush2.msra.mxu0 0.0
        %1132 = vmatprep.subr.mxu0 0.0
        %1133 = vmatpush2.msra.mxu0 0.0
        %1134 = vmatprep.subr.mxu0 0.0
        %1135 = vmatpush2.msra.mxu0 0.0
        %1136 = vmatprep.subr.mxu0 0.0
        %1137 = vmatpush2.msra.mxu0 0.0
        %1138 = vmatprep.subr.mxu0 0.0
        %1139 = vmatpush2.msra.mxu0 0.0
        %1140 = vmatprep.subr.mxu0 0.0
        %1141 = vmatpush2.msra.mxu0 0.0
        %1142 = vmatprep.subr.mxu0 0.0
        %1143 = vmatpush2.msra.mxu0 0.0
        %1144 = vmatprep.subr.mxu0 0.0
        %1145 = vmatpush2.msra.mxu0 0.0
        %1146 = vmatprep.mubr.f32.mxu0 0.0
        %1147 = vmatmul.mubr.f32.gmra.mxu0 %v1080
        %v1148 = vpop.f32.mrf.mxu0
        %v1149 = vadd.f32 0.0, %v1148
        %v1150 = vpop.f32.mrf.mxu0
        %1151 = vdwg.mxu0
        %v1152 = vld [vmem:[#allocation3] sm:$0x3]
        %v1153 = vadd.f32 %v1152, %v1071
        %v1154 = vxor.u32 %v1153, 2147483648
        %v1155 = vmul.f32 %v1154, 1.442695
        %v1156 = vpow.pop %v1155
        %v1157 = vadd.f32 %v1156, 1.0
        %v1158 = vrcp.pop %v1157
        %v1159 = vmul.f32 1.0, %v1158
        %v1161 = vlaneseq
        %v1162 = vshrl.u32 %v1161, 7
        %v1163 = vsub.s32 0, %v1162
        %v1164 = vrot.slane %v990, %v1163
        %1165 = vrot.lane.b32.xlu0 %v1164, 64
        %v1166 = vpop.permute.xlu0 %1165
        %v1168 = vadd.f32 %v1071, %v1166
        %1170 = vrot.lane.b32.xlu0 %v1168, 64
        %v1171 = vpop.permute.xlu0 %1170
        %v1173 = vmul.f32 %v1159, %v1171
        %1175 = vrot.lane.b32.xlu0 %v1173, 64
        %v1176 = vpop.permute.xlu0 %1175
        %v1178 = vadd.f32 %v1152, %v1176
        %v1179 = vtanh.pop %v1178
        %v1180 = vsub.f32 1.0, %v1159
        %1182 = vrot.lane.b32.xlu0 %v1179, 96
        %v1183 = vpop.permute.xlu0 %1182
        %v1185 = vmul.f32 %v1180, %v1183
        %1186 = vrot.lane.b32.xlu0 %v993, 32
        %v1187 = vpop.permute.xlu0 %1186
        %v1189 = vmul.f32 %v1159, %v1187
        %v1190 = vadd.f32 %v1185, %v1189
        %v1191 = vld [vmem:[%s472] sm:$0x3]
        %v1192 = vadd.f32 %v1191, %v1149
        %v1193 = vxor.u32 %v1192, 2147483648
        %v1194 = vmul.f32 %v1193, 1.442695
        %v1195 = vpow.pop %v1194
        %v1196 = vadd.f32 %v1195, 1.0
        %v1197 = vrcp.pop %v1196
        %v1198 = vmul.f32 1.0, %v1197
        %v1200 = vlaneseq
        %v1201 = vshrl.u32 %v1200, 7
        %v1202 = vsub.s32 0, %v1201
        %v1203 = vrot.slane %v992, %v1202
        %1204 = vrot.lane.b32.xlu0 %v1203, 64
        %v1205 = vpop.permute.xlu0 %1204
        %v1207 = vadd.f32 %v1149, %v1205
        %1209 = vrot.lane.b32.xlu0 %v1207, 64
        %v1210 = vpop.permute.xlu0 %1209
        %v1212 = vmul.f32 %v1198, %v1210
        %1214 = vrot.lane.b32.xlu0 %v1212, 64
        %v1215 = vpop.permute.xlu0 %1214
        %v1217 = vadd.f32 %v1191, %v1215
        %v1218 = vtanh.pop %v1217
        %v1219 = vsub.f32 1.0, %v1198
        %1221 = vrot.lane.b32.xlu0 %v1218, 96
        %v1222 = vpop.permute.xlu0 %1221
        %v1224 = vmul.f32 %v1219, %v1222
        %1225 = vrot.lane.b32.xlu0 %v995, 32
        %v1226 = vpop.permute.xlu0 %1225
        %v1228 = vmul.f32 %v1198, %v1226
        %v1229 = vadd.f32 %v1224, %v1228
        %1231 = vrot.lane.b32.xlu0 %v1190, 96
        %v1232 = vpop.permute.xlu0 %1231
        %vm1234 = vcmask 254976
        %1235 = vst.msk [vmem:[%s290] sm:$0x3] %vm1234, %v1232
        %1237 = vrot.lane.b32.xlu0 %v1229, 96
        %v1238 = vpop.permute.xlu0 %1237
        %s1240 = scalar_lea.vmem %s290, 8 [#allocation5]
        %1241 = vst.msk [vmem:[%s1240] sm:$0x3] %vm1234, %v1238
        %v1242 = vld [vmem:[%s2] sm:$0xff]
        %v1243 = vld [vmem:[%s2 + $0x8] sm:$0xff]
        %v1244 = vld [vmem:[%s2 + $0x10] sm:$0xff]
        %v1245 = vld [vmem:[%s2 + $0x18] sm:$0xff]
        %v1246 = vsel %vm1000, %v1232, 0
        %1248 = vmatprep.subr.mxu0 0.0
        %1249 = vmatpush1.msra.mxu0 0.0
        %1250 = vmatprep.subr.mxu0 0.0
        %1251 = vmatpush1.msra.mxu0 0.0
        %1252 = vmatprep.subr.mxu0 0.0
        %1253 = vmatpush1.msra.mxu0 0.0
        %1254 = vmatprep.subr.mxu0 0.0
        %1255 = vmatpush1.msra.mxu0 0.0
        %1256 = vmatprep.subr.mxu0 0.0
        %1257 = vmatpush1.msra.mxu0 0.0
        %1258 = vmatprep.subr.mxu0 0.0
        %1259 = vmatpush1.msra.mxu0 0.0
        %1260 = vmatprep.subr.mxu0 0.0
        %1261 = vmatpush1.msra.mxu0 0.0
        %1262 = vmatprep.subr.mxu0 0.0
        %1263 = vmatpush1.msra.mxu0 0.0
        %1264 = vmatprep.subr.mxu0 0.0
        %1265 = vmatpush1.msra.mxu0 0.0
        %1266 = vmatprep.subr.mxu0 0.0
        %1267 = vmatpush1.msra.mxu0 0.0
        %1268 = vmatprep.subr.mxu0 0.0
        %1269 = vmatpush1.msra.mxu0 0.0
        %1270 = vmatprep.subr.mxu0 0.0
        %1271 = vmatpush1.msra.mxu0 0.0
        %1272 = vmatprep.subr.mxu0 0.0
        %1273 = vmatpush1.msra.mxu0 %v1245
        %1274 = vmatprep.subr.mxu0 0.0
        %1275 = vmatpush1.msra.mxu0 %v1244
        %1276 = vmatprep.subr.mxu0 0.0
        %1277 = vmatpush1.msra.mxu0 %v1243
        %1278 = vmatprep.subr.mxu0 0.0
        %1279 = vmatpush1.msra.mxu0 %v1242
        %1280 = vmatprep.subr.mxu0 0.0
        %1281 = vmatpush2.msra.mxu0 0.0
        %1282 = vmatprep.subr.mxu0 0.0
        %1283 = vmatpush2.msra.mxu0 0.0
        %1284 = vmatprep.subr.mxu0 0.0
        %1285 = vmatpush2.msra.mxu0 0.0
        %1286 = vmatprep.subr.mxu0 0.0
        %1287 = vmatpush2.msra.mxu0 0.0
        %1288 = vmatprep.subr.mxu0 0.0
        %1289 = vmatpush2.msra.mxu0 0.0
        %1290 = vmatprep.subr.mxu0 0.0
        %1291 = vmatpush2.msra.mxu0 0.0
        %1292 = vmatprep.subr.mxu0 0.0
        %1293 = vmatpush2.msra.mxu0 0.0
        %1294 = vmatprep.subr.mxu0 0.0
        %1295 = vmatpush2.msra.mxu0 0.0
        %1296 = vmatprep.subr.mxu0 0.0
        %1297 = vmatpush2.msra.mxu0 0.0
        %1298 = vmatprep.subr.mxu0 0.0
        %1299 = vmatpush2.msra.mxu0 0.0
        %1300 = vmatprep.subr.mxu0 0.0
        %1301 = vmatpush2.msra.mxu0 0.0
        %1302 = vmatprep.subr.mxu0 0.0
        %1303 = vmatpush2.msra.mxu0 0.0
        %1304 = vmatprep.subr.mxu0 0.0
        %1305 = vmatpush2.msra.mxu0 0.0
        %1306 = vmatprep.subr.mxu0 0.0
        %1307 = vmatpush2.msra.mxu0 0.0
        %1308 = vmatprep.subr.mxu0 0.0
        %1309 = vmatpush2.msra.mxu0 0.0
        %1310 = vmatprep.subr.mxu0 0.0
        %1311 = vmatpush2.msra.mxu0 0.0
        %1312 = vmatprep.mubr.f32.mxu0 0.0
        %1313 = vmatmul.mubr.f32.gmra.mxu0 %v1246
        %v1314 = vpop.f32.mrf.mxu0
        %v1315 = vadd.f32 0.0, %v1314
        %v1316 = vpop.f32.mrf.mxu0
        %1317 = vdwg.mxu0
        %v1318 = vld [vmem:[%s1074] sm:$0xff]
        %v1319 = vld [vmem:[%s1074 + $0x8] sm:$0xff]
        %v1320 = vld [vmem:[%s1074 + $0x10] sm:$0xff]
        %v1321 = vld [vmem:[%s1074 + $0x18] sm:$0xff]
        %v1322 = vsel %vm1000, %v1238, 0
        %1324 = vmatprep.subr.mxu0 0.0
        %1325 = vmatpush1.msra.mxu0 0.0
        %1326 = vmatprep.subr.mxu0 0.0
        %1327 = vmatpush1.msra.mxu0 0.0
        %1328 = vmatprep.subr.mxu0 0.0
        %1329 = vmatpush1.msra.mxu0 0.0
        %1330 = vmatprep.subr.mxu0 0.0
        %1331 = vmatpush1.msra.mxu0 0.0
        %1332 = vmatprep.subr.mxu0 0.0
        %1333 = vmatpush1.msra.mxu0 0.0
        %1334 = vmatprep.subr.mxu0 0.0
        %1335 = vmatpush1.msra.mxu0 0.0
        %1336 = vmatprep.subr.mxu0 0.0
        %1337 = vmatpush1.msra.mxu0 0.0
        %1338 = vmatprep.subr.mxu0 0.0
        %1339 = vmatpush1.msra.mxu0 0.0
        %1340 = vmatprep.subr.mxu0 0.0
        %1341 = vmatpush1.msra.mxu0 0.0
        %1342 = vmatprep.subr.mxu0 0.0
        %1343 = vmatpush1.msra.mxu0 0.0
        %1344 = vmatprep.subr.mxu0 0.0
        %1345 = vmatpush1.msra.mxu0 0.0
        %1346 = vmatprep.subr.mxu0 0.0
        %1347 = vmatpush1.msra.mxu0 0.0
        %1348 = vmatprep.subr.mxu0 0.0
        %1349 = vmatpush1.msra.mxu0 %v1321
        %1350 = vmatprep.subr.mxu0 0.0
        %1351 = vmatpush1.msra.mxu0 %v1320
        %1352 = vmatprep.subr.mxu0 0.0
        %1353 = vmatpush1.msra.mxu0 %v1319
        %1354 = vmatprep.subr.mxu0 0.0
        %1355 = vmatpush1.msra.mxu0 %v1318
        %1356 = vmatprep.subr.mxu0 0.0
        %1357 = vmatpush2.msra.mxu0 0.0
        %1358 = vmatprep.subr.mxu0 0.0
        %1359 = vmatpush2.msra.mxu0 0.0
        %1360 = vmatprep.subr.mxu0 0.0
        %1361 = vmatpush2.msra.mxu0 0.0
        %1362 = vmatprep.subr.mxu0 0.0
        %1363 = vmatpush2.msra.mxu0 0.0
        %1364 = vmatprep.subr.mxu0 0.0
        %1365 = vmatpush2.msra.mxu0 0.0
        %1366 = vmatprep.subr.mxu0 0.0
        %1367 = vmatpush2.msra.mxu0 0.0
        %1368 = vmatprep.subr.mxu0 0.0
        %1369 = vmatpush2.msra.mxu0 0.0
        %1370 = vmatprep.subr.mxu0 0.0
        %1371 = vmatpush2.msra.mxu0 0.0
        %1372 = vmatprep.subr.mxu0 0.0
        %1373 = vmatpush2.msra.mxu0 0.0
        %1374 = vmatprep.subr.mxu0 0.0
        %1375 = vmatpush2.msra.mxu0 0.0
        %1376 = vmatprep.subr.mxu0 0.0
        %1377 = vmatpush2.msra.mxu0 0.0
        %1378 = vmatprep.subr.mxu0 0.0
        %1379 = vmatpush2.msra.mxu0 0.0
        %1380 = vmatprep.subr.mxu0 0.0
        %1381 = vmatpush2.msra.mxu0 0.0
        %1382 = vmatprep.subr.mxu0 0.0
        %1383 = vmatpush2.msra.mxu0 0.0
        %1384 = vmatprep.subr.mxu0 0.0
        %1385 = vmatpush2.msra.mxu0 0.0
        %1386 = vmatprep.subr.mxu0 0.0
        %1387 = vmatpush2.msra.mxu0 0.0
        %1388 = vmatprep.mubr.f32.mxu0 0.0
        %1389 = vmatmul.mubr.f32.gmra.mxu0 %v1322
        %v1390 = vpop.f32.mrf.mxu0
        %v1391 = vadd.f32 0.0, %v1390
        %v1392 = vpop.f32.mrf.mxu0
        %1393 = vdwg.mxu0
        %v1394 = vld [vmem:[%s558] sm:$0x3]
        %v1395 = vadd.f32 %v1394, %v1315
        %v1396 = vxor.u32 %v1395, 2147483648
        %v1397 = vmul.f32 %v1396, 1.442695
        %v1398 = vpow.pop %v1397
        %v1399 = vadd.f32 %v1398, 1.0
        %v1400 = vrcp.pop %v1399
        %v1401 = vmul.f32 1.0, %v1400
        %v1402 = vadd.f32 %v1315, %v1166
        %1404 = vrot.lane.b32.xlu0 %v1402, 64
        %v1405 = vpop.permute.xlu0 %1404
        %v1407 = vmul.f32 %v1401, %v1405
        %1409 = vrot.lane.b32.xlu0 %v1407, 64
        %v1410 = vpop.permute.xlu0 %1409
        %v1412 = vadd.f32 %v1394, %v1410
        %v1413 = vtanh.pop %v1412
        %v1414 = vsub.f32 1.0, %v1401
        %1416 = vrot.lane.b32.xlu0 %v1413, 96
        %v1417 = vpop.permute.xlu0 %1416
        %v1419 = vmul.f32 %v1414, %v1417
        %v1420 = vmul.f32 %v1401, %v1190
        %v1421 = vadd.f32 %v1419, %v1420
        %v1422 = vld [vmem:[%s644] sm:$0x3]
        %v1423 = vadd.f32 %v1422, %v1391
        %v1424 = vxor.u32 %v1423, 2147483648
        %v1425 = vmul.f32 %v1424, 1.442695
        %v1426 = vpow.pop %v1425
        %v1427 = vadd.f32 %v1426, 1.0
        %v1428 = vrcp.pop %v1427
        %v1429 = vmul.f32 1.0, %v1428
        %v1430 = vadd.f32 %v1391, %v1205
        %1432 = vrot.lane.b32.xlu0 %v1430, 64
        %v1433 = vpop.permute.xlu0 %1432
        %v1435 = vmul.f32 %v1429, %v1433
        %1437 = vrot.lane.b32.xlu0 %v1435, 64
        %v1438 = vpop.permute.xlu0 %1437
        %v1440 = vadd.f32 %v1422, %v1438
        %v1441 = vtanh.pop %v1440
        %v1442 = vsub.f32 1.0, %v1429
        %1444 = vrot.lane.b32.xlu0 %v1441, 96
        %v1445 = vpop.permute.xlu0 %1444
        %v1447 = vmul.f32 %v1442, %v1445
        %v1448 = vmul.f32 %v1429, %v1229
        %v1449 = vadd.f32 %v1447, %v1448
        %1451 = vrot.lane.b32.xlu0 %v1421, 96
        %v1452 = vpop.permute.xlu0 %1451
        %s1454 = scalar_lea.vmem %s290, 2 [#allocation5]
        %1455 = vst.msk [vmem:[%s1454] sm:$0x3] %vm1234, %v1452
        %1457 = vrot.lane.b32.xlu0 %v1449, 96
        %v1458 = vpop.permute.xlu0 %1457
        %s1460 = scalar_lea.vmem %s290, 10 [#allocation5]
        %1461 = vst.msk [vmem:[%s1460] sm:$0x3] %vm1234, %v1458
        %v1462 = vld [vmem:[%s2] sm:$0xff]
        %v1463 = vld [vmem:[%s2 + $0x8] sm:$0xff]
        %v1464 = vld [vmem:[%s2 + $0x10] sm:$0xff]
        %v1465 = vld [vmem:[%s2 + $0x18] sm:$0xff]
        %v1466 = vsel %vm1000, %v1452, 0
        %1468 = vmatprep.subr.mxu0 0.0
        %1469 = vmatpush1.msra.mxu0 0.0
        %1470 = vmatprep.subr.mxu0 0.0
        %1471 = vmatpush1.msra.mxu0 0.0
        %1472 = vmatprep.subr.mxu0 0.0
        %1473 = vmatpush1.msra.mxu0 0.0
        %1474 = vmatprep.subr.mxu0 0.0
        %1475 = vmatpush1.msra.mxu0 0.0
        %1476 = vmatprep.subr.mxu0 0.0
        %1477 = vmatpush1.msra.mxu0 0.0
        %1478 = vmatprep.subr.mxu0 0.0
        %1479 = vmatpush1.msra.mxu0 0.0
        %1480 = vmatprep.subr.mxu0 0.0
        %1481 = vmatpush1.msra.mxu0 0.0
        %1482 = vmatprep.subr.mxu0 0.0
        %1483 = vmatpush1.msra.mxu0 0.0
        %1484 = vmatprep.subr.mxu0 0.0
        %1485 = vmatpush1.msra.mxu0 0.0
        %1486 = vmatprep.subr.mxu0 0.0
        %1487 = vmatpush1.msra.mxu0 0.0
        %1488 = vmatprep.subr.mxu0 0.0
        %1489 = vmatpush1.msra.mxu0 0.0
        %1490 = vmatprep.subr.mxu0 0.0
        %1491 = vmatpush1.msra.mxu0 0.0
        %1492 = vmatprep.subr.mxu0 0.0
        %1493 = vmatpush1.msra.mxu0 %v1465
        %1494 = vmatprep.subr.mxu0 0.0
        %1495 = vmatpush1.msra.mxu0 %v1464
        %1496 = vmatprep.subr.mxu0 0.0
        %1497 = vmatpush1.msra.mxu0 %v1463
        %1498 = vmatprep.subr.mxu0 0.0
        %1499 = vmatpush1.msra.mxu0 %v1462
        %1500 = vmatprep.subr.mxu0 0.0
        %1501 = vmatpush2.msra.mxu0 0.0
        %1502 = vmatprep.subr.mxu0 0.0
        %1503 = vmatpush2.msra.mxu0 0.0
        %1504 = vmatprep.subr.mxu0 0.0
        %1505 = vmatpush2.msra.mxu0 0.0
        %1506 = vmatprep.subr.mxu0 0.0
        %1507 = vmatpush2.msra.mxu0 0.0
        %1508 = vmatprep.subr.mxu0 0.0
        %1509 = vmatpush2.msra.mxu0 0.0
        %1510 = vmatprep.subr.mxu0 0.0
        %1511 = vmatpush2.msra.mxu0 0.0
        %1512 = vmatprep.subr.mxu0 0.0
        %1513 = vmatpush2.msra.mxu0 0.0
        %1514 = vmatprep.subr.mxu0 0.0
        %1515 = vmatpush2.msra.mxu0 0.0
        %1516 = vmatprep.subr.mxu0 0.0
        %1517 = vmatpush2.msra.mxu0 0.0
        %1518 = vmatprep.subr.mxu0 0.0
        %1519 = vmatpush2.msra.mxu0 0.0
        %1520 = vmatprep.subr.mxu0 0.0
        %1521 = vmatpush2.msra.mxu0 0.0
        %1522 = vmatprep.subr.mxu0 0.0
        %1523 = vmatpush2.msra.mxu0 0.0
        %1524 = vmatprep.subr.mxu0 0.0
        %1525 = vmatpush2.msra.mxu0 0.0
        %1526 = vmatprep.subr.mxu0 0.0
        %1527 = vmatpush2.msra.mxu0 0.0
        %1528 = vmatprep.subr.mxu0 0.0
        %1529 = vmatpush2.msra.mxu0 0.0
        %1530 = vmatprep.subr.mxu0 0.0
        %1531 = vmatpush2.msra.mxu0 0.0
        %1532 = vmatprep.mubr.f32.mxu0 0.0
        %1533 = vmatmul.mubr.f32.gmra.mxu0 %v1466
        %v1534 = vpop.f32.mrf.mxu0
        %v1535 = vadd.f32 0.0, %v1534
        %v1536 = vpop.f32.mrf.mxu0
        %1537 = vdwg.mxu0
        %v1538 = vld [vmem:[%s1074] sm:$0xff]
        %v1539 = vld [vmem:[%s1074 + $0x8] sm:$0xff]
        %v1540 = vld [vmem:[%s1074 + $0x10] sm:$0xff]
        %v1541 = vld [vmem:[%s1074 + $0x18] sm:$0xff]
        %v1542 = vsel %vm1000, %v1458, 0
        %1544 = vmatprep.subr.mxu0 0.0
        %1545 = vmatpush1.msra.mxu0 0.0
        %1546 = vmatprep.subr.mxu0 0.0
        %1547 = vmatpush1.msra.mxu0 0.0
        %1548 = vmatprep.subr.mxu0 0.0
        %1549 = vmatpush1.msra.mxu0 0.0
        %1550 = vmatprep.subr.mxu0 0.0
        %1551 = vmatpush1.msra.mxu0 0.0
        %1552 = vmatprep.subr.mxu0 0.0
        %1553 = vmatpush1.msra.mxu0 0.0
        %1554 = vmatprep.subr.mxu0 0.0
        %1555 = vmatpush1.msra.mxu0 0.0
        %1556 = vmatprep.subr.mxu0 0.0
        %1557 = vmatpush1.msra.mxu0 0.0
        %1558 = vmatprep.subr.mxu0 0.0
        %1559 = vmatpush1.msra.mxu0 0.0
        %1560 = vmatprep.subr.mxu0 0.0
        %1561 = vmatpush1.msra.mxu0 0.0
        %1562 = vmatprep.subr.mxu0 0.0
        %1563 = vmatpush1.msra.mxu0 0.0
        %1564 = vmatprep.subr.mxu0 0.0
        %1565 = vmatpush1.msra.mxu0 0.0
        %1566 = vmatprep.subr.mxu0 0.0
        %1567 = vmatpush1.msra.mxu0 0.0
        %1568 = vmatprep.subr.mxu0 0.0
        %1569 = vmatpush1.msra.mxu0 %v1541
        %1570 = vmatprep.subr.mxu0 0.0
        %1571 = vmatpush1.msra.mxu0 %v1540
        %1572 = vmatprep.subr.mxu0 0.0
        %1573 = vmatpush1.msra.mxu0 %v1539
        %1574 = vmatprep.subr.mxu0 0.0
        %1575 = vmatpush1.msra.mxu0 %v1538
        %1576 = vmatprep.subr.mxu0 0.0
        %1577 = vmatpush2.msra.mxu0 0.0
        %1578 = vmatprep.subr.mxu0 0.0
        %1579 = vmatpush2.msra.mxu0 0.0
        %1580 = vmatprep.subr.mxu0 0.0
        %1581 = vmatpush2.msra.mxu0 0.0
        %1582 = vmatprep.subr.mxu0 0.0
        %1583 = vmatpush2.msra.mxu0 0.0
        %1584 = vmatprep.subr.mxu0 0.0
        %1585 = vmatpush2.msra.mxu0 0.0
        %1586 = vmatprep.subr.mxu0 0.0
        %1587 = vmatpush2.msra.mxu0 0.0
        %1588 = vmatprep.subr.mxu0 0.0
        %1589 = vmatpush2.msra.mxu0 0.0
        %1590 = vmatprep.subr.mxu0 0.0
        %1591 = vmatpush2.msra.mxu0 0.0
        %1592 = vmatprep.subr.mxu0 0.0
        %1593 = vmatpush2.msra.mxu0 0.0
        %1594 = vmatprep.subr.mxu0 0.0
        %1595 = vmatpush2.msra.mxu0 0.0
        %1596 = vmatprep.subr.mxu0 0.0
        %1597 = vmatpush2.msra.mxu0 0.0
        %1598 = vmatprep.subr.mxu0 0.0
        %1599 = vmatpush2.msra.mxu0 0.0
        %1600 = vmatprep.subr.mxu0 0.0
        %1601 = vmatpush2.msra.mxu0 0.0
        %1602 = vmatprep.subr.mxu0 0.0
        %1603 = vmatpush2.msra.mxu0 0.0
        %1604 = vmatprep.subr.mxu0 0.0
        %1605 = vmatpush2.msra.mxu0 0.0
        %1606 = vmatprep.subr.mxu0 0.0
        %1607 = vmatpush2.msra.mxu0 0.0
        %1608 = vmatprep.mubr.f32.mxu0 0.0
        %1609 = vmatmul.mubr.f32.gmra.mxu0 %v1542
        %v1610 = vpop.f32.mrf.mxu0
        %v1611 = vadd.f32 0.0, %v1610
        %v1612 = vpop.f32.mrf.mxu0
        %1613 = vdwg.mxu0
        %v1614 = vld [vmem:[%s730] sm:$0x3]
        %v1615 = vadd.f32 %v1614, %v1535
        %v1616 = vxor.u32 %v1615, 2147483648
        %v1617 = vmul.f32 %v1616, 1.442695
        %v1618 = vpow.pop %v1617
        %v1619 = vadd.f32 %v1618, 1.0
        %v1620 = vrcp.pop %v1619
        %v1621 = vmul.f32 1.0, %v1620
        %v1622 = vadd.f32 %v1535, %v1166
        %1624 = vrot.lane.b32.xlu0 %v1622, 64
        %v1625 = vpop.permute.xlu0 %1624
        %v1627 = vmul.f32 %v1621, %v1625
        %1629 = vrot.lane.b32.xlu0 %v1627, 64
        %v1630 = vpop.permute.xlu0 %1629
        %v1632 = vadd.f32 %v1614, %v1630
        %v1633 = vtanh.pop %v1632
        %v1634 = vsub.f32 1.0, %v1621
        %1636 = vrot.lane.b32.xlu0 %v1633, 96
        %v1637 = vpop.permute.xlu0 %1636
        %v1639 = vmul.f32 %v1634, %v1637
        %v1640 = vmul.f32 %v1621, %v1421
        %v1641 = vadd.f32 %v1639, %v1640
        %v1642 = vld [vmem:[%s816] sm:$0x3]
        %v1643 = vadd.f32 %v1642, %v1611
        %v1644 = vxor.u32 %v1643, 2147483648
        %v1645 = vmul.f32 %v1644, 1.442695
        %v1646 = vpow.pop %v1645
        %v1647 = vadd.f32 %v1646, 1.0
        %v1648 = vrcp.pop %v1647
        %v1649 = vmul.f32 1.0, %v1648
        %v1650 = vadd.f32 %v1611, %v1205
        %1652 = vrot.lane.b32.xlu0 %v1650, 64
        %v1653 = vpop.permute.xlu0 %1652
        %v1655 = vmul.f32 %v1649, %v1653
        %1657 = vrot.lane.b32.xlu0 %v1655, 64
        %v1658 = vpop.permute.xlu0 %1657
        %v1660 = vadd.f32 %v1642, %v1658
        %v1661 = vtanh.pop %v1660
        %v1662 = vsub.f32 1.0, %v1649
        %1664 = vrot.lane.b32.xlu0 %v1661, 96
        %v1665 = vpop.permute.xlu0 %1664
        %v1667 = vmul.f32 %v1662, %v1665
        %v1668 = vmul.f32 %v1649, %v1449
        %v1669 = vadd.f32 %v1667, %v1668
        %1671 = vrot.lane.b32.xlu0 %v1641, 96
        %v1672 = vpop.permute.xlu0 %1671
        %s1674 = scalar_lea.vmem %s290, 4 [#allocation5]
        %1675 = vst.msk [vmem:[%s1674] sm:$0x3] %vm1234, %v1672
        %1677 = vrot.lane.b32.xlu0 %v1669, 96
        %v1678 = vpop.permute.xlu0 %1677
        %s1680 = scalar_lea.vmem %s290, 12 [#allocation5]
        %1681 = vst.msk [vmem:[%s1680] sm:$0x3] %vm1234, %v1678
        %v1682 = vld [vmem:[%s2] sm:$0xff]
        %v1683 = vld [vmem:[%s2 + $0x8] sm:$0xff]
        %v1684 = vld [vmem:[%s2 + $0x10] sm:$0xff]
        %v1685 = vld [vmem:[%s2 + $0x18] sm:$0xff]
        %v1686 = vsel %vm1000, %v1672, 0
        %1688 = vmatprep.subr.mxu0 0.0
        %1689 = vmatpush1.msra.mxu0 0.0
        %1690 = vmatprep.subr.mxu0 0.0
        %1691 = vmatpush1.msra.mxu0 0.0
        %1692 = vmatprep.subr.mxu0 0.0
        %1693 = vmatpush1.msra.mxu0 0.0
        %1694 = vmatprep.subr.mxu0 0.0
        %1695 = vmatpush1.msra.mxu0 0.0
        %1696 = vmatprep.subr.mxu0 0.0
        %1697 = vmatpush1.msra.mxu0 0.0
        %1698 = vmatprep.subr.mxu0 0.0
        %1699 = vmatpush1.msra.mxu0 0.0
        %1700 = vmatprep.subr.mxu0 0.0
        %1701 = vmatpush1.msra.mxu0 0.0
        %1702 = vmatprep.subr.mxu0 0.0
        %1703 = vmatpush1.msra.mxu0 0.0
        %1704 = vmatprep.subr.mxu0 0.0
        %1705 = vmatpush1.msra.mxu0 0.0
        %1706 = vmatprep.subr.mxu0 0.0
        %1707 = vmatpush1.msra.mxu0 0.0
        %1708 = vmatprep.subr.mxu0 0.0
        %1709 = vmatpush1.msra.mxu0 0.0
        %1710 = vmatprep.subr.mxu0 0.0
        %1711 = vmatpush1.msra.mxu0 0.0
        %1712 = vmatprep.subr.mxu0 0.0
        %1713 = vmatpush1.msra.mxu0 %v1685
        %1714 = vmatprep.subr.mxu0 0.0
        %1715 = vmatpush1.msra.mxu0 %v1684
        %1716 = vmatprep.subr.mxu0 0.0
        %1717 = vmatpush1.msra.mxu0 %v1683
        %1718 = vmatprep.subr.mxu0 0.0
        %1719 = vmatpush1.msra.mxu0 %v1682
        %1720 = vmatprep.subr.mxu0 0.0
        %1721 = vmatpush2.msra.mxu0 0.0
        %1722 = vmatprep.subr.mxu0 0.0
        %1723 = vmatpush2.msra.mxu0 0.0
        %1724 = vmatprep.subr.mxu0 0.0
        %1725 = vmatpush2.msra.mxu0 0.0
        %1726 = vmatprep.subr.mxu0 0.0
        %1727 = vmatpush2.msra.mxu0 0.0
        %1728 = vmatprep.subr.mxu0 0.0
        %1729 = vmatpush2.msra.mxu0 0.0
        %1730 = vmatprep.subr.mxu0 0.0
        %1731 = vmatpush2.msra.mxu0 0.0
        %1732 = vmatprep.subr.mxu0 0.0
        %1733 = vmatpush2.msra.mxu0 0.0
        %1734 = vmatprep.subr.mxu0 0.0
        %1735 = vmatpush2.msra.mxu0 0.0
        %1736 = vmatprep.subr.mxu0 0.0
        %1737 = vmatpush2.msra.mxu0 0.0
        %1738 = vmatprep.subr.mxu0 0.0
        %1739 = vmatpush2.msra.mxu0 0.0
        %1740 = vmatprep.subr.mxu0 0.0
        %1741 = vmatpush2.msra.mxu0 0.0
        %1742 = vmatprep.subr.mxu0 0.0
        %1743 = vmatpush2.msra.mxu0 0.0
        %1744 = vmatprep.subr.mxu0 0.0
        %1745 = vmatpush2.msra.mxu0 0.0
        %1746 = vmatprep.subr.mxu0 0.0
        %1747 = vmatpush2.msra.mxu0 0.0
        %1748 = vmatprep.subr.mxu0 0.0
        %1749 = vmatpush2.msra.mxu0 0.0
        %1750 = vmatprep.subr.mxu0 0.0
        %1751 = vmatpush2.msra.mxu0 0.0
        %1752 = vmatprep.mubr.f32.mxu0 0.0
        %1753 = vmatmul.mubr.f32.gmra.mxu0 %v1686
        %v1754 = vpop.f32.mrf.mxu0
        %v1755 = vadd.f32 0.0, %v1754
        %v1756 = vpop.f32.mrf.mxu0
        %1757 = vdwg.mxu0
        %v1758 = vld [vmem:[%s1074] sm:$0xff]
        %v1759 = vld [vmem:[%s1074 + $0x8] sm:$0xff]
        %v1760 = vld [vmem:[%s1074 + $0x10] sm:$0xff]
        %v1761 = vld [vmem:[%s1074 + $0x18] sm:$0xff]
        %v1762 = vsel %vm1000, %v1678, 0
        %1764 = vmatprep.subr.mxu0 0.0
        %1765 = vmatpush1.msra.mxu0 0.0
        %1766 = vmatprep.subr.mxu0 0.0
        %1767 = vmatpush1.msra.mxu0 0.0
        %1768 = vmatprep.subr.mxu0 0.0
        %1769 = vmatpush1.msra.mxu0 0.0
        %1770 = vmatprep.subr.mxu0 0.0
        %1771 = vmatpush1.msra.mxu0 0.0
        %1772 = vmatprep.subr.mxu0 0.0
        %1773 = vmatpush1.msra.mxu0 0.0
        %1774 = vmatprep.subr.mxu0 0.0
        %1775 = vmatpush1.msra.mxu0 0.0
        %1776 = vmatprep.subr.mxu0 0.0
        %1777 = vmatpush1.msra.mxu0 0.0
        %1778 = vmatprep.subr.mxu0 0.0
        %1779 = vmatpush1.msra.mxu0 0.0
        %1780 = vmatprep.subr.mxu0 0.0
        %1781 = vmatpush1.msra.mxu0 0.0
        %1782 = vmatprep.subr.mxu0 0.0
        %1783 = vmatpush1.msra.mxu0 0.0
        %1784 = vmatprep.subr.mxu0 0.0
        %1785 = vmatpush1.msra.mxu0 0.0
        %1786 = vmatprep.subr.mxu0 0.0
        %1787 = vmatpush1.msra.mxu0 0.0
        %1788 = vmatprep.subr.mxu0 0.0
        %1789 = vmatpush1.msra.mxu0 %v1761
        %1790 = vmatprep.subr.mxu0 0.0
        %1791 = vmatpush1.msra.mxu0 %v1760
        %1792 = vmatprep.subr.mxu0 0.0
        %1793 = vmatpush1.msra.mxu0 %v1759
        %1794 = vmatprep.subr.mxu0 0.0
        %1795 = vmatpush1.msra.mxu0 %v1758
        %1796 = vmatprep.subr.mxu0 0.0
        %1797 = vmatpush2.msra.mxu0 0.0
        %1798 = vmatprep.subr.mxu0 0.0
        %1799 = vmatpush2.msra.mxu0 0.0
        %1800 = vmatprep.subr.mxu0 0.0
        %1801 = vmatpush2.msra.mxu0 0.0
        %1802 = vmatprep.subr.mxu0 0.0
        %1803 = vmatpush2.msra.mxu0 0.0
        %1804 = vmatprep.subr.mxu0 0.0
        %1805 = vmatpush2.msra.mxu0 0.0
        %1806 = vmatprep.subr.mxu0 0.0
        %1807 = vmatpush2.msra.mxu0 0.0
        %1808 = vmatprep.subr.mxu0 0.0
        %1809 = vmatpush2.msra.mxu0 0.0
        %1810 = vmatprep.subr.mxu0 0.0
        %1811 = vmatpush2.msra.mxu0 0.0
        %1812 = vmatprep.subr.mxu0 0.0
        %1813 = vmatpush2.msra.mxu0 0.0
        %1814 = vmatprep.subr.mxu0 0.0
        %1815 = vmatpush2.msra.mxu0 0.0
        %1816 = vmatprep.subr.mxu0 0.0
        %1817 = vmatpush2.msra.mxu0 0.0
        %1818 = vmatprep.subr.mxu0 0.0
        %1819 = vmatpush2.msra.mxu0 0.0
        %1820 = vmatprep.subr.mxu0 0.0
        %1821 = vmatpush2.msra.mxu0 0.0
        %1822 = vmatprep.subr.mxu0 0.0
        %1823 = vmatpush2.msra.mxu0 0.0
        %1824 = vmatprep.subr.mxu0 0.0
        %1825 = vmatpush2.msra.mxu0 0.0
        %1826 = vmatprep.subr.mxu0 0.0
        %1827 = vmatpush2.msra.mxu0 0.0
        %1828 = vmatprep.mubr.f32.mxu0 0.0
        %1829 = vmatmul.mubr.f32.gmra.mxu0 %v1762
        %v1830 = vpop.f32.mrf.mxu0
        %v1831 = vadd.f32 0.0, %v1830
        %v1832 = vpop.f32.mrf.mxu0
        %1833 = vdwg.mxu0
        %v1834 = vld [vmem:[%s902] sm:$0x3]
        %v1835 = vadd.f32 %v1834, %v1755
        %v1836 = vxor.u32 %v1835, 2147483648
        %v1837 = vmul.f32 %v1836, 1.442695
        %v1838 = vpow.pop %v1837
        %v1839 = vadd.f32 %v1838, 1.0
        %v1840 = vrcp.pop %v1839
        %v1841 = vmul.f32 1.0, %v1840
        %v1842 = vadd.f32 %v1755, %v1166
        %1844 = vrot.lane.b32.xlu0 %v1842, 64
        %v1845 = vpop.permute.xlu0 %1844
        %v1847 = vmul.f32 %v1841, %v1845
        %1849 = vrot.lane.b32.xlu0 %v1847, 64
        %v1850 = vpop.permute.xlu0 %1849
        %v1852 = vadd.f32 %v1834, %v1850
        %v1853 = vtanh.pop %v1852
        %v1854 = vsub.f32 1.0, %v1841
        %1856 = vrot.lane.b32.xlu0 %v1853, 96
        %v1857 = vpop.permute.xlu0 %1856
        %v1859 = vmul.f32 %v1854, %v1857
        %v1860 = vmul.f32 %v1841, %v1641
        %v1861 = vadd.f32 %v1859, %v1860
        %v1862 = vld [vmem:[%s988] sm:$0x3]
        %v1863 = vadd.f32 %v1862, %v1831
        %v1864 = vxor.u32 %v1863, 2147483648
        %v1865 = vmul.f32 %v1864, 1.442695
        %v1866 = vpow.pop %v1865
        %v1867 = vadd.f32 %v1866, 1.0
        %v1868 = vrcp.pop %v1867
        %v1869 = vmul.f32 1.0, %v1868
        %v1870 = vadd.f32 %v1831, %v1205
        %1872 = vrot.lane.b32.xlu0 %v1870, 64
        %v1873 = vpop.permute.xlu0 %1872
        %v1875 = vmul.f32 %v1869, %v1873
        %1877 = vrot.lane.b32.xlu0 %v1875, 64
        %v1878 = vpop.permute.xlu0 %1877
        %v1880 = vadd.f32 %v1862, %v1878
        %v1881 = vtanh.pop %v1880
        %v1882 = vsub.f32 1.0, %v1869
        %1884 = vrot.lane.b32.xlu0 %v1881, 96
        %v1885 = vpop.permute.xlu0 %1884
        %v1887 = vmul.f32 %v1882, %v1885
        %v1888 = vmul.f32 %v1869, %v1669
        %v1889 = vadd.f32 %v1887, %v1888
        %1891 = vrot.lane.b32.xlu0 %v1861, 96
        %v1892 = vpop.permute.xlu0 %1891
        %s1894 = scalar_lea.vmem %s290, 6 [#allocation5]
        %1895 = vst.msk [vmem:[%s1894] sm:$0x3] %vm1234, %v1892
        %1897 = vrot.lane.b32.xlu0 %v1889, 96
        %v1898 = vpop.permute.xlu0 %1897
        %s1900 = scalar_lea.vmem %s290, 14 [#allocation5]
        %1901 = vst.msk [vmem:[%s1900] sm:$0x3] %vm1234, %v1898
        %1902 = vst.msk [vmem:[#allocation2] sm:$0x3] %vm1234, %v1892
        %1903 = vst.msk [vmem:[%s994] sm:$0x3] %vm1234, %v1898
        %s1904 = sand.u32 %s134, 1
        %s1905 = sand.u32 %s134, 1
        %s1906 = smul.addr %s1905, 16
        %s1907 = scalar_lea.vmem [#allocation5], %s1906
        // Predicated region
        $region86: #{birnn_wrapper_forward.2} parent=76 // pred_check
          %p1908 = pneg %p144
        $region87: #{birnn_wrapper_forward.2} parent=76 // pred_check_branch
          %1910 = sbr.rel (%p1908) target = $region89
        $region88: #{birnn_wrapper_forward.2} parent=76 // pred_region
          %s1911 = smul.u32 4, %s16
          %s1912 = smul.addr %s1911, 2
          %s1913 = scalar_lea.vmem %s5, %s1912
          // Predicated region
          $region90: #{birnn_wrapper_forward.2} parent=88 // pred_check
            _
          $region91: #{birnn_wrapper_forward.2} parent=88 // pred_check_branch
            %1915 = sbr.rel (0) target = $region93
          $region92: #{birnn_wrapper_forward.2} parent=88 // pred_region
            // Predicated region
            $region94: #{birnn_wrapper_forward.2} parent=92 // pred_check
              _
            $region95: #{birnn_wrapper_forward.2} parent=92 // pred_check_branch
              %1917 = sbr.rel target = $region97
            $region96: #{birnn_wrapper_forward.2} parent=92 // pred_region
              // Predicated region
              $region109: #{birnn_wrapper_forward.2} parent=96 // pred_check
                _
              $region110: #{birnn_wrapper_forward.2} parent=96 // pred_check_branch
                %1947 = sbr.rel (0) target = $region112
              $region111: #{birnn_wrapper_forward.2} parent=96 // pred_region
                loop: start=0, step=1, limit=1
                $region113: #{birnn_wrapper_forward.2} parent=111 // loop_pre_header
                  _
                $region114: #{birnn_wrapper_forward.2} parent=111 // loop_header
                  %s1949 = sphi 0, %s1953
                  %p1950 = scmp.ge.s32.totalorder %s1949, 1
                  %s1954 = sphi %s1907, %s1907
                  %s1955 = sphi %s1913, %s1913
                $region115: #{birnn_wrapper_forward.2} parent=111 // loop_header_branch
                  %1952 = sbr.rel (%p1950) target = $region119
                $region116: #{birnn_wrapper_forward.2} parent=111 // loop_body
                  _
                $region117: #{birnn_wrapper_forward.2} parent=111 // loop_footer
                  %s1953 = sadd.s32 1, %s1949
                $region118: #{birnn_wrapper_forward.2} parent=111 // loop_footer_branch
                  %1948 = sbr.rel target = $region114
                $region119: #{birnn_wrapper_forward.2} parent=111 // loop_exit
                  _
                %s1957 = ssub.s32 4, 1
                loop: start=0, step=1, limit=1
                $region120: #{birnn_wrapper_forward.2} parent=111 // loop_pre_header
                  _
                $region121: #{birnn_wrapper_forward.2} parent=111 // loop_header
                  %s1959 = sphi 0, %s1963
                  %p1960 = scmp.ge.s32.totalorder %s1959, 1
                  %s1964 = sphi %s1907, %s1907
                  %s1965 = sphi %s1913, %s1913
                $region122: #{birnn_wrapper_forward.2} parent=111 // loop_header_branch
                  %1962 = sbr.rel (%p1960) target = $region126
                $region123: #{birnn_wrapper_forward.2} parent=111 // loop_body
                  %v1966 = vld [vmem:[%s1964] sm:%s1957]
                  %1967 = vst [vmem:[%s1965] sm:%s1957] %v1966
                  %v1968 = vld [vmem:[%s1964 + $0x2] sm:%s1957]
                  %1969 = vst [vmem:[%s1965 + $0x2] sm:%s1957] %v1968
                  %v1970 = vld [vmem:[%s1964 + $0x4] sm:%s1957]
                  %1971 = vst [vmem:[%s1965 + $0x4] sm:%s1957] %v1970
                  %v1972 = vld [vmem:[%s1964 + $0x6] sm:%s1957]
                  %1973 = vst [vmem:[%s1965 + $0x6] sm:%s1957] %v1972
                  %v1974 = vld [vmem:[%s1964 + $0x8] sm:%s1957]
                  %1975 = vst [vmem:[%s1965 + $0x10] sm:%s1957] %v1974
                  %v1976 = vld [vmem:[%s1964 + $0xa] sm:%s1957]
                  %1977 = vst [vmem:[%s1965 + $0x12] sm:%s1957] %v1976
                  %v1978 = vld [vmem:[%s1964 + $0xc] sm:%s1957]
                  %1979 = vst [vmem:[%s1965 + $0x14] sm:%s1957] %v1978
                  %v1980 = vld [vmem:[%s1964 + $0xe] sm:%s1957]
                  %1981 = vst [vmem:[%s1965 + $0x16] sm:%s1957] %v1980
                $region124: #{birnn_wrapper_forward.2} parent=111 // loop_footer
                  %s1963 = sadd.s32 1, %s1959
                $region125: #{birnn_wrapper_forward.2} parent=111 // loop_footer_branch
                  %1958 = sbr.rel target = $region121
                $region126: #{birnn_wrapper_forward.2} parent=111 // loop_exit
                  _
              $region112: #{birnn_wrapper_forward.2} parent=96 // pred_fallthru
                _
            $region97: #{birnn_wrapper_forward.2} parent=92 // pred_fallthru
              _
            // Predicated region
            $region98: #{birnn_wrapper_forward.2} parent=92 // pred_check
              _
            $region99: #{birnn_wrapper_forward.2} parent=92 // pred_check_branch
              %1919 = sbr.rel (0) target = $region101
            $region100: #{birnn_wrapper_forward.2} parent=92 // pred_region
              %s1921 = ssub.s32 4, 1
              loop: start=0, step=1, limit=1
              $region102: #{birnn_wrapper_forward.2} parent=100 // loop_pre_header
                _
              $region103: #{birnn_wrapper_forward.2} parent=100 // loop_header
                %s1923 = sphi 0, %s1927
                %p1924 = scmp.ge.s32.totalorder %s1923, 1
                %s1928 = sphi %s1907, %s1907
                %s1929 = sphi %s1913, %s1913
              $region104: #{birnn_wrapper_forward.2} parent=100 // loop_header_branch
                %1926 = sbr.rel (%p1924) target = $region108
              $region105: #{birnn_wrapper_forward.2} parent=100 // loop_body
                %v1930 = vld [vmem:[%s1928] sm:%s1921]
                %1931 = vst [vmem:[%s1929] sm:%s1921] %v1930
                %v1932 = vld [vmem:[%s1928 + $0x2] sm:%s1921]
                %1933 = vst [vmem:[%s1929 + $0x2] sm:%s1921] %v1932
                %v1934 = vld [vmem:[%s1928 + $0x4] sm:%s1921]
                %1935 = vst [vmem:[%s1929 + $0x4] sm:%s1921] %v1934
                %v1936 = vld [vmem:[%s1928 + $0x6] sm:%s1921]
                %1937 = vst [vmem:[%s1929 + $0x6] sm:%s1921] %v1936
                %v1938 = vld [vmem:[%s1928 + $0x8] sm:%s1921]
                %1939 = vst [vmem:[%s1929 + $0x10] sm:%s1921] %v1938
                %v1940 = vld [vmem:[%s1928 + $0xa] sm:%s1921]
                %1941 = vst [vmem:[%s1929 + $0x12] sm:%s1921] %v1940
                %v1942 = vld [vmem:[%s1928 + $0xc] sm:%s1921]
                %1943 = vst [vmem:[%s1929 + $0x14] sm:%s1921] %v1942
                %v1944 = vld [vmem:[%s1928 + $0xe] sm:%s1921]
                %1945 = vst [vmem:[%s1929 + $0x16] sm:%s1921] %v1944
              $region106: #{birnn_wrapper_forward.2} parent=100 // loop_footer
                %s1927 = sadd.s32 1, %s1923
              $region107: #{birnn_wrapper_forward.2} parent=100 // loop_footer_branch
                %1922 = sbr.rel target = $region103
              $region108: #{birnn_wrapper_forward.2} parent=100 // loop_exit
                _
            $region101: #{birnn_wrapper_forward.2} parent=92 // pred_fallthru
              _
          $region93: #{birnn_wrapper_forward.2} parent=88 // pred_fallthru
            _
          %1982 = vnop
        $region89: #{birnn_wrapper_forward.2} parent=76 // pred_fallthru
          _
      $region77: #{birnn_wrapper_forward.2} parent=5 // pred_fallthru
        _
      %p1983 = scmp.le.s32.totalorder 2, %s11
      // Predicated region
      $region127: #{birnn_wrapper_forward.2} parent=5 // pred_check
        %p1984 = pneg %p1983
      $region128: #{birnn_wrapper_forward.2} parent=5 // pred_check_branch
        %1986 = sbr.rel (%p1984) target = $region130
      $region129: #{birnn_wrapper_forward.2} parent=5 // pred_region
        %s1987 = ssub.s32 %s11, 2
        // Predicated region
        $region131: #{birnn_wrapper_forward.2} parent=129 // pred_check
          %p1988 = pneg %p150
        $region132: #{birnn_wrapper_forward.2} parent=129 // pred_check_branch
          %1990 = sbr.rel (%p1988) target = $region134
        $region133: #{birnn_wrapper_forward.2} parent=129 // pred_region
          %s1991 = sand.u32 %s135, 1
          %s1992 = sand.u32 %s135, 1
          %s1993 = smul.addr %s1992, 16
          %s1994 = scalar_lea.vmem [#allocation5], %s1993
        $region134: #{birnn_wrapper_forward.2} parent=129 // pred_fallthru
          _
      $region130: #{birnn_wrapper_forward.2} parent=5 // pred_fallthru
        _
    $region6: #{birnn_wrapper_forward.2} parent=1 // loop_footer
      %s15 = sadd.s32 1, %s11
    $region7: #{birnn_wrapper_forward.2} parent=1 // loop_footer_branch
      %10 = sbr.rel target = $region3
    $region8: #{birnn_wrapper_forward.2} parent=1 // loop_exit
      _

// kernel: birnn_wrapper_forward.3
$region0: #{birnn_wrapper_forward.3}
  #allocation0 [shape = 'u32[]', space=smem, size = 0x4, offset = 0x4, fixed_abs, tag = 'smem constant byte address 0x4 - core index']
  #allocation1 [shape = 'u32[144,128]{1,0:T(1,128)}', space=vmem, size = 0x12000, scoped, tag = 'internal scratch']
  #allocation2 [shape = 'f32[2,2,32]{2,1,0:T(2,128)}', space=vmem, size = 0x800, scoped, tag = 'scratch operand']
  #allocation3 [shape = 'f32[2,4,2,96]{3,2,1,0:T(2,128)}', space=vmem, size = 0x2000, scoped, tag = 'scratch operand']
  %s0 = inlined_call_operand.vmem [shape: f32[2,8,2,32], index: 0, kind: input, shape index: {}]
  %s1 = inlined_call_operand.vmem [shape: f32[2,32,96], index: 1, kind: input, shape index: {}]
  %s2 = inlined_call_operand.vmem [shape: f32[2,32,96], index: 2, kind: input, shape index: {}]
  %s3 = inlined_call_operand.vmem [shape: f32[2,1,96], index: 3, kind: input, shape index: {}]
  %s4 = inlined_call_operand.vmem [shape: f32[2,1,32], index: 4, kind: input, shape index: {}]
  %s5 = inlined_call_operand.vmem [shape: f32[2,8,2,32], index: 5, kind: output, shape index: {}]
  %s6 = sld [smem:[#allocation0]]
  $region135: #{birnn_wrapper_forward.3} parent=0
    _
  %s8 = ssub.s32 1, %s6
  %s9 = scalar_select 0, %s8, %s6
  $region1: #{birnn_wrapper_forward.3} parent=0
    #allocation4 [shape = 'u8[16384]{0}', space=vmem, size = 0x4000, scoped, tag = 'input window, operand 0']
    #allocation5 [shape = 'u8[16384]{0}', space=vmem, size = 0x4000, scoped, tag = 'output window, operand 0']
    loop: start=0, step=1, limit=4
    $region2: #{birnn_wrapper_forward.3} parent=1 // loop_pre_header
      _
    $region3: #{birnn_wrapper_forward.3} parent=1 // loop_header
      %s11 = sphi 0, %s15
      %p12 = scmp.ge.s32.totalorder %s11, 4
      %s21 = sphi 0, %s23
      %s24 = sphi 0, %s21
      %s25 = sphi 0, %s24
      %s41 = sphi 0, %s25
      %s45 = sphi 0, %s45
      %s47 = sphi 0, %s45
      %s48 = sphi 0, %s47
      %s62 = sphi 0, %s48
      %s66 = sphi 0, %s66
      %s68 = sphi 0, %s66
      %s69 = sphi 0, %s68
      %s83 = sphi 0, %s69
      %s87 = sphi 0, %s87
      %s89 = sphi 0, %s87
      %s90 = sphi 0, %s89
      %s104 = sphi 0, %s90
      %s108 = sphi 0, %s108
      %s110 = sphi 0, %s108
      %s111 = sphi 0, %s110
      %s125 = sphi 0, %s111
      %s131 = sphi 0, %s133
      %s134 = sphi 0, %s131
      %s135 = sphi 0, %s134
      %s151 = sphi 0, %s135
    $region4: #{birnn_wrapper_forward.3} parent=1 // loop_header_branch
      %14 = sbr.rel (%p12) target = $region8
    $region5: #{birnn_wrapper_forward.3} parent=1 // loop_body
      %s16 = ssub.s32 %s11, 1
      %s17 = ssub.s32 %s11, 2
      %s18 = sadd.s32 %s11, 1
      %s19 = ssub.s32 %s11, %s18
      %p20 = scmp.eq.s32.totalorder %s19, 0
      %s22 = sadd.s32 %s21, 1
      %s23 = scalar_select %p20, %s21, %s22
      %p26 = pneg %p20
      %p27 = scmp.eq.s32.totalorder %s11, 1
      %p28 = por %p26, %p27
      %p29 = scmp.ne.s32.totalorder %s21, %s24
      %p30 = scmp.eq.s32.totalorder %s11, 0
      %p31 = por %p29, %p30
      %p32 = scmp.ne.s32.totalorder %s21, %s24
      %p33 = scmp.eq.s32.totalorder %s16, 1
      %p34 = por %p32, %p33
      %p35 = scmp.ne.s32.totalorder %s24, %s25
      %p36 = scmp.eq.s32.totalorder %s16, 0
      %p37 = por %p35, %p36
      %p38 = scmp.ne.s32.totalorder %s24, %s25
      %p39 = scmp.eq.s32.totalorder %s17, 1
      %p40 = por %p38, %p39
      %p42 = scmp.ne.s32.totalorder %s25, %s41
      %p43 = scmp.eq.s32.totalorder %s17, 0
      %p44 = por %p42, %p43
      %s46 = sadd.s32 %s45, 1
      %p49 = scmp.eq.s32.totalorder %s11, 1
      %p50 = scmp.ne.s32.totalorder %s45, %s47
      %p51 = scmp.eq.s32.totalorder %s11, 0
      %p52 = por %p50, %p51
      %p53 = scmp.ne.s32.totalorder %s45, %s47
      %p54 = scmp.eq.s32.totalorder %s16, 1
      %p55 = por %p53, %p54
      %p56 = scmp.ne.s32.totalorder %s47, %s48
      %p57 = scmp.eq.s32.totalorder %s16, 0
      %p58 = por %p56, %p57
      %p59 = scmp.ne.s32.totalorder %s47, %s48
      %p60 = scmp.eq.s32.totalorder %s17, 1
      %p61 = por %p59, %p60
      %p63 = scmp.ne.s32.totalorder %s48, %s62
      %p64 = scmp.eq.s32.totalorder %s17, 0
      %p65 = por %p63, %p64
      %s67 = sadd.s32 %s66, 1
      %p70 = scmp.eq.s32.totalorder %s11, 1
      %p71 = scmp.ne.s32.totalorder %s66, %s68
      %p72 = scmp.eq.s32.totalorder %s11, 0
      %p73 = por %p71, %p72
      %p74 = scmp.ne.s32.totalorder %s66, %s68
      %p75 = scmp.eq.s32.totalorder %s16, 1
      %p76 = por %p74, %p75
      %p77 = scmp.ne.s32.totalorder %s68, %s69
      %p78 = scmp.eq.s32.totalorder %s16, 0
      %p79 = por %p77, %p78
      %p80 = scmp.ne.s32.totalorder %s68, %s69
      %p81 = scmp.eq.s32.totalorder %s17, 1
      %p82 = por %p80, %p81
      %p84 = scmp.ne.s32.totalorder %s69, %s83
      %p85 = scmp.eq.s32.totalorder %s17, 0
      %p86 = por %p84, %p85
      %s88 = sadd.s32 %s87, 1
      %p91 = scmp.eq.s32.totalorder %s11, 1
      %p92 = scmp.ne.s32.totalorder %s87, %s89
      %p93 = scmp.eq.s32.totalorder %s11, 0
      %p94 = por %p92, %p93
      %p95 = scmp.ne.s32.totalorder %s87, %s89
      %p96 = scmp.eq.s32.totalorder %s16, 1
      %p97 = por %p95, %p96
      %p98 = scmp.ne.s32.totalorder %s89, %s90
      %p99 = scmp.eq.s32.totalorder %s16, 0
      %p100 = por %p98, %p99
      %p101 = scmp.ne.s32.totalorder %s89, %s90
      %p102 = scmp.eq.s32.totalorder %s17, 1
      %p103 = por %p101, %p102
      %p105 = scmp.ne.s32.totalorder %s90, %s104
      %p106 = scmp.eq.s32.totalorder %s17, 0
      %p107 = por %p105, %p106
      %s109 = sadd.s32 %s108, 1
      %p112 = scmp.eq.s32.totalorder %s11, 1
      %p113 = scmp.ne.s32.totalorder %s108, %s110
      %p114 = scmp.eq.s32.totalorder %s11, 0
      %p115 = por %p113, %p114
      %p116 = scmp.ne.s32.totalorder %s108, %s110
      %p117 = scmp.eq.s32.totalorder %s16, 1
      %p118 = por %p116, %p117
      %p119 = scmp.ne.s32.totalorder %s110, %s111
      %p120 = scmp.eq.s32.totalorder %s16, 0
      %p121 = por %p119, %p120
      %p122 = scmp.ne.s32.totalorder %s110, %s111
      %p123 = scmp.eq.s32.totalorder %s17, 1
      %p124 = por %p122, %p123
      %p126 = scmp.ne.s32.totalorder %s111, %s125
      %p127 = scmp.eq.s32.totalorder %s17, 0
      %p128 = por %p126, %p127
      %s129 = ssub.s32 %s11, %s18
      %p130 = scmp.eq.s32.totalorder %s129, 0
      %s132 = sadd.s32 %s131, 1
      %s133 = scalar_select %p130, %s131, %s132
      %p136 = pneg %p130
      %p137 = scmp.eq.s32.totalorder %s11, 1
      %p138 = por %p136, %p137
      %p139 = scmp.ne.s32.totalorder %s131, %s134
      %p140 = scmp.eq.s32.totalorder %s11, 0
      %p141 = por %p139, %p140
      %p142 = scmp.ne.s32.totalorder %s131, %s134
      %p143 = scmp.eq.s32.totalorder %s16, 1
      %p144 = por %p142, %p143
      %p145 = scmp.ne.s32.totalorder %s134, %s135
      %p146 = scmp.eq.s32.totalorder %s16, 0
      %p147 = por %p145, %p146
      %p148 = scmp.ne.s32.totalorder %s134, %s135
      %p149 = scmp.eq.s32.totalorder %s17, 1
      %p150 = por %p148, %p149
      %p152 = scmp.ne.s32.totalorder %s135, %s151
      %p153 = scmp.eq.s32.totalorder %s17, 0
      %p154 = por %p152, %p153
      %p155 = scmp.le.s32.totalorder 1, %s11
      %p156 = scmp.lt.s32.totalorder %s11, 3
      %p157 = pnand %p155, %p156
      %p158 = pneg %p157
      // Predicated region
      $region9: #{birnn_wrapper_forward.3} parent=5 // pred_check
        _
      $region10: #{birnn_wrapper_forward.3} parent=5 // pred_check_branch
        %160 = sbr.rel (%p157) target = $region12
      $region11: #{birnn_wrapper_forward.3} parent=5 // pred_region
        %s161 = ssub.s32 %s11, 1
        // Predicated region
        $region13: #{birnn_wrapper_forward.3} parent=11 // pred_check
          %p162 = pneg %p58
        $region14: #{birnn_wrapper_forward.3} parent=11 // pred_check_branch
          %164 = sbr.rel (%p162) target = $region16
        $region15: #{birnn_wrapper_forward.3} parent=11 // pred_region
          _
        $region16: #{birnn_wrapper_forward.3} parent=11 // pred_fallthru
          _
        // Predicated region
        $region17: #{birnn_wrapper_forward.3} parent=11 // pred_check
          %p165 = pneg %p79
        $region18: #{birnn_wrapper_forward.3} parent=11 // pred_check_branch
          %167 = sbr.rel (%p165) target = $region20
        $region19: #{birnn_wrapper_forward.3} parent=11 // pred_region
          _
        $region20: #{birnn_wrapper_forward.3} parent=11 // pred_fallthru
          _
        // Predicated region
        $region21: #{birnn_wrapper_forward.3} parent=11 // pred_check
          %p168 = pneg %p100
        $region22: #{birnn_wrapper_forward.3} parent=11 // pred_check_branch
          %170 = sbr.rel (%p168) target = $region24
        $region23: #{birnn_wrapper_forward.3} parent=11 // pred_region
          _
        $region24: #{birnn_wrapper_forward.3} parent=11 // pred_fallthru
          _
        // Predicated region
        $region25: #{birnn_wrapper_forward.3} parent=11 // pred_check
          %p171 = pneg %p121
        $region26: #{birnn_wrapper_forward.3} parent=11 // pred_check_branch
          %173 = sbr.rel (%p171) target = $region28
        $region27: #{birnn_wrapper_forward.3} parent=11 // pred_region
          _
        $region28: #{birnn_wrapper_forward.3} parent=11 // pred_fallthru
          _
      $region12: #{birnn_wrapper_forward.3} parent=5 // pred_fallthru
        _
      %p174 = scmp.lt.s32.totalorder %s11, 2
      // Predicated region
      $region29: #{birnn_wrapper_forward.3} parent=5 // pred_check
        %p175 = pneg %p174
      $region30: #{birnn_wrapper_forward.3} parent=5 // pred_check_branch
        %177 = sbr.rel (%p175) target = $region32
      $region31: #{birnn_wrapper_forward.3} parent=5 // pred_region
        // Predicated region
        $region33: #{birnn_wrapper_forward.3} parent=31 // pred_check
          %p178 = pneg %p31
        $region34: #{birnn_wrapper_forward.3} parent=31 // pred_check_branch
          %180 = sbr.rel (%p178) target = $region36
        $region35: #{birnn_wrapper_forward.3} parent=31 // pred_region
          %s181 = sand.u32 %s21, 1
          %s182 = sand.u32 %s21, 1
          %s183 = smul.addr %s182, 16
          %s184 = scalar_lea.vmem [#allocation4], %s183
          %s185 = smul.u32 4, %s11
          %s186 = smul.addr %s185, 2
          %s187 = scalar_lea.vmem %s0, %s186
          // Predicated region
          $region37: #{birnn_wrapper_forward.3} parent=35 // pred_check
            _
          $region38: #{birnn_wrapper_forward.3} parent=35 // pred_check_branch
            %189 = sbr.rel (0) target = $region40
          $region39: #{birnn_wrapper_forward.3} parent=35 // pred_region
            // Predicated region
            $region41: #{birnn_wrapper_forward.3} parent=39 // pred_check
              _
            $region42: #{birnn_wrapper_forward.3} parent=39 // pred_check_branch
              %191 = sbr.rel target = $region44
            $region43: #{birnn_wrapper_forward.3} parent=39 // pred_region
              // Predicated region
              $region56: #{birnn_wrapper_forward.3} parent=43 // pred_check
                _
              $region57: #{birnn_wrapper_forward.3} parent=43 // pred_check_branch
                %221 = sbr.rel (0) target = $region59
              $region58: #{birnn_wrapper_forward.3} parent=43 // pred_region
                loop: start=0, step=1, limit=1
                $region60: #{birnn_wrapper_forward.3} parent=58 // loop_pre_header
                  _
                $region61: #{birnn_wrapper_forward.3} parent=58 // loop_header
                  %s223 = sphi 0, %s227
                  %p224 = scmp.ge.s32.totalorder %s223, 1
                  %s228 = sphi %s187, %s187
                  %s229 = sphi %s184, %s184
                $region62: #{birnn_wrapper_forward.3} parent=58 // loop_header_branch
                  %226 = sbr.rel (%p224) target = $region66
                $region63: #{birnn_wrapper_forward.3} parent=58 // loop_body
                  _
                $region64: #{birnn_wrapper_forward.3} parent=58 // loop_footer
                  %s227 = sadd.s32 1, %s223
                $region65: #{birnn_wrapper_forward.3} parent=58 // loop_footer_branch
                  %222 = sbr.rel target = $region61
                $region66: #{birnn_wrapper_forward.3} parent=58 // loop_exit
                  _
                %s231 = ssub.s32 4, 1
                loop: start=0, step=1, limit=1
                $region67: #{birnn_wrapper_forward.3} parent=58 // loop_pre_header
                  _
                $region68: #{birnn_wrapper_forward.3} parent=58 // loop_header
                  %s233 = sphi 0, %s237
                  %p234 = scmp.ge.s32.totalorder %s233, 1
                  %s238 = sphi %s187, %s187
                  %s239 = sphi %s184, %s184
                $region69: #{birnn_wrapper_forward.3} parent=58 // loop_header_branch
                  %236 = sbr.rel (%p234) target = $region73
                $region70: #{birnn_wrapper_forward.3} parent=58 // loop_body
                  %v240 = vld [vmem:[%s238] sm:%s231]
                  %241 = vst [vmem:[%s239] sm:%s231] %v240
                  %v242 = vld [vmem:[%s238 + $0x2] sm:%s231]
                  %243 = vst [vmem:[%s239 + $0x2] sm:%s231] %v242
                  %v244 = vld [vmem:[%s238 + $0x4] sm:%s231]
                  %245 = vst [vmem:[%s239 + $0x4] sm:%s231] %v244
                  %v246 = vld [vmem:[%s238 + $0x6] sm:%s231]
                  %247 = vst [vmem:[%s239 + $0x6] sm:%s231] %v246
                  %v248 = vld [vmem:[%s238 + $0x10] sm:%s231]
                  %249 = vst [vmem:[%s239 + $0x8] sm:%s231] %v248
                  %v250 = vld [vmem:[%s238 + $0x12] sm:%s231]
                  %251 = vst [vmem:[%s239 + $0xa] sm:%s231] %v250
                  %v252 = vld [vmem:[%s238 + $0x14] sm:%s231]
                  %253 = vst [vmem:[%s239 + $0xc] sm:%s231] %v252
                  %v254 = vld [vmem:[%s238 + $0x16] sm:%s231]
                  %255 = vst [vmem:[%s239 + $0xe] sm:%s231] %v254
                $region71: #{birnn_wrapper_forward.3} parent=58 // loop_footer
                  %s237 = sadd.s32 1, %s233
                $region72: #{birnn_wrapper_forward.3} parent=58 // loop_footer_branch
                  %232 = sbr.rel target = $region68
                $region73: #{birnn_wrapper_forward.3} parent=58 // loop_exit
                  _
              $region59: #{birnn_wrapper_forward.3} parent=43 // pred_fallthru
                _
            $region44: #{birnn_wrapper_forward.3} parent=39 // pred_fallthru
              _
            // Predicated region
            $region45: #{birnn_wrapper_forward.3} parent=39 // pred_check
              _
            $region46: #{birnn_wrapper_forward.3} parent=39 // pred_check_branch
              %193 = sbr.rel (0) target = $region48
            $region47: #{birnn_wrapper_forward.3} parent=39 // pred_region
              %s195 = ssub.s32 4, 1
              loop: start=0, step=1, limit=1
              $region49: #{birnn_wrapper_forward.3} parent=47 // loop_pre_header
                _
              $region50: #{birnn_wrapper_forward.3} parent=47 // loop_header
                %s197 = sphi 0, %s201
                %p198 = scmp.ge.s32.totalorder %s197, 1
                %s202 = sphi %s187, %s187
                %s203 = sphi %s184, %s184
              $region51: #{birnn_wrapper_forward.3} parent=47 // loop_header_branch
                %200 = sbr.rel (%p198) target = $region55
              $region52: #{birnn_wrapper_forward.3} parent=47 // loop_body
                %v204 = vld [vmem:[%s202] sm:%s195]
                %205 = vst [vmem:[%s203] sm:%s195] %v204
                %v206 = vld [vmem:[%s202 + $0x2] sm:%s195]
                %207 = vst [vmem:[%s203 + $0x2] sm:%s195] %v206
                %v208 = vld [vmem:[%s202 + $0x4] sm:%s195]
                %209 = vst [vmem:[%s203 + $0x4] sm:%s195] %v208
                %v210 = vld [vmem:[%s202 + $0x6] sm:%s195]
                %211 = vst [vmem:[%s203 + $0x6] sm:%s195] %v210
                %v212 = vld [vmem:[%s202 + $0x10] sm:%s195]
                %213 = vst [vmem:[%s203 + $0x8] sm:%s195] %v212
                %v214 = vld [vmem:[%s202 + $0x12] sm:%s195]
                %215 = vst [vmem:[%s203 + $0xa] sm:%s195] %v214
                %v216 = vld [vmem:[%s202 + $0x14] sm:%s195]
                %217 = vst [vmem:[%s203 + $0xc] sm:%s195] %v216
                %v218 = vld [vmem:[%s202 + $0x16] sm:%s195]
                %219 = vst [vmem:[%s203 + $0xe] sm:%s195] %v218
              $region53: #{birnn_wrapper_forward.3} parent=47 // loop_footer
                %s201 = sadd.s32 1, %s197
              $region54: #{birnn_wrapper_forward.3} parent=47 // loop_footer_branch
                %196 = sbr.rel target = $region50
              $region55: #{birnn_wrapper_forward.3} parent=47 // loop_exit
                _
            $region48: #{birnn_wrapper_forward.3} parent=39 // pred_fallthru
              _
          $region40: #{birnn_wrapper_forward.3} parent=35 // pred_fallthru
            _
          %256 = vnop
        $region36: #{birnn_wrapper_forward.3} parent=31 // pred_fallthru
          _
      $region32: #{birnn_wrapper_forward.3} parent=5 // pred_fallthru
        _
      %p257 = scmp.le.s32.totalorder 1, %s11
      %p258 = scmp.lt.s32.totalorder %s11, 3
      %p259 = pnand %p257, %p258
      %p260 = pneg %p259
      // Predicated region
      $region74: #{birnn_wrapper_forward.3} parent=5 // pred_check
        _
      $region75: #{birnn_wrapper_forward.3} parent=5 // pred_check_branch
        %262 = sbr.rel (%p259) target = $region77
      $region76: #{birnn_wrapper_forward.3} parent=5 // pred_region
        %s263 = ssub.s32 %s11, 1
        %s264 = sand.u32 %s24, 1
        %s265 = sand.u32 %s24, 1
        %s266 = smul.addr %s265, 16
        %s267 = scalar_lea.vmem [#allocation4], %s266
        // Predicated region
        $region78: #{birnn_wrapper_forward.3} parent=76 // pred_check
          %p268 = pneg %p37
        $region79: #{birnn_wrapper_forward.3} parent=76 // pred_check_branch
          %270 = sbr.rel (%p268) target = $region81
        $region80: #{birnn_wrapper_forward.3} parent=76 // pred_region
          _
        $region81: #{birnn_wrapper_forward.3} parent=76 // pred_fallthru
          _
        %s271 = sand.u32 %s24, 1
        %s272 = sand.u32 %s24, 1
        %s273 = smul.addr %s272, 16
        %s274 = scalar_lea.vmem [#allocation4], %s273
        %p275 = pneg %p37
        %p276 = pneg %p34
        %p277 = pneg %p58
        %p278 = pneg %p55
        %p279 = pneg %p79
        %p280 = pneg %p76
        %p281 = pneg %p100
        %p282 = pneg %p97
        %p283 = pneg %p121
        %p284 = pneg %p118
        %p285 = pneg %p147
        %p286 = pneg %p144
        %s287 = sand.u32 %s134, 1
        %s288 = sand.u32 %s134, 1
        %s289 = smul.addr %s288, 16
        %s290 = scalar_lea.vmem [#allocation5], %s289
        %s291 = smul.u32 4, %s16
        %s292 = smul.u32 4, %s16
        %p293 = scmp.eq.s32.totalorder %s16, 0
        // Predicated region
        $region82: #{birnn_wrapper_forward.3} parent=76 // pred_check
          %p294 = pneg %p293
        $region83: #{birnn_wrapper_forward.3} parent=76 // pred_check_branch
          %296 = sbr.rel (%p294) target = $region85
        $region84: #{birnn_wrapper_forward.3} parent=76 // pred_region
          %vm297 = vcmask 254976
          %298 = vst.msk [vmem:[#allocation2] sm:$0x3] %vm297, 0.0
          %299 = vst.msk [vmem:[#allocation2 + $0x2] sm:$0x3] %vm297, 0.0
        $region85: #{birnn_wrapper_forward.3} parent=76 // pred_fallthru
          _
        %v300 = vld [vmem:[%s267] sm:$0x3]
        %v301 = vld [vmem:[%s1] sm:$0xff]
        %v302 = vld [vmem:[%s1 + $0x8] sm:$0xff]
        %v303 = vld [vmem:[%s1 + $0x10] sm:$0xff]
        %v304 = vld [vmem:[%s1 + $0x18] sm:$0xff]
        %v305 = vld [vmem:[%s3] sm:$0x1]
        %v307 = vlaneseq
        %v308 = vshrl.u32 %v307, 7
        %v309 = vsub.s32 0, %v308
        %v310 = vrot.slane %v305, %v309
        %vm312 = vcmask 261120
        %v314 = vsel %vm312, %v300, 0
        %316 = vmatprep.subr.mxu0 0.0
        %317 = vmatpush1.msra.mxu0 0.0
        %318 = vmatprep.subr.mxu0 0.0
        %319 = vmatpush1.msra.mxu0 0.0
        %320 = vmatprep.subr.mxu0 0.0
        %321 = vmatpush1.msra.mxu0 0.0
        %322 = vmatprep.subr.mxu0 0.0
        %323 = vmatpush1.msra.mxu0 0.0
        %324 = vmatprep.subr.mxu0 0.0
        %325 = vmatpush1.msra.mxu0 0.0
        %326 = vmatprep.subr.mxu0 0.0
        %327 = vmatpush1.msra.mxu0 0.0
        %328 = vmatprep.subr.mxu0 0.0
        %329 = vmatpush1.msra.mxu0 0.0
        %330 = vmatprep.subr.mxu0 0.0
        %331 = vmatpush1.msra.mxu0 0.0
        %332 = vmatprep.subr.mxu0 0.0
        %333 = vmatpush1.msra.mxu0 0.0
        %334 = vmatprep.subr.mxu0 0.0
        %335 = vmatpush1.msra.mxu0 0.0
        %336 = vmatprep.subr.mxu0 0.0
        %337 = vmatpush1.msra.mxu0 0.0
        %338 = vmatprep.subr.mxu0 0.0
        %339 = vmatpush1.msra.mxu0 0.0
        %340 = vmatprep.subr.mxu0 0.0
        %341 = vmatpush1.msra.mxu0 %v304
        %342 = vmatprep.subr.mxu0 0.0
        %343 = vmatpush1.msra.mxu0 %v303
        %344 = vmatprep.subr.mxu0 0.0
        %345 = vmatpush1.msra.mxu0 %v302
        %346 = vmatprep.subr.mxu0 0.0
        %347 = vmatpush1.msra.mxu0 %v301
        %348 = vmatprep.subr.mxu0 0.0
        %349 = vmatpush2.msra.mxu0 0.0
        %350 = vmatprep.subr.mxu0 0.0
        %351 = vmatpush2.msra.mxu0 0.0
        %352 = vmatprep.subr.mxu0 0.0
        %353 = vmatpush2.msra.mxu0 0.0
        %354 = vmatprep.subr.mxu0 0.0
        %355 = vmatpush2.msra.mxu0 0.0
        %356 = vmatprep.subr.mxu0 0.0
        %357 = vmatpush2.msra.mxu0 0.0
        %358 = vmatprep.subr.mxu0 0.0
        %359 = vmatpush2.msra.mxu0 0.0
        %360 = vmatprep.subr.mxu0 0.0
        %361 = vmatpush2.msra.mxu0 0.0
        %362 = vmatprep.subr.mxu0 0.0
        %363 = vmatpush2.msra.mxu0 0.0
        %364 = vmatprep.subr.mxu0 0.0
        %365 = vmatpush2.msra.mxu0 0.0
        %366 = vmatprep.subr.mxu0 0.0
        %367 = vmatpush2.msra.mxu0 0.0
        %368 = vmatprep.subr.mxu0 0.0
        %369 = vmatpush2.msra.mxu0 0.0
        %370 = vmatprep.subr.mxu0 0.0
        %371 = vmatpush2.msra.mxu0 0.0
        %372 = vmatprep.subr.mxu0 0.0
        %373 = vmatpush2.msra.mxu0 0.0
        %374 = vmatprep.subr.mxu0 0.0
        %375 = vmatpush2.msra.mxu0 0.0
        %376 = vmatprep.subr.mxu0 0.0
        %377 = vmatpush2.msra.mxu0 0.0
        %378 = vmatprep.subr.mxu0 0.0
        %379 = vmatpush2.msra.mxu0 0.0
        %380 = vmatprep.mubr.f32.mxu0 0.0
        %381 = vmatmul.mubr.f32.gmra.mxu0 %v314
        %v382 = vpop.f32.mrf.mxu0
        %v383 = vadd.f32 %v310, %v382
        %v384 = vpop.f32.mrf.mxu0
        %385 = vdwg.mxu0
        %vm386 = vcmask 779264
        %387 = vst.msk [vmem:[#allocation3] sm:$0x3] %vm386, %v383
        %s388 = scalar_lea.vmem %s267, 8 [#allocation4]
        %v389 = vld [vmem:[%s388] sm:$0x3]
        %s390 = scalar_lea.vmem %s1, 32
        %v391 = vld [vmem:[%s390] sm:$0xff]
        %v392 = vld [vmem:[%s390 + $0x8] sm:$0xff]
        %v393 = vld [vmem:[%s390 + $0x10] sm:$0xff]
        %v394 = vld [vmem:[%s390 + $0x18] sm:$0xff]
        %s395 = scalar_lea.vmem %s3, 1
        %v396 = vld [vmem:[%s395] sm:$0x1]
        %v398 = vlaneseq
        %v399 = vshrl.u32 %v398, 7
        %v400 = vsub.s32 0, %v399
        %v401 = vrot.slane %v396, %v400
        %v404 = vsel %vm312, %v389, 0
        %406 = vmatprep.subr.mxu0 0.0
        %407 = vmatpush1.msra.mxu0 0.0
        %408 = vmatprep.subr.mxu0 0.0
        %409 = vmatpush1.msra.mxu0 0.0
        %410 = vmatprep.subr.mxu0 0.0
        %411 = vmatpush1.msra.mxu0 0.0
        %412 = vmatprep.subr.mxu0 0.0
        %413 = vmatpush1.msra.mxu0 0.0
        %414 = vmatprep.subr.mxu0 0.0
        %415 = vmatpush1.msra.mxu0 0.0
        %416 = vmatprep.subr.mxu0 0.0
        %417 = vmatpush1.msra.mxu0 0.0
        %418 = vmatprep.subr.mxu0 0.0
        %419 = vmatpush1.msra.mxu0 0.0
        %420 = vmatprep.subr.mxu0 0.0
        %421 = vmatpush1.msra.mxu0 0.0
        %422 = vmatprep.subr.mxu0 0.0
        %423 = vmatpush1.msra.mxu0 0.0
        %424 = vmatprep.subr.mxu0 0.0
        %425 = vmatpush1.msra.mxu0 0.0
        %426 = vmatprep.subr.mxu0 0.0
        %427 = vmatpush1.msra.mxu0 0.0
        %428 = vmatprep.subr.mxu0 0.0
        %429 = vmatpush1.msra.mxu0 0.0
        %430 = vmatprep.subr.mxu0 0.0
        %431 = vmatpush1.msra.mxu0 %v394
        %432 = vmatprep.subr.mxu0 0.0
        %433 = vmatpush1.msra.mxu0 %v393
        %434 = vmatprep.subr.mxu0 0.0
        %435 = vmatpush1.msra.mxu0 %v392
        %436 = vmatprep.subr.mxu0 0.0
        %437 = vmatpush1.msra.mxu0 %v391
        %438 = vmatprep.subr.mxu0 0.0
        %439 = vmatpush2.msra.mxu0 0.0
        %440 = vmatprep.subr.mxu0 0.0
        %441 = vmatpush2.msra.mxu0 0.0
        %442 = vmatprep.subr.mxu0 0.0
        %443 = vmatpush2.msra.mxu0 0.0
        %444 = vmatprep.subr.mxu0 0.0
        %445 = vmatpush2.msra.mxu0 0.0
        %446 = vmatprep.subr.mxu0 0.0
        %447 = vmatpush2.msra.mxu0 0.0
        %448 = vmatprep.subr.mxu0 0.0
        %449 = vmatpush2.msra.mxu0 0.0
        %450 = vmatprep.subr.mxu0 0.0
        %451 = vmatpush2.msra.mxu0 0.0
        %452 = vmatprep.subr.mxu0 0.0
        %453 = vmatpush2.msra.mxu0 0.0
        %454 = vmatprep.subr.mxu0 0.0
        %455 = vmatpush2.msra.mxu0 0.0
        %456 = vmatprep.subr.mxu0 0.0
        %457 = vmatpush2.msra.mxu0 0.0
        %458 = vmatprep.subr.mxu0 0.0
        %459 = vmatpush2.msra.mxu0 0.0
        %460 = vmatprep.subr.mxu0 0.0
        %461 = vmatpush2.msra.mxu0 0.0
        %462 = vmatprep.subr.mxu0 0.0
        %463 = vmatpush2.msra.mxu0 0.0
        %464 = vmatprep.subr.mxu0 0.0
        %465 = vmatpush2.msra.mxu0 0.0
        %466 = vmatprep.subr.mxu0 0.0
        %467 = vmatpush2.msra.mxu0 0.0
        %468 = vmatprep.subr.mxu0 0.0
        %469 = vmatpush2.msra.mxu0 0.0
        %470 = vmatprep.mubr.f32.mxu0 0.0
        %471 = vmatmul.mubr.f32.gmra.mxu0 %v404
        %v472 = vpop.f32.mrf.mxu0
        %v473 = vadd.f32 %v401, %v472
        %v474 = vpop.f32.mrf.mxu0
        %475 = vdwg.mxu0
        %s476 = scalar_lea.vmem [#allocation3], 8
        %477 = vst.msk [vmem:[%s476] sm:$0x3] %vm386, %v473
        %s478 = scalar_lea.vmem %s267, 2 [#allocation4]
        %v479 = vld [vmem:[%s478] sm:$0x3]
        %v480 = vld [vmem:[%s1] sm:$0xff]
        %v481 = vld [vmem:[%s1 + $0x8] sm:$0xff]
        %v482 = vld [vmem:[%s1 + $0x10] sm:$0xff]
        %v483 = vld [vmem:[%s1 + $0x18] sm:$0xff]
        %v484 = vld [vmem:[%s3] sm:$0x1]
        %v486 = vlaneseq
        %v487 = vshrl.u32 %v486, 7
        %v488 = vsub.s32 0, %v487
        %v489 = vrot.slane %v484, %v488
        %v492 = vsel %vm312, %v479, 0
        %494 = vmatprep.subr.mxu0 0.0
        %495 = vmatpush1.msra.mxu0 0.0
        %496 = vmatprep.subr.mxu0 0.0
        %497 = vmatpush1.msra.mxu0 0.0
        %498 = vmatprep.subr.mxu0 0.0
        %499 = vmatpush1.msra.mxu0 0.0
        %500 = vmatprep.subr.mxu0 0.0
        %501 = vmatpush1.msra.mxu0 0.0
        %502 = vmatprep.subr.mxu0 0.0
        %503 = vmatpush1.msra.mxu0 0.0
        %504 = vmatprep.subr.mxu0 0.0
        %505 = vmatpush1.msra.mxu0 0.0
        %506 = vmatprep.subr.mxu0 0.0
        %507 = vmatpush1.msra.mxu0 0.0
        %508 = vmatprep.subr.mxu0 0.0
        %509 = vmatpush1.msra.mxu0 0.0
        %510 = vmatprep.subr.mxu0 0.0
        %511 = vmatpush1.msra.mxu0 0.0
        %512 = vmatprep.subr.mxu0 0.0
        %513 = vmatpush1.msra.mxu0 0.0
        %514 = vmatprep.subr.mxu0 0.0
        %515 = vmatpush1.msra.mxu0 0.0
        %516 = vmatprep.subr.mxu0 0.0
        %517 = vmatpush1.msra.mxu0 0.0
        %518 = vmatprep.subr.mxu0 0.0
        %519 = vmatpush1.msra.mxu0 %v483
        %520 = vmatprep.subr.mxu0 0.0
        %521 = vmatpush1.msra.mxu0 %v482
        %522 = vmatprep.subr.mxu0 0.0
        %523 = vmatpush1.msra.mxu0 %v481
        %524 = vmatprep.subr.mxu0 0.0
        %525 = vmatpush1.msra.mxu0 %v480
        %526 = vmatprep.subr.mxu0 0.0
        %527 = vmatpush2.msra.mxu0 0.0
        %528 = vmatprep.subr.mxu0 0.0
        %529 = vmatpush2.msra.mxu0 0.0
        %530 = vmatprep.subr.mxu0 0.0
        %531 = vmatpush2.msra.mxu0 0.0
        %532 = vmatprep.subr.mxu0 0.0
        %533 = vmatpush2.msra.mxu0 0.0
        %534 = vmatprep.subr.mxu0 0.0
        %535 = vmatpush2.msra.mxu0 0.0
        %536 = vmatprep.subr.mxu0 0.0
        %537 = vmatpush2.msra.mxu0 0.0
        %538 = vmatprep.subr.mxu0 0.0
        %539 = vmatpush2.msra.mxu0 0.0
        %540 = vmatprep.subr.mxu0 0.0
        %541 = vmatpush2.msra.mxu0 0.0
        %542 = vmatprep.subr.mxu0 0.0
        %543 = vmatpush2.msra.mxu0 0.0
        %544 = vmatprep.subr.mxu0 0.0
        %545 = vmatpush2.msra.mxu0 0.0
        %546 = vmatprep.subr.mxu0 0.0
        %547 = vmatpush2.msra.mxu0 0.0
        %548 = vmatprep.subr.mxu0 0.0
        %549 = vmatpush2.msra.mxu0 0.0
        %550 = vmatprep.subr.mxu0 0.0
        %551 = vmatpush2.msra.mxu0 0.0
        %552 = vmatprep.subr.mxu0 0.0
        %553 = vmatpush2.msra.mxu0 0.0
        %554 = vmatprep.subr.mxu0 0.0
        %555 = vmatpush2.msra.mxu0 0.0
        %556 = vmatprep.subr.mxu0 0.0
        %557 = vmatpush2.msra.mxu0 0.0
        %558 = vmatprep.mubr.f32.mxu0 0.0
        %559 = vmatmul.mubr.f32.gmra.mxu0 %v492
        %v560 = vpop.f32.mrf.mxu0
        %v561 = vadd.f32 %v489, %v560
        %v562 = vpop.f32.mrf.mxu0
        %563 = vdwg.mxu0
        %s564 = scalar_lea.vmem [#allocation3], 2
        %565 = vst.msk [vmem:[%s564] sm:$0x3] %vm386, %v561
        %s566 = scalar_lea.vmem %s267, 10 [#allocation4]
        %v567 = vld [vmem:[%s566] sm:$0x3]
        %v568 = vld [vmem:[%s390] sm:$0xff]
        %v569 = vld [vmem:[%s390 + $0x8] sm:$0xff]
        %v570 = vld [vmem:[%s390 + $0x10] sm:$0xff]
        %v571 = vld [vmem:[%s390 + $0x18] sm:$0xff]
        %v572 = vld [vmem:[%s395] sm:$0x1]
        %v574 = vlaneseq
        %v575 = vshrl.u32 %v574, 7
        %v576 = vsub.s32 0, %v575
        %v577 = vrot.slane %v572, %v576
        %v580 = vsel %vm312, %v567, 0
        %582 = vmatprep.subr.mxu0 0.0
        %583 = vmatpush1.msra.mxu0 0.0
        %584 = vmatprep.subr.mxu0 0.0
        %585 = vmatpush1.msra.mxu0 0.0
        %586 = vmatprep.subr.mxu0 0.0
        %587 = vmatpush1.msra.mxu0 0.0
        %588 = vmatprep.subr.mxu0 0.0
        %589 = vmatpush1.msra.mxu0 0.0
        %590 = vmatprep.subr.mxu0 0.0
        %591 = vmatpush1.msra.mxu0 0.0
        %592 = vmatprep.subr.mxu0 0.0
        %593 = vmatpush1.msra.mxu0 0.0
        %594 = vmatprep.subr.mxu0 0.0
        %595 = vmatpush1.msra.mxu0 0.0
        %596 = vmatprep.subr.mxu0 0.0
        %597 = vmatpush1.msra.mxu0 0.0
        %598 = vmatprep.subr.mxu0 0.0
        %599 = vmatpush1.msra.mxu0 0.0
        %600 = vmatprep.subr.mxu0 0.0
        %601 = vmatpush1.msra.mxu0 0.0
        %602 = vmatprep.subr.mxu0 0.0
        %603 = vmatpush1.msra.mxu0 0.0
        %604 = vmatprep.subr.mxu0 0.0
        %605 = vmatpush1.msra.mxu0 0.0
        %606 = vmatprep.subr.mxu0 0.0
        %607 = vmatpush1.msra.mxu0 %v571
        %608 = vmatprep.subr.mxu0 0.0
        %609 = vmatpush1.msra.mxu0 %v570
        %610 = vmatprep.subr.mxu0 0.0
        %611 = vmatpush1.msra.mxu0 %v569
        %612 = vmatprep.subr.mxu0 0.0
        %613 = vmatpush1.msra.mxu0 %v568
        %614 = vmatprep.subr.mxu0 0.0
        %615 = vmatpush2.msra.mxu0 0.0
        %616 = vmatprep.subr.mxu0 0.0
        %617 = vmatpush2.msra.mxu0 0.0
        %618 = vmatprep.subr.mxu0 0.0
        %619 = vmatpush2.msra.mxu0 0.0
        %620 = vmatprep.subr.mxu0 0.0
        %621 = vmatpush2.msra.mxu0 0.0
        %622 = vmatprep.subr.mxu0 0.0
        %623 = vmatpush2.msra.mxu0 0.0
        %624 = vmatprep.subr.mxu0 0.0
        %625 = vmatpush2.msra.mxu0 0.0
        %626 = vmatprep.subr.mxu0 0.0
        %627 = vmatpush2.msra.mxu0 0.0
        %628 = vmatprep.subr.mxu0 0.0
        %629 = vmatpush2.msra.mxu0 0.0
        %630 = vmatprep.subr.mxu0 0.0
        %631 = vmatpush2.msra.mxu0 0.0
        %632 = vmatprep.subr.mxu0 0.0
        %633 = vmatpush2.msra.mxu0 0.0
        %634 = vmatprep.subr.mxu0 0.0
        %635 = vmatpush2.msra.mxu0 0.0
        %636 = vmatprep.subr.mxu0 0.0
        %637 = vmatpush2.msra.mxu0 0.0
        %638 = vmatprep.subr.mxu0 0.0
        %639 = vmatpush2.msra.mxu0 0.0
        %640 = vmatprep.subr.mxu0 0.0
        %641 = vmatpush2.msra.mxu0 0.0
        %642 = vmatprep.subr.mxu0 0.0
        %643 = vmatpush2.msra.mxu0 0.0
        %644 = vmatprep.subr.mxu0 0.0
        %645 = vmatpush2.msra.mxu0 0.0
        %646 = vmatprep.mubr.f32.mxu0 0.0
        %647 = vmatmul.mubr.f32.gmra.mxu0 %v580
        %v648 = vpop.f32.mrf.mxu0
        %v649 = vadd.f32 %v577, %v648
        %v650 = vpop.f32.mrf.mxu0
        %651 = vdwg.mxu0
        %s652 = scalar_lea.vmem [#allocation3], 10
        %653 = vst.msk [vmem:[%s652] sm:$0x3] %vm386, %v649
        %s654 = scalar_lea.vmem %s267, 4 [#allocation4]
        %v655 = vld [vmem:[%s654] sm:$0x3]
        %v656 = vld [vmem:[%s1] sm:$0xff]
        %v657 = vld [vmem:[%s1 + $0x8] sm:$0xff]
        %v658 = vld [vmem:[%s1 + $0x10] sm:$0xff]
        %v659 = vld [vmem:[%s1 + $0x18] sm:$0xff]
        %v660 = vld [vmem:[%s3] sm:$0x1]
        %v662 = vlaneseq
        %v663 = vshrl.u32 %v662, 7
        %v664 = vsub.s32 0, %v663
        %v665 = vrot.slane %v660, %v664
        %v668 = vsel %vm312, %v655, 0
        %670 = vmatprep.subr.mxu0 0.0
        %671 = vmatpush1.msra.mxu0 0.0
        %672 = vmatprep.subr.mxu0 0.0
        %673 = vmatpush1.msra.mxu0 0.0
        %674 = vmatprep.subr.mxu0 0.0
        %675 = vmatpush1.msra.mxu0 0.0
        %676 = vmatprep.subr.mxu0 0.0
        %677 = vmatpush1.msra.mxu0 0.0
        %678 = vmatprep.subr.mxu0 0.0
        %679 = vmatpush1.msra.mxu0 0.0
        %680 = vmatprep.subr.mxu0 0.0
        %681 = vmatpush1.msra.mxu0 0.0
        %682 = vmatprep.subr.mxu0 0.0
        %683 = vmatpush1.msra.mxu0 0.0
        %684 = vmatprep.subr.mxu0 0.0
        %685 = vmatpush1.msra.mxu0 0.0
        %686 = vmatprep.subr.mxu0 0.0
        %687 = vmatpush1.msra.mxu0 0.0
        %688 = vmatprep.subr.mxu0 0.0
        %689 = vmatpush1.msra.mxu0 0.0
        %690 = vmatprep.subr.mxu0 0.0
        %691 = vmatpush1.msra.mxu0 0.0
        %692 = vmatprep.subr.mxu0 0.0
        %693 = vmatpush1.msra.mxu0 0.0
        %694 = vmatprep.subr.mxu0 0.0
        %695 = vmatpush1.msra.mxu0 %v659
        %696 = vmatprep.subr.mxu0 0.0
        %697 = vmatpush1.msra.mxu0 %v658
        %698 = vmatprep.subr.mxu0 0.0
        %699 = vmatpush1.msra.mxu0 %v657
        %700 = vmatprep.subr.mxu0 0.0
        %701 = vmatpush1.msra.mxu0 %v656
        %702 = vmatprep.subr.mxu0 0.0
        %703 = vmatpush2.msra.mxu0 0.0
        %704 = vmatprep.subr.mxu0 0.0
        %705 = vmatpush2.msra.mxu0 0.0
        %706 = vmatprep.subr.mxu0 0.0
        %707 = vmatpush2.msra.mxu0 0.0
        %708 = vmatprep.subr.mxu0 0.0
        %709 = vmatpush2.msra.mxu0 0.0
        %710 = vmatprep.subr.mxu0 0.0
        %711 = vmatpush2.msra.mxu0 0.0
        %712 = vmatprep.subr.mxu0 0.0
        %713 = vmatpush2.msra.mxu0 0.0
        %714 = vmatprep.subr.mxu0 0.0
        %715 = vmatpush2.msra.mxu0 0.0
        %716 = vmatprep.subr.mxu0 0.0
        %717 = vmatpush2.msra.mxu0 0.0
        %718 = vmatprep.subr.mxu0 0.0
        %719 = vmatpush2.msra.mxu0 0.0
        %720 = vmatprep.subr.mxu0 0.0
        %721 = vmatpush2.msra.mxu0 0.0
        %722 = vmatprep.subr.mxu0 0.0
        %723 = vmatpush2.msra.mxu0 0.0
        %724 = vmatprep.subr.mxu0 0.0
        %725 = vmatpush2.msra.mxu0 0.0
        %726 = vmatprep.subr.mxu0 0.0
        %727 = vmatpush2.msra.mxu0 0.0
        %728 = vmatprep.subr.mxu0 0.0
        %729 = vmatpush2.msra.mxu0 0.0
        %730 = vmatprep.subr.mxu0 0.0
        %731 = vmatpush2.msra.mxu0 0.0
        %732 = vmatprep.subr.mxu0 0.0
        %733 = vmatpush2.msra.mxu0 0.0
        %734 = vmatprep.mubr.f32.mxu0 0.0
        %735 = vmatmul.mubr.f32.gmra.mxu0 %v668
        %v736 = vpop.f32.mrf.mxu0
        %v737 = vadd.f32 %v665, %v736
        %v738 = vpop.f32.mrf.mxu0
        %739 = vdwg.mxu0
        %s740 = scalar_lea.vmem [#allocation3], 4
        %741 = vst.msk [vmem:[%s740] sm:$0x3] %vm386, %v737
        %s742 = scalar_lea.vmem %s267, 12 [#allocation4]
        %v743 = vld [vmem:[%s742] sm:$0x3]
        %v744 = vld [vmem:[%s390] sm:$0xff]
        %v745 = vld [vmem:[%s390 + $0x8] sm:$0xff]
        %v746 = vld [vmem:[%s390 + $0x10] sm:$0xff]
        %v747 = vld [vmem:[%s390 + $0x18] sm:$0xff]
        %v748 = vld [vmem:[%s395] sm:$0x1]
        %v750 = vlaneseq
        %v751 = vshrl.u32 %v750, 7
        %v752 = vsub.s32 0, %v751
        %v753 = vrot.slane %v748, %v752
        %v756 = vsel %vm312, %v743, 0
        %758 = vmatprep.subr.mxu0 0.0
        %759 = vmatpush1.msra.mxu0 0.0
        %760 = vmatprep.subr.mxu0 0.0
        %761 = vmatpush1.msra.mxu0 0.0
        %762 = vmatprep.subr.mxu0 0.0
        %763 = vmatpush1.msra.mxu0 0.0
        %764 = vmatprep.subr.mxu0 0.0
        %765 = vmatpush1.msra.mxu0 0.0
        %766 = vmatprep.subr.mxu0 0.0
        %767 = vmatpush1.msra.mxu0 0.0
        %768 = vmatprep.subr.mxu0 0.0
        %769 = vmatpush1.msra.mxu0 0.0
        %770 = vmatprep.subr.mxu0 0.0
        %771 = vmatpush1.msra.mxu0 0.0
        %772 = vmatprep.subr.mxu0 0.0
        %773 = vmatpush1.msra.mxu0 0.0
        %774 = vmatprep.subr.mxu0 0.0
        %775 = vmatpush1.msra.mxu0 0.0
        %776 = vmatprep.subr.mxu0 0.0
        %777 = vmatpush1.msra.mxu0 0.0
        %778 = vmatprep.subr.mxu0 0.0
        %779 = vmatpush1.msra.mxu0 0.0
        %780 = vmatprep.subr.mxu0 0.0
        %781 = vmatpush1.msra.mxu0 0.0
        %782 = vmatprep.subr.mxu0 0.0
        %783 = vmatpush1.msra.mxu0 %v747
        %784 = vmatprep.subr.mxu0 0.0
        %785 = vmatpush1.msra.mxu0 %v746
        %786 = vmatprep.subr.mxu0 0.0
        %787 = vmatpush1.msra.mxu0 %v745
        %788 = vmatprep.subr.mxu0 0.0
        %789 = vmatpush1.msra.mxu0 %v744
        %790 = vmatprep.subr.mxu0 0.0
        %791 = vmatpush2.msra.mxu0 0.0
        %792 = vmatprep.subr.mxu0 0.0
        %793 = vmatpush2.msra.mxu0 0.0
        %794 = vmatprep.subr.mxu0 0.0
        %795 = vmatpush2.msra.mxu0 0.0
        %796 = vmatprep.subr.mxu0 0.0
        %797 = vmatpush2.msra.mxu0 0.0
        %798 = vmatprep.subr.mxu0 0.0
        %799 = vmatpush2.msra.mxu0 0.0
        %800 = vmatprep.subr.mxu0 0.0
        %801 = vmatpush2.msra.mxu0 0.0
        %802 = vmatprep.subr.mxu0 0.0
        %803 = vmatpush2.msra.mxu0 0.0
        %804 = vmatprep.subr.mxu0 0.0
        %805 = vmatpush2.msra.mxu0 0.0
        %806 = vmatprep.subr.mxu0 0.0
        %807 = vmatpush2.msra.mxu0 0.0
        %808 = vmatprep.subr.mxu0 0.0
        %809 = vmatpush2.msra.mxu0 0.0
        %810 = vmatprep.subr.mxu0 0.0
        %811 = vmatpush2.msra.mxu0 0.0
        %812 = vmatprep.subr.mxu0 0.0
        %813 = vmatpush2.msra.mxu0 0.0
        %814 = vmatprep.subr.mxu0 0.0
        %815 = vmatpush2.msra.mxu0 0.0
        %816 = vmatprep.subr.mxu0 0.0
        %817 = vmatpush2.msra.mxu0 0.0
        %818 = vmatprep.subr.mxu0 0.0
        %819 = vmatpush2.msra.mxu0 0.0
        %820 = vmatprep.subr.mxu0 0.0
        %821 = vmatpush2.msra.mxu0 0.0
        %822 = vmatprep.mubr.f32.mxu0 0.0
        %823 = vmatmul.mubr.f32.gmra.mxu0 %v756
        %v824 = vpop.f32.mrf.mxu0
        %v825 = vadd.f32 %v753, %v824
        %v826 = vpop.f32.mrf.mxu0
        %827 = vdwg.mxu0
        %s828 = scalar_lea.vmem [#allocation3], 12
        %829 = vst.msk [vmem:[%s828] sm:$0x3] %vm386, %v825
        %s830 = scalar_lea.vmem %s267, 6 [#allocation4]
        %v831 = vld [vmem:[%s830] sm:$0x3]
        %v832 = vld [vmem:[%s1] sm:$0xff]
        %v833 = vld [vmem:[%s1 + $0x8] sm:$0xff]
        %v834 = vld [vmem:[%s1 + $0x10] sm:$0xff]
        %v835 = vld [vmem:[%s1 + $0x18] sm:$0xff]
        %v836 = vld [vmem:[%s3] sm:$0x1]
        %v838 = vlaneseq
        %v839 = vshrl.u32 %v838, 7
        %v840 = vsub.s32 0, %v839
        %v841 = vrot.slane %v836, %v840
        %v844 = vsel %vm312, %v831, 0
        %846 = vmatprep.subr.mxu0 0.0
        %847 = vmatpush1.msra.mxu0 0.0
        %848 = vmatprep.subr.mxu0 0.0
        %849 = vmatpush1.msra.mxu0 0.0
        %850 = vmatprep.subr.mxu0 0.0
        %851 = vmatpush1.msra.mxu0 0.0
        %852 = vmatprep.subr.mxu0 0.0
        %853 = vmatpush1.msra.mxu0 0.0
        %854 = vmatprep.subr.mxu0 0.0
        %855 = vmatpush1.msra.mxu0 0.0
        %856 = vmatprep.subr.mxu0 0.0
        %857 = vmatpush1.msra.mxu0 0.0
        %858 = vmatprep.subr.mxu0 0.0
        %859 = vmatpush1.msra.mxu0 0.0
        %860 = vmatprep.subr.mxu0 0.0
        %861 = vmatpush1.msra.mxu0 0.0
        %862 = vmatprep.subr.mxu0 0.0
        %863 = vmatpush1.msra.mxu0 0.0
        %864 = vmatprep.subr.mxu0 0.0
        %865 = vmatpush1.msra.mxu0 0.0
        %866 = vmatprep.subr.mxu0 0.0
        %867 = vmatpush1.msra.mxu0 0.0
        %868 = vmatprep.subr.mxu0 0.0
        %869 = vmatpush1.msra.mxu0 0.0
        %870 = vmatprep.subr.mxu0 0.0
        %871 = vmatpush1.msra.mxu0 %v835
        %872 = vmatprep.subr.mxu0 0.0
        %873 = vmatpush1.msra.mxu0 %v834
        %874 = vmatprep.subr.mxu0 0.0
        %875 = vmatpush1.msra.mxu0 %v833
        %876 = vmatprep.subr.mxu0 0.0
        %877 = vmatpush1.msra.mxu0 %v832
        %878 = vmatprep.subr.mxu0 0.0
        %879 = vmatpush2.msra.mxu0 0.0
        %880 = vmatprep.subr.mxu0 0.0
        %881 = vmatpush2.msra.mxu0 0.0
        %882 = vmatprep.subr.mxu0 0.0
        %883 = vmatpush2.msra.mxu0 0.0
        %884 = vmatprep.subr.mxu0 0.0
        %885 = vmatpush2.msra.mxu0 0.0
        %886 = vmatprep.subr.mxu0 0.0
        %887 = vmatpush2.msra.mxu0 0.0
        %888 = vmatprep.subr.mxu0 0.0
        %889 = vmatpush2.msra.mxu0 0.0
        %890 = vmatprep.subr.mxu0 0.0
        %891 = vmatpush2.msra.mxu0 0.0
        %892 = vmatprep.subr.mxu0 0.0
        %893 = vmatpush2.msra.mxu0 0.0
        %894 = vmatprep.subr.mxu0 0.0
        %895 = vmatpush2.msra.mxu0 0.0
        %896 = vmatprep.subr.mxu0 0.0
        %897 = vmatpush2.msra.mxu0 0.0
        %898 = vmatprep.subr.mxu0 0.0
        %899 = vmatpush2.msra.mxu0 0.0
        %900 = vmatprep.subr.mxu0 0.0
        %901 = vmatpush2.msra.mxu0 0.0
        %902 = vmatprep.subr.mxu0 0.0
        %903 = vmatpush2.msra.mxu0 0.0
        %904 = vmatprep.subr.mxu0 0.0
        %905 = vmatpush2.msra.mxu0 0.0
        %906 = vmatprep.subr.mxu0 0.0
        %907 = vmatpush2.msra.mxu0 0.0
        %908 = vmatprep.subr.mxu0 0.0
        %909 = vmatpush2.msra.mxu0 0.0
        %910 = vmatprep.mubr.f32.mxu0 0.0
        %911 = vmatmul.mubr.f32.gmra.mxu0 %v844
        %v912 = vpop.f32.mrf.mxu0
        %v913 = vadd.f32 %v841, %v912
        %v914 = vpop.f32.mrf.mxu0
        %915 = vdwg.mxu0
        %s916 = scalar_lea.vmem [#allocation3], 6
        %917 = vst.msk [vmem:[%s916] sm:$0x3] %vm386, %v913
        %s918 = scalar_lea.vmem %s267, 14 [#allocation4]
        %v919 = vld [vmem:[%s918] sm:$0x3]
        %v920 = vld [vmem:[%s390] sm:$0xff]
        %v921 = vld [vmem:[%s390 + $0x8] sm:$0xff]
        %v922 = vld [vmem:[%s390 + $0x10] sm:$0xff]
        %v923 = vld [vmem:[%s390 + $0x18] sm:$0xff]
        %v924 = vld [vmem:[%s395] sm:$0x1]
        %v926 = vlaneseq
        %v927 = vshrl.u32 %v926, 7
        %v928 = vsub.s32 0, %v927
        %v929 = vrot.slane %v924, %v928
        %v932 = vsel %vm312, %v919, 0
        %934 = vmatprep.subr.mxu0 0.0
        %935 = vmatpush1.msra.mxu0 0.0
        %936 = vmatprep.subr.mxu0 0.0
        %937 = vmatpush1.msra.mxu0 0.0
        %938 = vmatprep.subr.mxu0 0.0
        %939 = vmatpush1.msra.mxu0 0.0
        %940 = vmatprep.subr.mxu0 0.0
        %941 = vmatpush1.msra.mxu0 0.0
        %942 = vmatprep.subr.mxu0 0.0
        %943 = vmatpush1.msra.mxu0 0.0
        %944 = vmatprep.subr.mxu0 0.0
        %945 = vmatpush1.msra.mxu0 0.0
        %946 = vmatprep.subr.mxu0 0.0
        %947 = vmatpush1.msra.mxu0 0.0
        %948 = vmatprep.subr.mxu0 0.0
        %949 = vmatpush1.msra.mxu0 0.0
        %950 = vmatprep.subr.mxu0 0.0
        %951 = vmatpush1.msra.mxu0 0.0
        %952 = vmatprep.subr.mxu0 0.0
        %953 = vmatpush1.msra.mxu0 0.0
        %954 = vmatprep.subr.mxu0 0.0
        %955 = vmatpush1.msra.mxu0 0.0
        %956 = vmatprep.subr.mxu0 0.0
        %957 = vmatpush1.msra.mxu0 0.0
        %958 = vmatprep.subr.mxu0 0.0
        %959 = vmatpush1.msra.mxu0 %v923
        %960 = vmatprep.subr.mxu0 0.0
        %961 = vmatpush1.msra.mxu0 %v922
        %962 = vmatprep.subr.mxu0 0.0
        %963 = vmatpush1.msra.mxu0 %v921
        %964 = vmatprep.subr.mxu0 0.0
        %965 = vmatpush1.msra.mxu0 %v920
        %966 = vmatprep.subr.mxu0 0.0
        %967 = vmatpush2.msra.mxu0 0.0
        %968 = vmatprep.subr.mxu0 0.0
        %969 = vmatpush2.msra.mxu0 0.0
        %970 = vmatprep.subr.mxu0 0.0
        %971 = vmatpush2.msra.mxu0 0.0
        %972 = vmatprep.subr.mxu0 0.0
        %973 = vmatpush2.msra.mxu0 0.0
        %974 = vmatprep.subr.mxu0 0.0
        %975 = vmatpush2.msra.mxu0 0.0
        %976 = vmatprep.subr.mxu0 0.0
        %977 = vmatpush2.msra.mxu0 0.0
        %978 = vmatprep.subr.mxu0 0.0
        %979 = vmatpush2.msra.mxu0 0.0
        %980 = vmatprep.subr.mxu0 0.0
        %981 = vmatpush2.msra.mxu0 0.0
        %982 = vmatprep.subr.mxu0 0.0
        %983 = vmatpush2.msra.mxu0 0.0
        %984 = vmatprep.subr.mxu0 0.0
        %985 = vmatpush2.msra.mxu0 0.0
        %986 = vmatprep.subr.mxu0 0.0
        %987 = vmatpush2.msra.mxu0 0.0
        %988 = vmatprep.subr.mxu0 0.0
        %989 = vmatpush2.msra.mxu0 0.0
        %990 = vmatprep.subr.mxu0 0.0
        %991 = vmatpush2.msra.mxu0 0.0
        %992 = vmatprep.subr.mxu0 0.0
        %993 = vmatpush2.msra.mxu0 0.0
        %994 = vmatprep.subr.mxu0 0.0
        %995 = vmatpush2.msra.mxu0 0.0
        %996 = vmatprep.subr.mxu0 0.0
        %997 = vmatpush2.msra.mxu0 0.0
        %998 = vmatprep.mubr.f32.mxu0 0.0
        %999 = vmatmul.mubr.f32.gmra.mxu0 %v932
        %v1000 = vpop.f32.mrf.mxu0
        %v1001 = vadd.f32 %v929, %v1000
        %v1002 = vpop.f32.mrf.mxu0
        %1003 = vdwg.mxu0
        %s1004 = scalar_lea.vmem [#allocation3], 14
        %1005 = vst.msk [vmem:[%s1004] sm:$0x3] %vm386, %v1001
        %v1006 = vld [vmem:[%s4] sm:$0x1]
        %s1007 = scalar_lea.vmem %s4, 1
        %v1008 = vld [vmem:[%s1007] sm:$0x1]
        %v1009 = vld [vmem:[#allocation2] sm:$0x3]
        %s1010 = scalar_lea.vmem [#allocation2], 2
        %v1011 = vld [vmem:[%s1010] sm:$0x3]
        %v1012 = vld [vmem:[%s2] sm:$0xff]
        %v1013 = vld [vmem:[%s2 + $0x8] sm:$0xff]
        %v1014 = vld [vmem:[%s2 + $0x10] sm:$0xff]
        %v1015 = vld [vmem:[%s2 + $0x18] sm:$0xff]
        %v1017 = vsel %vm312, %v1009, 0
        %1019 = vmatprep.subr.mxu0 0.0
        %1020 = vmatpush1.msra.mxu0 0.0
        %1021 = vmatprep.subr.mxu0 0.0
        %1022 = vmatpush1.msra.mxu0 0.0
        %1023 = vmatprep.subr.mxu0 0.0
        %1024 = vmatpush1.msra.mxu0 0.0
        %1025 = vmatprep.subr.mxu0 0.0
        %1026 = vmatpush1.msra.mxu0 0.0
        %1027 = vmatprep.subr.mxu0 0.0
        %1028 = vmatpush1.msra.mxu0 0.0
        %1029 = vmatprep.subr.mxu0 0.0
        %1030 = vmatpush1.msra.mxu0 0.0
        %1031 = vmatprep.subr.mxu0 0.0
        %1032 = vmatpush1.msra.mxu0 0.0
        %1033 = vmatprep.subr.mxu0 0.0
        %1034 = vmatpush1.msra.mxu0 0.0
        %1035 = vmatprep.subr.mxu0 0.0
        %1036 = vmatpush1.msra.mxu0 0.0
        %1037 = vmatprep.subr.mxu0 0.0
        %1038 = vmatpush1.msra.mxu0 0.0
        %1039 = vmatprep.subr.mxu0 0.0
        %1040 = vmatpush1.msra.mxu0 0.0
        %1041 = vmatprep.subr.mxu0 0.0
        %1042 = vmatpush1.msra.mxu0 0.0
        %1043 = vmatprep.subr.mxu0 0.0
        %1044 = vmatpush1.msra.mxu0 %v1015
        %1045 = vmatprep.subr.mxu0 0.0
        %1046 = vmatpush1.msra.mxu0 %v1014
        %1047 = vmatprep.subr.mxu0 0.0
        %1048 = vmatpush1.msra.mxu0 %v1013
        %1049 = vmatprep.subr.mxu0 0.0
        %1050 = vmatpush1.msra.mxu0 %v1012
        %1051 = vmatprep.subr.mxu0 0.0
        %1052 = vmatpush2.msra.mxu0 0.0
        %1053 = vmatprep.subr.mxu0 0.0
        %1054 = vmatpush2.msra.mxu0 0.0
        %1055 = vmatprep.subr.mxu0 0.0
        %1056 = vmatpush2.msra.mxu0 0.0
        %1057 = vmatprep.subr.mxu0 0.0
        %1058 = vmatpush2.msra.mxu0 0.0
        %1059 = vmatprep.subr.mxu0 0.0
        %1060 = vmatpush2.msra.mxu0 0.0
        %1061 = vmatprep.subr.mxu0 0.0
        %1062 = vmatpush2.msra.mxu0 0.0
        %1063 = vmatprep.subr.mxu0 0.0
        %1064 = vmatpush2.msra.mxu0 0.0
        %1065 = vmatprep.subr.mxu0 0.0
        %1066 = vmatpush2.msra.mxu0 0.0
        %1067 = vmatprep.subr.mxu0 0.0
        %1068 = vmatpush2.msra.mxu0 0.0
        %1069 = vmatprep.subr.mxu0 0.0
        %1070 = vmatpush2.msra.mxu0 0.0
        %1071 = vmatprep.subr.mxu0 0.0
        %1072 = vmatpush2.msra.mxu0 0.0
        %1073 = vmatprep.subr.mxu0 0.0
        %1074 = vmatpush2.msra.mxu0 0.0
        %1075 = vmatprep.subr.mxu0 0.0
        %1076 = vmatpush2.msra.mxu0 0.0
        %1077 = vmatprep.subr.mxu0 0.0
        %1078 = vmatpush2.msra.mxu0 0.0
        %1079 = vmatprep.subr.mxu0 0.0
        %1080 = vmatpush2.msra.mxu0 0.0
        %1081 = vmatprep.subr.mxu0 0.0
        %1082 = vmatpush2.msra.mxu0 0.0
        %1083 = vmatprep.mubr.f32.mxu0 0.0
        %1084 = vmatmul.mubr.f32.gmra.mxu0 %v1017
        %v1085 = vpop.f32.mrf.mxu0
        %v1086 = vadd.f32 0.0, %v1085
        %v1087 = vpop.f32.mrf.mxu0
        %1088 = vdwg.mxu0
        %s1089 = scalar_lea.vmem %s2, 32
        %v1090 = vld [vmem:[%s1089] sm:$0xff]
        %v1091 = vld [vmem:[%s1089 + $0x8] sm:$0xff]
        %v1092 = vld [vmem:[%s1089 + $0x10] sm:$0xff]
        %v1093 = vld [vmem:[%s1089 + $0x18] sm:$0xff]
        %v1095 = vsel %vm312, %v1011, 0
        %1097 = vmatprep.subr.mxu0 0.0
        %1098 = vmatpush1.msra.mxu0 0.0
        %1099 = vmatprep.subr.mxu0 0.0
        %1100 = vmatpush1.msra.mxu0 0.0
        %1101 = vmatprep.subr.mxu0 0.0
        %1102 = vmatpush1.msra.mxu0 0.0
        %1103 = vmatprep.subr.mxu0 0.0
        %1104 = vmatpush1.msra.mxu0 0.0
        %1105 = vmatprep.subr.mxu0 0.0
        %1106 = vmatpush1.msra.mxu0 0.0
        %1107 = vmatprep.subr.mxu0 0.0
        %1108 = vmatpush1.msra.mxu0 0.0
        %1109 = vmatprep.subr.mxu0 0.0
        %1110 = vmatpush1.msra.mxu0 0.0
        %1111 = vmatprep.subr.mxu0 0.0
        %1112 = vmatpush1.msra.mxu0 0.0
        %1113 = vmatprep.subr.mxu0 0.0
        %1114 = vmatpush1.msra.mxu0 0.0
        %1115 = vmatprep.subr.mxu0 0.0
        %1116 = vmatpush1.msra.mxu0 0.0
        %1117 = vmatprep.subr.mxu0 0.0
        %1118 = vmatpush1.msra.mxu0 0.0
        %1119 = vmatprep.subr.mxu0 0.0
        %1120 = vmatpush1.msra.mxu0 0.0
        %1121 = vmatprep.subr.mxu0 0.0
        %1122 = vmatpush1.msra.mxu0 %v1093
        %1123 = vmatprep.subr.mxu0 0.0
        %1124 = vmatpush1.msra.mxu0 %v1092
        %1125 = vmatprep.subr.mxu0 0.0
        %1126 = vmatpush1.msra.mxu0 %v1091
        %1127 = vmatprep.subr.mxu0 0.0
        %1128 = vmatpush1.msra.mxu0 %v1090
        %1129 = vmatprep.subr.mxu0 0.0
        %1130 = vmatpush2.msra.mxu0 0.0
        %1131 = vmatprep.subr.mxu0 0.0
        %1132 = vmatpush2.msra.mxu0 0.0
        %1133 = vmatprep.subr.mxu0 0.0
        %1134 = vmatpush2.msra.mxu0 0.0
        %1135 = vmatprep.subr.mxu0 0.0
        %1136 = vmatpush2.msra.mxu0 0.0
        %1137 = vmatprep.subr.mxu0 0.0
        %1138 = vmatpush2.msra.mxu0 0.0
        %1139 = vmatprep.subr.mxu0 0.0
        %1140 = vmatpush2.msra.mxu0 0.0
        %1141 = vmatprep.subr.mxu0 0.0
        %1142 = vmatpush2.msra.mxu0 0.0
        %1143 = vmatprep.subr.mxu0 0.0
        %1144 = vmatpush2.msra.mxu0 0.0
        %1145 = vmatprep.subr.mxu0 0.0
        %1146 = vmatpush2.msra.mxu0 0.0
        %1147 = vmatprep.subr.mxu0 0.0
        %1148 = vmatpush2.msra.mxu0 0.0
        %1149 = vmatprep.subr.mxu0 0.0
        %1150 = vmatpush2.msra.mxu0 0.0
        %1151 = vmatprep.subr.mxu0 0.0
        %1152 = vmatpush2.msra.mxu0 0.0
        %1153 = vmatprep.subr.mxu0 0.0
        %1154 = vmatpush2.msra.mxu0 0.0
        %1155 = vmatprep.subr.mxu0 0.0
        %1156 = vmatpush2.msra.mxu0 0.0
        %1157 = vmatprep.subr.mxu0 0.0
        %1158 = vmatpush2.msra.mxu0 0.0
        %1159 = vmatprep.subr.mxu0 0.0
        %1160 = vmatpush2.msra.mxu0 0.0
        %1161 = vmatprep.mubr.f32.mxu0 0.0
        %1162 = vmatmul.mubr.f32.gmra.mxu0 %v1095
        %v1163 = vpop.f32.mrf.mxu0
        %v1164 = vadd.f32 0.0, %v1163
        %v1165 = vpop.f32.mrf.mxu0
        %1166 = vdwg.mxu0
        %v1167 = vld [vmem:[#allocation3] sm:$0x3]
        %v1168 = vadd.f32 %v1167, %v1086
        %v1169 = vxor.u32 %v1168, 2147483648
        %v1170 = vmul.f32 %v1169, 1.442695
        %v1171 = vpow.pop %v1170
        %v1172 = vadd.f32 %v1171, 1.0
        %v1173 = vrcp.pop %v1172
        %v1174 = vmul.f32 1.0, %v1173
        %v1176 = vlaneseq
        %v1177 = vshrl.u32 %v1176, 7
        %v1178 = vsub.s32 0, %v1177
        %v1179 = vrot.slane %v1006, %v1178
        %1180 = vrot.lane.b32.xlu0 %v1179, 64
        %v1181 = vpop.permute.xlu0 %1180
        %v1183 = vadd.f32 %v1086, %v1181
        %1185 = vrot.lane.b32.xlu0 %v1183, 64
        %v1186 = vpop.permute.xlu0 %1185
        %v1188 = vmul.f32 %v1174, %v1186
        %1190 = vrot.lane.b32.xlu0 %v1188, 64
        %v1191 = vpop.permute.xlu0 %1190
        %v1193 = vadd.f32 %v1167, %v1191
        %v1194 = vtanh.pop %v1193
        %v1195 = vsub.f32 1.0, %v1174
        %1197 = vrot.lane.b32.xlu0 %v1194, 96
        %v1198 = vpop.permute.xlu0 %1197
        %v1200 = vmul.f32 %v1195, %v1198
        %1201 = vrot.lane.b32.xlu0 %v1009, 32
        %v1202 = vpop.permute.xlu0 %1201
        %v1204 = vmul.f32 %v1174, %v1202
        %v1205 = vadd.f32 %v1200, %v1204
        %v1206 = vld [vmem:[%s476] sm:$0x3]
        %v1207 = vadd.f32 %v1206, %v1164
        %v1208 = vxor.u32 %v1207, 2147483648
        %v1209 = vmul.f32 %v1208, 1.442695
        %v1210 = vpow.pop %v1209
        %v1211 = vadd.f32 %v1210, 1.0
        %v1212 = vrcp.pop %v1211
        %v1213 = vmul.f32 1.0, %v1212
        %v1215 = vlaneseq
        %v1216 = vshrl.u32 %v1215, 7
        %v1217 = vsub.s32 0, %v1216
        %v1218 = vrot.slane %v1008, %v1217
        %1219 = vrot.lane.b32.xlu0 %v1218, 64
        %v1220 = vpop.permute.xlu0 %1219
        %v1222 = vadd.f32 %v1164, %v1220
        %1224 = vrot.lane.b32.xlu0 %v1222, 64
        %v1225 = vpop.permute.xlu0 %1224
        %v1227 = vmul.f32 %v1213, %v1225
        %1229 = vrot.lane.b32.xlu0 %v1227, 64
        %v1230 = vpop.permute.xlu0 %1229
        %v1232 = vadd.f32 %v1206, %v1230
        %v1233 = vtanh.pop %v1232
        %v1234 = vsub.f32 1.0, %v1213
        %1236 = vrot.lane.b32.xlu0 %v1233, 96
        %v1237 = vpop.permute.xlu0 %1236
        %v1239 = vmul.f32 %v1234, %v1237
        %1240 = vrot.lane.b32.xlu0 %v1011, 32
        %v1241 = vpop.permute.xlu0 %1240
        %v1243 = vmul.f32 %v1213, %v1241
        %v1244 = vadd.f32 %v1239, %v1243
        %1246 = vrot.lane.b32.xlu0 %v1205, 96
        %v1247 = vpop.permute.xlu0 %1246
        %vm1249 = vcmask 254976
        %1250 = vst.msk [vmem:[%s290] sm:$0x3] %vm1249, %v1247
        %1252 = vrot.lane.b32.xlu0 %v1244, 96
        %v1253 = vpop.permute.xlu0 %1252
        %s1255 = scalar_lea.vmem %s290, 8 [#allocation5]
        %1256 = vst.msk [vmem:[%s1255] sm:$0x3] %vm1249, %v1253
        %v1257 = vld [vmem:[%s2] sm:$0xff]
        %v1258 = vld [vmem:[%s2 + $0x8] sm:$0xff]
        %v1259 = vld [vmem:[%s2 + $0x10] sm:$0xff]
        %v1260 = vld [vmem:[%s2 + $0x18] sm:$0xff]
        %v1261 = vsel %vm312, %v1247, 0
        %1263 = vmatprep.subr.mxu0 0.0
        %1264 = vmatpush1.msra.mxu0 0.0
        %1265 = vmatprep.subr.mxu0 0.0
        %1266 = vmatpush1.msra.mxu0 0.0
        %1267 = vmatprep.subr.mxu0 0.0
        %1268 = vmatpush1.msra.mxu0 0.0
        %1269 = vmatprep.subr.mxu0 0.0
        %1270 = vmatpush1.msra.mxu0 0.0
        %1271 = vmatprep.subr.mxu0 0.0
        %1272 = vmatpush1.msra.mxu0 0.0
        %1273 = vmatprep.subr.mxu0 0.0
        %1274 = vmatpush1.msra.mxu0 0.0
        %1275 = vmatprep.subr.mxu0 0.0
        %1276 = vmatpush1.msra.mxu0 0.0
        %1277 = vmatprep.subr.mxu0 0.0
        %1278 = vmatpush1.msra.mxu0 0.0
        %1279 = vmatprep.subr.mxu0 0.0
        %1280 = vmatpush1.msra.mxu0 0.0
        %1281 = vmatprep.subr.mxu0 0.0
        %1282 = vmatpush1.msra.mxu0 0.0
        %1283 = vmatprep.subr.mxu0 0.0
        %1284 = vmatpush1.msra.mxu0 0.0
        %1285 = vmatprep.subr.mxu0 0.0
        %1286 = vmatpush1.msra.mxu0 0.0
        %1287 = vmatprep.subr.mxu0 0.0
        %1288 = vmatpush1.msra.mxu0 %v1260
        %1289 = vmatprep.subr.mxu0 0.0
        %1290 = vmatpush1.msra.mxu0 %v1259
        %1291 = vmatprep.subr.mxu0 0.0
        %1292 = vmatpush1.msra.mxu0 %v1258
        %1293 = vmatprep.subr.mxu0 0.0
        %1294 = vmatpush1.msra.mxu0 %v1257
        %1295 = vmatprep.subr.mxu0 0.0
        %1296 = vmatpush2.msra.mxu0 0.0
        %1297 = vmatprep.subr.mxu0 0.0
        %1298 = vmatpush2.msra.mxu0 0.0
        %1299 = vmatprep.subr.mxu0 0.0
        %1300 = vmatpush2.msra.mxu0 0.0
        %1301 = vmatprep.subr.mxu0 0.0
        %1302 = vmatpush2.msra.mxu0 0.0
        %1303 = vmatprep.subr.mxu0 0.0
        %1304 = vmatpush2.msra.mxu0 0.0
        %1305 = vmatprep.subr.mxu0 0.0
        %1306 = vmatpush2.msra.mxu0 0.0
        %1307 = vmatprep.subr.mxu0 0.0
        %1308 = vmatpush2.msra.mxu0 0.0
        %1309 = vmatprep.subr.mxu0 0.0
        %1310 = vmatpush2.msra.mxu0 0.0
        %1311 = vmatprep.subr.mxu0 0.0
        %1312 = vmatpush2.msra.mxu0 0.0
        %1313 = vmatprep.subr.mxu0 0.0
        %1314 = vmatpush2.msra.mxu0 0.0
        %1315 = vmatprep.subr.mxu0 0.0
        %1316 = vmatpush2.msra.mxu0 0.0
        %1317 = vmatprep.subr.mxu0 0.0
        %1318 = vmatpush2.msra.mxu0 0.0
        %1319 = vmatprep.subr.mxu0 0.0
        %1320 = vmatpush2.msra.mxu0 0.0
        %1321 = vmatprep.subr.mxu0 0.0
        %1322 = vmatpush2.msra.mxu0 0.0
        %1323 = vmatprep.subr.mxu0 0.0
        %1324 = vmatpush2.msra.mxu0 0.0
        %1325 = vmatprep.subr.mxu0 0.0
        %1326 = vmatpush2.msra.mxu0 0.0
        %1327 = vmatprep.mubr.f32.mxu0 0.0
        %1328 = vmatmul.mubr.f32.gmra.mxu0 %v1261
        %v1329 = vpop.f32.mrf.mxu0
        %v1330 = vadd.f32 0.0, %v1329
        %v1331 = vpop.f32.mrf.mxu0
        %1332 = vdwg.mxu0
        %v1333 = vld [vmem:[%s1089] sm:$0xff]
        %v1334 = vld [vmem:[%s1089 + $0x8] sm:$0xff]
        %v1335 = vld [vmem:[%s1089 + $0x10] sm:$0xff]
        %v1336 = vld [vmem:[%s1089 + $0x18] sm:$0xff]
        %v1337 = vsel %vm312, %v1253, 0
        %1339 = vmatprep.subr.mxu0 0.0
        %1340 = vmatpush1.msra.mxu0 0.0
        %1341 = vmatprep.subr.mxu0 0.0
        %1342 = vmatpush1.msra.mxu0 0.0
        %1343 = vmatprep.subr.mxu0 0.0
        %1344 = vmatpush1.msra.mxu0 0.0
        %1345 = vmatprep.subr.mxu0 0.0
        %1346 = vmatpush1.msra.mxu0 0.0
        %1347 = vmatprep.subr.mxu0 0.0
        %1348 = vmatpush1.msra.mxu0 0.0
        %1349 = vmatprep.subr.mxu0 0.0
        %1350 = vmatpush1.msra.mxu0 0.0
        %1351 = vmatprep.subr.mxu0 0.0
        %1352 = vmatpush1.msra.mxu0 0.0
        %1353 = vmatprep.subr.mxu0 0.0
        %1354 = vmatpush1.msra.mxu0 0.0
        %1355 = vmatprep.subr.mxu0 0.0
        %1356 = vmatpush1.msra.mxu0 0.0
        %1357 = vmatprep.subr.mxu0 0.0
        %1358 = vmatpush1.msra.mxu0 0.0
        %1359 = vmatprep.subr.mxu0 0.0
        %1360 = vmatpush1.msra.mxu0 0.0
        %1361 = vmatprep.subr.mxu0 0.0
        %1362 = vmatpush1.msra.mxu0 0.0
        %1363 = vmatprep.subr.mxu0 0.0
        %1364 = vmatpush1.msra.mxu0 %v1336
        %1365 = vmatprep.subr.mxu0 0.0
        %1366 = vmatpush1.msra.mxu0 %v1335
        %1367 = vmatprep.subr.mxu0 0.0
        %1368 = vmatpush1.msra.mxu0 %v1334
        %1369 = vmatprep.subr.mxu0 0.0
        %1370 = vmatpush1.msra.mxu0 %v1333
        %1371 = vmatprep.subr.mxu0 0.0
        %1372 = vmatpush2.msra.mxu0 0.0
        %1373 = vmatprep.subr.mxu0 0.0
        %1374 = vmatpush2.msra.mxu0 0.0
        %1375 = vmatprep.subr.mxu0 0.0
        %1376 = vmatpush2.msra.mxu0 0.0
        %1377 = vmatprep.subr.mxu0 0.0
        %1378 = vmatpush2.msra.mxu0 0.0
        %1379 = vmatprep.subr.mxu0 0.0
        %1380 = vmatpush2.msra.mxu0 0.0
        %1381 = vmatprep.subr.mxu0 0.0
        %1382 = vmatpush2.msra.mxu0 0.0
        %1383 = vmatprep.subr.mxu0 0.0
        %1384 = vmatpush2.msra.mxu0 0.0
        %1385 = vmatprep.subr.mxu0 0.0
        %1386 = vmatpush2.msra.mxu0 0.0
        %1387 = vmatprep.subr.mxu0 0.0
        %1388 = vmatpush2.msra.mxu0 0.0
        %1389 = vmatprep.subr.mxu0 0.0
        %1390 = vmatpush2.msra.mxu0 0.0
        %1391 = vmatprep.subr.mxu0 0.0
        %1392 = vmatpush2.msra.mxu0 0.0
        %1393 = vmatprep.subr.mxu0 0.0
        %1394 = vmatpush2.msra.mxu0 0.0
        %1395 = vmatprep.subr.mxu0 0.0
        %1396 = vmatpush2.msra.mxu0 0.0
        %1397 = vmatprep.subr.mxu0 0.0
        %1398 = vmatpush2.msra.mxu0 0.0
        %1399 = vmatprep.subr.mxu0 0.0
        %1400 = vmatpush2.msra.mxu0 0.0
        %1401 = vmatprep.subr.mxu0 0.0
        %1402 = vmatpush2.msra.mxu0 0.0
        %1403 = vmatprep.mubr.f32.mxu0 0.0
        %1404 = vmatmul.mubr.f32.gmra.mxu0 %v1337
        %v1405 = vpop.f32.mrf.mxu0
        %v1406 = vadd.f32 0.0, %v1405
        %v1407 = vpop.f32.mrf.mxu0
        %1408 = vdwg.mxu0
        %v1409 = vld [vmem:[%s564] sm:$0x3]
        %v1410 = vadd.f32 %v1409, %v1330
        %v1411 = vxor.u32 %v1410, 2147483648
        %v1412 = vmul.f32 %v1411, 1.442695
        %v1413 = vpow.pop %v1412
        %v1414 = vadd.f32 %v1413, 1.0
        %v1415 = vrcp.pop %v1414
        %v1416 = vmul.f32 1.0, %v1415
        %v1417 = vadd.f32 %v1330, %v1181
        %1419 = vrot.lane.b32.xlu0 %v1417, 64
        %v1420 = vpop.permute.xlu0 %1419
        %v1422 = vmul.f32 %v1416, %v1420
        %1424 = vrot.lane.b32.xlu0 %v1422, 64
        %v1425 = vpop.permute.xlu0 %1424
        %v1427 = vadd.f32 %v1409, %v1425
        %v1428 = vtanh.pop %v1427
        %v1429 = vsub.f32 1.0, %v1416
        %1431 = vrot.lane.b32.xlu0 %v1428, 96
        %v1432 = vpop.permute.xlu0 %1431
        %v1434 = vmul.f32 %v1429, %v1432
        %v1435 = vmul.f32 %v1416, %v1205
        %v1436 = vadd.f32 %v1434, %v1435
        %v1437 = vld [vmem:[%s652] sm:$0x3]
        %v1438 = vadd.f32 %v1437, %v1406
        %v1439 = vxor.u32 %v1438, 2147483648
        %v1440 = vmul.f32 %v1439, 1.442695
        %v1441 = vpow.pop %v1440
        %v1442 = vadd.f32 %v1441, 1.0
        %v1443 = vrcp.pop %v1442
        %v1444 = vmul.f32 1.0, %v1443
        %v1445 = vadd.f32 %v1406, %v1220
        %1447 = vrot.lane.b32.xlu0 %v1445, 64
        %v1448 = vpop.permute.xlu0 %1447
        %v1450 = vmul.f32 %v1444, %v1448
        %1452 = vrot.lane.b32.xlu0 %v1450, 64
        %v1453 = vpop.permute.xlu0 %1452
        %v1455 = vadd.f32 %v1437, %v1453
        %v1456 = vtanh.pop %v1455
        %v1457 = vsub.f32 1.0, %v1444
        %1459 = vrot.lane.b32.xlu0 %v1456, 96
        %v1460 = vpop.permute.xlu0 %1459
        %v1462 = vmul.f32 %v1457, %v1460
        %v1463 = vmul.f32 %v1444, %v1244
        %v1464 = vadd.f32 %v1462, %v1463
        %1466 = vrot.lane.b32.xlu0 %v1436, 96
        %v1467 = vpop.permute.xlu0 %1466
        %s1469 = scalar_lea.vmem %s290, 2 [#allocation5]
        %1470 = vst.msk [vmem:[%s1469] sm:$0x3] %vm1249, %v1467
        %1472 = vrot.lane.b32.xlu0 %v1464, 96
        %v1473 = vpop.permute.xlu0 %1472
        %s1475 = scalar_lea.vmem %s290, 10 [#allocation5]
        %1476 = vst.msk [vmem:[%s1475] sm:$0x3] %vm1249, %v1473
        %v1477 = vld [vmem:[%s2] sm:$0xff]
        %v1478 = vld [vmem:[%s2 + $0x8] sm:$0xff]
        %v1479 = vld [vmem:[%s2 + $0x10] sm:$0xff]
        %v1480 = vld [vmem:[%s2 + $0x18] sm:$0xff]
        %v1481 = vsel %vm312, %v1467, 0
        %1483 = vmatprep.subr.mxu0 0.0
        %1484 = vmatpush1.msra.mxu0 0.0
        %1485 = vmatprep.subr.mxu0 0.0
        %1486 = vmatpush1.msra.mxu0 0.0
        %1487 = vmatprep.subr.mxu0 0.0
        %1488 = vmatpush1.msra.mxu0 0.0
        %1489 = vmatprep.subr.mxu0 0.0
        %1490 = vmatpush1.msra.mxu0 0.0
        %1491 = vmatprep.subr.mxu0 0.0
        %1492 = vmatpush1.msra.mxu0 0.0
        %1493 = vmatprep.subr.mxu0 0.0
        %1494 = vmatpush1.msra.mxu0 0.0
        %1495 = vmatprep.subr.mxu0 0.0
        %1496 = vmatpush1.msra.mxu0 0.0
        %1497 = vmatprep.subr.mxu0 0.0
        %1498 = vmatpush1.msra.mxu0 0.0
        %1499 = vmatprep.subr.mxu0 0.0
        %1500 = vmatpush1.msra.mxu0 0.0
        %1501 = vmatprep.subr.mxu0 0.0
        %1502 = vmatpush1.msra.mxu0 0.0
        %1503 = vmatprep.subr.mxu0 0.0
        %1504 = vmatpush1.msra.mxu0 0.0
        %1505 = vmatprep.subr.mxu0 0.0
        %1506 = vmatpush1.msra.mxu0 0.0
        %1507 = vmatprep.subr.mxu0 0.0
        %1508 = vmatpush1.msra.mxu0 %v1480
        %1509 = vmatprep.subr.mxu0 0.0
        %1510 = vmatpush1.msra.mxu0 %v1479
        %1511 = vmatprep.subr.mxu0 0.0
        %1512 = vmatpush1.msra.mxu0 %v1478
        %1513 = vmatprep.subr.mxu0 0.0
        %1514 = vmatpush1.msra.mxu0 %v1477
        %1515 = vmatprep.subr.mxu0 0.0
        %1516 = vmatpush2.msra.mxu0 0.0
        %1517 = vmatprep.subr.mxu0 0.0
        %1518 = vmatpush2.msra.mxu0 0.0
        %1519 = vmatprep.subr.mxu0 0.0
        %1520 = vmatpush2.msra.mxu0 0.0
        %1521 = vmatprep.subr.mxu0 0.0
        %1522 = vmatpush2.msra.mxu0 0.0
        %1523 = vmatprep.subr.mxu0 0.0
        %1524 = vmatpush2.msra.mxu0 0.0
        %1525 = vmatprep.subr.mxu0 0.0
        %1526 = vmatpush2.msra.mxu0 0.0
        %1527 = vmatprep.subr.mxu0 0.0
        %1528 = vmatpush2.msra.mxu0 0.0
        %1529 = vmatprep.subr.mxu0 0.0
        %1530 = vmatpush2.msra.mxu0 0.0
        %1531 = vmatprep.subr.mxu0 0.0
        %1532 = vmatpush2.msra.mxu0 0.0
        %1533 = vmatprep.subr.mxu0 0.0
        %1534 = vmatpush2.msra.mxu0 0.0
        %1535 = vmatprep.subr.mxu0 0.0
        %1536 = vmatpush2.msra.mxu0 0.0
        %1537 = vmatprep.subr.mxu0 0.0
        %1538 = vmatpush2.msra.mxu0 0.0
        %1539 = vmatprep.subr.mxu0 0.0
        %1540 = vmatpush2.msra.mxu0 0.0
        %1541 = vmatprep.subr.mxu0 0.0
        %1542 = vmatpush2.msra.mxu0 0.0
        %1543 = vmatprep.subr.mxu0 0.0
        %1544 = vmatpush2.msra.mxu0 0.0
        %1545 = vmatprep.subr.mxu0 0.0
        %1546 = vmatpush2.msra.mxu0 0.0
        %1547 = vmatprep.mubr.f32.mxu0 0.0
        %1548 = vmatmul.mubr.f32.gmra.mxu0 %v1481
        %v1549 = vpop.f32.mrf.mxu0
        %v1550 = vadd.f32 0.0, %v1549
        %v1551 = vpop.f32.mrf.mxu0
        %1552 = vdwg.mxu0
        %v1553 = vld [vmem:[%s1089] sm:$0xff]
        %v1554 = vld [vmem:[%s1089 + $0x8] sm:$0xff]
        %v1555 = vld [vmem:[%s1089 + $0x10] sm:$0xff]
        %v1556 = vld [vmem:[%s1089 + $0x18] sm:$0xff]
        %v1557 = vsel %vm312, %v1473, 0
        %1559 = vmatprep.subr.mxu0 0.0
        %1560 = vmatpush1.msra.mxu0 0.0
        %1561 = vmatprep.subr.mxu0 0.0
        %1562 = vmatpush1.msra.mxu0 0.0
        %1563 = vmatprep.subr.mxu0 0.0
        %1564 = vmatpush1.msra.mxu0 0.0
        %1565 = vmatprep.subr.mxu0 0.0
        %1566 = vmatpush1.msra.mxu0 0.0
        %1567 = vmatprep.subr.mxu0 0.0
        %1568 = vmatpush1.msra.mxu0 0.0
        %1569 = vmatprep.subr.mxu0 0.0
        %1570 = vmatpush1.msra.mxu0 0.0
        %1571 = vmatprep.subr.mxu0 0.0
        %1572 = vmatpush1.msra.mxu0 0.0
        %1573 = vmatprep.subr.mxu0 0.0
        %1574 = vmatpush1.msra.mxu0 0.0
        %1575 = vmatprep.subr.mxu0 0.0
        %1576 = vmatpush1.msra.mxu0 0.0
        %1577 = vmatprep.subr.mxu0 0.0
        %1578 = vmatpush1.msra.mxu0 0.0
        %1579 = vmatprep.subr.mxu0 0.0
        %1580 = vmatpush1.msra.mxu0 0.0
        %1581 = vmatprep.subr.mxu0 0.0
        %1582 = vmatpush1.msra.mxu0 0.0
        %1583 = vmatprep.subr.mxu0 0.0
        %1584 = vmatpush1.msra.mxu0 %v1556
        %1585 = vmatprep.subr.mxu0 0.0
        %1586 = vmatpush1.msra.mxu0 %v1555
        %1587 = vmatprep.subr.mxu0 0.0
        %1588 = vmatpush1.msra.mxu0 %v1554
        %1589 = vmatprep.subr.mxu0 0.0
        %1590 = vmatpush1.msra.mxu0 %v1553
        %1591 = vmatprep.subr.mxu0 0.0
        %1592 = vmatpush2.msra.mxu0 0.0
        %1593 = vmatprep.subr.mxu0 0.0
        %1594 = vmatpush2.msra.mxu0 0.0
        %1595 = vmatprep.subr.mxu0 0.0
        %1596 = vmatpush2.msra.mxu0 0.0
        %1597 = vmatprep.subr.mxu0 0.0
        %1598 = vmatpush2.msra.mxu0 0.0
        %1599 = vmatprep.subr.mxu0 0.0
        %1600 = vmatpush2.msra.mxu0 0.0
        %1601 = vmatprep.subr.mxu0 0.0
        %1602 = vmatpush2.msra.mxu0 0.0
        %1603 = vmatprep.subr.mxu0 0.0
        %1604 = vmatpush2.msra.mxu0 0.0
        %1605 = vmatprep.subr.mxu0 0.0
        %1606 = vmatpush2.msra.mxu0 0.0
        %1607 = vmatprep.subr.mxu0 0.0
        %1608 = vmatpush2.msra.mxu0 0.0
        %1609 = vmatprep.subr.mxu0 0.0
        %1610 = vmatpush2.msra.mxu0 0.0
        %1611 = vmatprep.subr.mxu0 0.0
        %1612 = vmatpush2.msra.mxu0 0.0
        %1613 = vmatprep.subr.mxu0 0.0
        %1614 = vmatpush2.msra.mxu0 0.0
        %1615 = vmatprep.subr.mxu0 0.0
        %1616 = vmatpush2.msra.mxu0 0.0
        %1617 = vmatprep.subr.mxu0 0.0
        %1618 = vmatpush2.msra.mxu0 0.0
        %1619 = vmatprep.subr.mxu0 0.0
        %1620 = vmatpush2.msra.mxu0 0.0
        %1621 = vmatprep.subr.mxu0 0.0
        %1622 = vmatpush2.msra.mxu0 0.0
        %1623 = vmatprep.mubr.f32.mxu0 0.0
        %1624 = vmatmul.mubr.f32.gmra.mxu0 %v1557
        %v1625 = vpop.f32.mrf.mxu0
        %v1626 = vadd.f32 0.0, %v1625
        %v1627 = vpop.f32.mrf.mxu0
        %1628 = vdwg.mxu0
        %v1629 = vld [vmem:[%s740] sm:$0x3]
        %v1630 = vadd.f32 %v1629, %v1550
        %v1631 = vxor.u32 %v1630, 2147483648
        %v1632 = vmul.f32 %v1631, 1.442695
        %v1633 = vpow.pop %v1632
        %v1634 = vadd.f32 %v1633, 1.0
        %v1635 = vrcp.pop %v1634
        %v1636 = vmul.f32 1.0, %v1635
        %v1637 = vadd.f32 %v1550, %v1181
        %1639 = vrot.lane.b32.xlu0 %v1637, 64
        %v1640 = vpop.permute.xlu0 %1639
        %v1642 = vmul.f32 %v1636, %v1640
        %1644 = vrot.lane.b32.xlu0 %v1642, 64
        %v1645 = vpop.permute.xlu0 %1644
        %v1647 = vadd.f32 %v1629, %v1645
        %v1648 = vtanh.pop %v1647
        %v1649 = vsub.f32 1.0, %v1636
        %1651 = vrot.lane.b32.xlu0 %v1648, 96
        %v1652 = vpop.permute.xlu0 %1651
        %v1654 = vmul.f32 %v1649, %v1652
        %v1655 = vmul.f32 %v1636, %v1436
        %v1656 = vadd.f32 %v1654, %v1655
        %v1657 = vld [vmem:[%s828] sm:$0x3]
        %v1658 = vadd.f32 %v1657, %v1626
        %v1659 = vxor.u32 %v1658, 2147483648
        %v1660 = vmul.f32 %v1659, 1.442695
        %v1661 = vpow.pop %v1660
        %v1662 = vadd.f32 %v1661, 1.0
        %v1663 = vrcp.pop %v1662
        %v1664 = vmul.f32 1.0, %v1663
        %v1665 = vadd.f32 %v1626, %v1220
        %1667 = vrot.lane.b32.xlu0 %v1665, 64
        %v1668 = vpop.permute.xlu0 %1667
        %v1670 = vmul.f32 %v1664, %v1668
        %1672 = vrot.lane.b32.xlu0 %v1670, 64
        %v1673 = vpop.permute.xlu0 %1672
        %v1675 = vadd.f32 %v1657, %v1673
        %v1676 = vtanh.pop %v1675
        %v1677 = vsub.f32 1.0, %v1664
        %1679 = vrot.lane.b32.xlu0 %v1676, 96
        %v1680 = vpop.permute.xlu0 %1679
        %v1682 = vmul.f32 %v1677, %v1680
        %v1683 = vmul.f32 %v1664, %v1464
        %v1684 = vadd.f32 %v1682, %v1683
        %1686 = vrot.lane.b32.xlu0 %v1656, 96
        %v1687 = vpop.permute.xlu0 %1686
        %s1689 = scalar_lea.vmem %s290, 4 [#allocation5]
        %1690 = vst.msk [vmem:[%s1689] sm:$0x3] %vm1249, %v1687
        %1692 = vrot.lane.b32.xlu0 %v1684, 96
        %v1693 = vpop.permute.xlu0 %1692
        %s1695 = scalar_lea.vmem %s290, 12 [#allocation5]
        %1696 = vst.msk [vmem:[%s1695] sm:$0x3] %vm1249, %v1693
        %v1697 = vld [vmem:[%s2] sm:$0xff]
        %v1698 = vld [vmem:[%s2 + $0x8] sm:$0xff]
        %v1699 = vld [vmem:[%s2 + $0x10] sm:$0xff]
        %v1700 = vld [vmem:[%s2 + $0x18] sm:$0xff]
        %v1701 = vsel %vm312, %v1687, 0
        %1703 = vmatprep.subr.mxu0 0.0
        %1704 = vmatpush1.msra.mxu0 0.0
        %1705 = vmatprep.subr.mxu0 0.0
        %1706 = vmatpush1.msra.mxu0 0.0
        %1707 = vmatprep.subr.mxu0 0.0
        %1708 = vmatpush1.msra.mxu0 0.0
        %1709 = vmatprep.subr.mxu0 0.0
        %1710 = vmatpush1.msra.mxu0 0.0
        %1711 = vmatprep.subr.mxu0 0.0
        %1712 = vmatpush1.msra.mxu0 0.0
        %1713 = vmatprep.subr.mxu0 0.0
        %1714 = vmatpush1.msra.mxu0 0.0
        %1715 = vmatprep.subr.mxu0 0.0
        %1716 = vmatpush1.msra.mxu0 0.0
        %1717 = vmatprep.subr.mxu0 0.0
        %1718 = vmatpush1.msra.mxu0 0.0
        %1719 = vmatprep.subr.mxu0 0.0
        %1720 = vmatpush1.msra.mxu0 0.0
        %1721 = vmatprep.subr.mxu0 0.0
        %1722 = vmatpush1.msra.mxu0 0.0
        %1723 = vmatprep.subr.mxu0 0.0
        %1724 = vmatpush1.msra.mxu0 0.0
        %1725 = vmatprep.subr.mxu0 0.0
        %1726 = vmatpush1.msra.mxu0 0.0
        %1727 = vmatprep.subr.mxu0 0.0
        %1728 = vmatpush1.msra.mxu0 %v1700
        %1729 = vmatprep.subr.mxu0 0.0
        %1730 = vmatpush1.msra.mxu0 %v1699
        %1731 = vmatprep.subr.mxu0 0.0
        %1732 = vmatpush1.msra.mxu0 %v1698
        %1733 = vmatprep.subr.mxu0 0.0
        %1734 = vmatpush1.msra.mxu0 %v1697
        %1735 = vmatprep.subr.mxu0 0.0
        %1736 = vmatpush2.msra.mxu0 0.0
        %1737 = vmatprep.subr.mxu0 0.0
        %1738 = vmatpush2.msra.mxu0 0.0
        %1739 = vmatprep.subr.mxu0 0.0
        %1740 = vmatpush2.msra.mxu0 0.0
        %1741 = vmatprep.subr.mxu0 0.0
        %1742 = vmatpush2.msra.mxu0 0.0
        %1743 = vmatprep.subr.mxu0 0.0
        %1744 = vmatpush2.msra.mxu0 0.0
        %1745 = vmatprep.subr.mxu0 0.0
        %1746 = vmatpush2.msra.mxu0 0.0
        %1747 = vmatprep.subr.mxu0 0.0
        %1748 = vmatpush2.msra.mxu0 0.0
        %1749 = vmatprep.subr.mxu0 0.0
        %1750 = vmatpush2.msra.mxu0 0.0
        %1751 = vmatprep.subr.mxu0 0.0
        %1752 = vmatpush2.msra.mxu0 0.0
        %1753 = vmatprep.subr.mxu0 0.0
        %1754 = vmatpush2.msra.mxu0 0.0
        %1755 = vmatprep.subr.mxu0 0.0
        %1756 = vmatpush2.msra.mxu0 0.0
        %1757 = vmatprep.subr.mxu0 0.0
        %1758 = vmatpush2.msra.mxu0 0.0
        %1759 = vmatprep.subr.mxu0 0.0
        %1760 = vmatpush2.msra.mxu0 0.0
        %1761 = vmatprep.subr.mxu0 0.0
        %1762 = vmatpush2.msra.mxu0 0.0
        %1763 = vmatprep.subr.mxu0 0.0
        %1764 = vmatpush2.msra.mxu0 0.0
        %1765 = vmatprep.subr.mxu0 0.0
        %1766 = vmatpush2.msra.mxu0 0.0
        %1767 = vmatprep.mubr.f32.mxu0 0.0
        %1768 = vmatmul.mubr.f32.gmra.mxu0 %v1701
        %v1769 = vpop.f32.mrf.mxu0
        %v1770 = vadd.f32 0.0, %v1769
        %v1771 = vpop.f32.mrf.mxu0
        %1772 = vdwg.mxu0
        %v1773 = vld [vmem:[%s1089] sm:$0xff]
        %v1774 = vld [vmem:[%s1089 + $0x8] sm:$0xff]
        %v1775 = vld [vmem:[%s1089 + $0x10] sm:$0xff]
        %v1776 = vld [vmem:[%s1089 + $0x18] sm:$0xff]
        %v1777 = vsel %vm312, %v1693, 0
        %1779 = vmatprep.subr.mxu0 0.0
        %1780 = vmatpush1.msra.mxu0 0.0
        %1781 = vmatprep.subr.mxu0 0.0
        %1782 = vmatpush1.msra.mxu0 0.0
        %1783 = vmatprep.subr.mxu0 0.0
        %1784 = vmatpush1.msra.mxu0 0.0
        %1785 = vmatprep.subr.mxu0 0.0
        %1786 = vmatpush1.msra.mxu0 0.0
        %1787 = vmatprep.subr.mxu0 0.0
        %1788 = vmatpush1.msra.mxu0 0.0
        %1789 = vmatprep.subr.mxu0 0.0
        %1790 = vmatpush1.msra.mxu0 0.0
        %1791 = vmatprep.subr.mxu0 0.0
        %1792 = vmatpush1.msra.mxu0 0.0
        %1793 = vmatprep.subr.mxu0 0.0
        %1794 = vmatpush1.msra.mxu0 0.0
        %1795 = vmatprep.subr.mxu0 0.0
        %1796 = vmatpush1.msra.mxu0 0.0
        %1797 = vmatprep.subr.mxu0 0.0
        %1798 = vmatpush1.msra.mxu0 0.0
        %1799 = vmatprep.subr.mxu0 0.0
        %1800 = vmatpush1.msra.mxu0 0.0
        %1801 = vmatprep.subr.mxu0 0.0
        %1802 = vmatpush1.msra.mxu0 0.0
        %1803 = vmatprep.subr.mxu0 0.0
        %1804 = vmatpush1.msra.mxu0 %v1776
        %1805 = vmatprep.subr.mxu0 0.0
        %1806 = vmatpush1.msra.mxu0 %v1775
        %1807 = vmatprep.subr.mxu0 0.0
        %1808 = vmatpush1.msra.mxu0 %v1774
        %1809 = vmatprep.subr.mxu0 0.0
        %1810 = vmatpush1.msra.mxu0 %v1773
        %1811 = vmatprep.subr.mxu0 0.0
        %1812 = vmatpush2.msra.mxu0 0.0
        %1813 = vmatprep.subr.mxu0 0.0
        %1814 = vmatpush2.msra.mxu0 0.0
        %1815 = vmatprep.subr.mxu0 0.0
        %1816 = vmatpush2.msra.mxu0 0.0
        %1817 = vmatprep.subr.mxu0 0.0
        %1818 = vmatpush2.msra.mxu0 0.0
        %1819 = vmatprep.subr.mxu0 0.0
        %1820 = vmatpush2.msra.mxu0 0.0
        %1821 = vmatprep.subr.mxu0 0.0
        %1822 = vmatpush2.msra.mxu0 0.0
        %1823 = vmatprep.subr.mxu0 0.0
        %1824 = vmatpush2.msra.mxu0 0.0
        %1825 = vmatprep.subr.mxu0 0.0
        %1826 = vmatpush2.msra.mxu0 0.0
        %1827 = vmatprep.subr.mxu0 0.0
        %1828 = vmatpush2.msra.mxu0 0.0
        %1829 = vmatprep.subr.mxu0 0.0
        %1830 = vmatpush2.msra.mxu0 0.0
        %1831 = vmatprep.subr.mxu0 0.0
        %1832 = vmatpush2.msra.mxu0 0.0
        %1833 = vmatprep.subr.mxu0 0.0
        %1834 = vmatpush2.msra.mxu0 0.0
        %1835 = vmatprep.subr.mxu0 0.0
        %1836 = vmatpush2.msra.mxu0 0.0
        %1837 = vmatprep.subr.mxu0 0.0
        %1838 = vmatpush2.msra.mxu0 0.0
        %1839 = vmatprep.subr.mxu0 0.0
        %1840 = vmatpush2.msra.mxu0 0.0
        %1841 = vmatprep.subr.mxu0 0.0
        %1842 = vmatpush2.msra.mxu0 0.0
        %1843 = vmatprep.mubr.f32.mxu0 0.0
        %1844 = vmatmul.mubr.f32.gmra.mxu0 %v1777
        %v1845 = vpop.f32.mrf.mxu0
        %v1846 = vadd.f32 0.0, %v1845
        %v1847 = vpop.f32.mrf.mxu0
        %1848 = vdwg.mxu0
        %v1849 = vld [vmem:[%s916] sm:$0x3]
        %v1850 = vadd.f32 %v1849, %v1770
        %v1851 = vxor.u32 %v1850, 2147483648
        %v1852 = vmul.f32 %v1851, 1.442695
        %v1853 = vpow.pop %v1852
        %v1854 = vadd.f32 %v1853, 1.0
        %v1855 = vrcp.pop %v1854
        %v1856 = vmul.f32 1.0, %v1855
        %v1857 = vadd.f32 %v1770, %v1181
        %1859 = vrot.lane.b32.xlu0 %v1857, 64
        %v1860 = vpop.permute.xlu0 %1859
        %v1862 = vmul.f32 %v1856, %v1860
        %1864 = vrot.lane.b32.xlu0 %v1862, 64
        %v1865 = vpop.permute.xlu0 %1864
        %v1867 = vadd.f32 %v1849, %v1865
        %v1868 = vtanh.pop %v1867
        %v1869 = vsub.f32 1.0, %v1856
        %1871 = vrot.lane.b32.xlu0 %v1868, 96
        %v1872 = vpop.permute.xlu0 %1871
        %v1874 = vmul.f32 %v1869, %v1872
        %v1875 = vmul.f32 %v1856, %v1656
        %v1876 = vadd.f32 %v1874, %v1875
        %v1877 = vld [vmem:[%s1004] sm:$0x3]
        %v1878 = vadd.f32 %v1877, %v1846
        %v1879 = vxor.u32 %v1878, 2147483648
        %v1880 = vmul.f32 %v1879, 1.442695
        %v1881 = vpow.pop %v1880
        %v1882 = vadd.f32 %v1881, 1.0
        %v1883 = vrcp.pop %v1882
        %v1884 = vmul.f32 1.0, %v1883
        %v1885 = vadd.f32 %v1846, %v1220
        %1887 = vrot.lane.b32.xlu0 %v1885, 64
        %v1888 = vpop.permute.xlu0 %1887
        %v1890 = vmul.f32 %v1884, %v1888
        %1892 = vrot.lane.b32.xlu0 %v1890, 64
        %v1893 = vpop.permute.xlu0 %1892
        %v1895 = vadd.f32 %v1877, %v1893
        %v1896 = vtanh.pop %v1895
        %v1897 = vsub.f32 1.0, %v1884
        %1899 = vrot.lane.b32.xlu0 %v1896, 96
        %v1900 = vpop.permute.xlu0 %1899
        %v1902 = vmul.f32 %v1897, %v1900
        %v1903 = vmul.f32 %v1884, %v1684
        %v1904 = vadd.f32 %v1902, %v1903
        %1906 = vrot.lane.b32.xlu0 %v1876, 96
        %v1907 = vpop.permute.xlu0 %1906
        %s1909 = scalar_lea.vmem %s290, 6 [#allocation5]
        %1910 = vst.msk [vmem:[%s1909] sm:$0x3] %vm1249, %v1907
        %1912 = vrot.lane.b32.xlu0 %v1904, 96
        %v1913 = vpop.permute.xlu0 %1912
        %s1915 = scalar_lea.vmem %s290, 14 [#allocation5]
        %1916 = vst.msk [vmem:[%s1915] sm:$0x3] %vm1249, %v1913
        %1917 = vst.msk [vmem:[#allocation2] sm:$0x3] %vm1249, %v1907
        %1918 = vst.msk [vmem:[%s1010] sm:$0x3] %vm1249, %v1913
        %s1919 = sand.u32 %s134, 1
        %s1920 = sand.u32 %s134, 1
        %s1921 = smul.addr %s1920, 16
        %s1922 = scalar_lea.vmem [#allocation5], %s1921
        // Predicated region
        $region86: #{birnn_wrapper_forward.3} parent=76 // pred_check
          %p1923 = pneg %p144
        $region87: #{birnn_wrapper_forward.3} parent=76 // pred_check_branch
          %1925 = sbr.rel (%p1923) target = $region89
        $region88: #{birnn_wrapper_forward.3} parent=76 // pred_region
          %s1926 = smul.u32 4, %s16
          %s1927 = smul.addr %s1926, 2
          %s1928 = scalar_lea.vmem %s5, %s1927
          // Predicated region
          $region90: #{birnn_wrapper_forward.3} parent=88 // pred_check
            _
          $region91: #{birnn_wrapper_forward.3} parent=88 // pred_check_branch
            %1930 = sbr.rel (0) target = $region93
          $region92: #{birnn_wrapper_forward.3} parent=88 // pred_region
            // Predicated region
            $region94: #{birnn_wrapper_forward.3} parent=92 // pred_check
              _
            $region95: #{birnn_wrapper_forward.3} parent=92 // pred_check_branch
              %1932 = sbr.rel target = $region97
            $region96: #{birnn_wrapper_forward.3} parent=92 // pred_region
              // Predicated region
              $region109: #{birnn_wrapper_forward.3} parent=96 // pred_check
                _
              $region110: #{birnn_wrapper_forward.3} parent=96 // pred_check_branch
                %1962 = sbr.rel (0) target = $region112
              $region111: #{birnn_wrapper_forward.3} parent=96 // pred_region
                loop: start=0, step=1, limit=1
                $region113: #{birnn_wrapper_forward.3} parent=111 // loop_pre_header
                  _
                $region114: #{birnn_wrapper_forward.3} parent=111 // loop_header
                  %s1964 = sphi 0, %s1968
                  %p1965 = scmp.ge.s32.totalorder %s1964, 1
                  %s1969 = sphi %s1922, %s1922
                  %s1970 = sphi %s1928, %s1928
                $region115: #{birnn_wrapper_forward.3} parent=111 // loop_header_branch
                  %1967 = sbr.rel (%p1965) target = $region119
                $region116: #{birnn_wrapper_forward.3} parent=111 // loop_body
                  _
                $region117: #{birnn_wrapper_forward.3} parent=111 // loop_footer
                  %s1968 = sadd.s32 1, %s1964
                $region118: #{birnn_wrapper_forward.3} parent=111 // loop_footer_branch
                  %1963 = sbr.rel target = $region114
                $region119: #{birnn_wrapper_forward.3} parent=111 // loop_exit
                  _
                %s1972 = ssub.s32 4, 1
                loop: start=0, step=1, limit=1
                $region120: #{birnn_wrapper_forward.3} parent=111 // loop_pre_header
                  _
                $region121: #{birnn_wrapper_forward.3} parent=111 // loop_header
                  %s1974 = sphi 0, %s1978
                  %p1975 = scmp.ge.s32.totalorder %s1974, 1
                  %s1979 = sphi %s1922, %s1922
                  %s1980 = sphi %s1928, %s1928
                $region122: #{birnn_wrapper_forward.3} parent=111 // loop_header_branch
                  %1977 = sbr.rel (%p1975) target = $region126
                $region123: #{birnn_wrapper_forward.3} parent=111 // loop_body
                  %v1981 = vld [vmem:[%s1979] sm:%s1972]
                  %1982 = vst [vmem:[%s1980] sm:%s1972] %v1981
                  %v1983 = vld [vmem:[%s1979 + $0x2] sm:%s1972]
                  %1984 = vst [vmem:[%s1980 + $0x2] sm:%s1972] %v1983
                  %v1985 = vld [vmem:[%s1979 + $0x4] sm:%s1972]
                  %1986 = vst [vmem:[%s1980 + $0x4] sm:%s1972] %v1985
                  %v1987 = vld [vmem:[%s1979 + $0x6] sm:%s1972]
                  %1988 = vst [vmem:[%s1980 + $0x6] sm:%s1972] %v1987
                  %v1989 = vld [vmem:[%s1979 + $0x8] sm:%s1972]
                  %1990 = vst [vmem:[%s1980 + $0x10] sm:%s1972] %v1989
                  %v1991 = vld [vmem:[%s1979 + $0xa] sm:%s1972]
                  %1992 = vst [vmem:[%s1980 + $0x12] sm:%s1972] %v1991
                  %v1993 = vld [vmem:[%s1979 + $0xc] sm:%s1972]
                  %1994 = vst [vmem:[%s1980 + $0x14] sm:%s1972] %v1993
                  %v1995 = vld [vmem:[%s1979 + $0xe] sm:%s1972]
                  %1996 = vst [vmem:[%s1980 + $0x16] sm:%s1972] %v1995
                $region124: #{birnn_wrapper_forward.3} parent=111 // loop_footer
                  %s1978 = sadd.s32 1, %s1974
                $region125: #{birnn_wrapper_forward.3} parent=111 // loop_footer_branch
                  %1973 = sbr.rel target = $region121
                $region126: #{birnn_wrapper_forward.3} parent=111 // loop_exit
                  _
              $region112: #{birnn_wrapper_forward.3} parent=96 // pred_fallthru
                _
            $region97: #{birnn_wrapper_forward.3} parent=92 // pred_fallthru
              _
            // Predicated region
            $region98: #{birnn_wrapper_forward.3} parent=92 // pred_check
              _
            $region99: #{birnn_wrapper_forward.3} parent=92 // pred_check_branch
              %1934 = sbr.rel (0) target = $region101
            $region100: #{birnn_wrapper_forward.3} parent=92 // pred_region
              %s1936 = ssub.s32 4, 1
              loop: start=0, step=1, limit=1
              $region102: #{birnn_wrapper_forward.3} parent=100 // loop_pre_header
                _
              $region103: #{birnn_wrapper_forward.3} parent=100 // loop_header
                %s1938 = sphi 0, %s1942
                %p1939 = scmp.ge.s32.totalorder %s1938, 1
                %s1943 = sphi %s1922, %s1922
                %s1944 = sphi %s1928, %s1928
              $region104: #{birnn_wrapper_forward.3} parent=100 // loop_header_branch
                %1941 = sbr.rel (%p1939) target = $region108
              $region105: #{birnn_wrapper_forward.3} parent=100 // loop_body
                %v1945 = vld [vmem:[%s1943] sm:%s1936]
                %1946 = vst [vmem:[%s1944] sm:%s1936] %v1945
                %v1947 = vld [vmem:[%s1943 + $0x2] sm:%s1936]
                %1948 = vst [vmem:[%s1944 + $0x2] sm:%s1936] %v1947
                %v1949 = vld [vmem:[%s1943 + $0x4] sm:%s1936]
                %1950 = vst [vmem:[%s1944 + $0x4] sm:%s1936] %v1949
                %v1951 = vld [vmem:[%s1943 + $0x6] sm:%s1936]
                %1952 = vst [vmem:[%s1944 + $0x6] sm:%s1936] %v1951
                %v1953 = vld [vmem:[%s1943 + $0x8] sm:%s1936]
                %1954 = vst [vmem:[%s1944 + $0x10] sm:%s1936] %v1953
                %v1955 = vld [vmem:[%s1943 + $0xa] sm:%s1936]
                %1956 = vst [vmem:[%s1944 + $0x12] sm:%s1936] %v1955
                %v1957 = vld [vmem:[%s1943 + $0xc] sm:%s1936]
                %1958 = vst [vmem:[%s1944 + $0x14] sm:%s1936] %v1957
                %v1959 = vld [vmem:[%s1943 + $0xe] sm:%s1936]
                %1960 = vst [vmem:[%s1944 + $0x16] sm:%s1936] %v1959
              $region106: #{birnn_wrapper_forward.3} parent=100 // loop_footer
                %s1942 = sadd.s32 1, %s1938
              $region107: #{birnn_wrapper_forward.3} parent=100 // loop_footer_branch
                %1937 = sbr.rel target = $region103
              $region108: #{birnn_wrapper_forward.3} parent=100 // loop_exit
                _
            $region101: #{birnn_wrapper_forward.3} parent=92 // pred_fallthru
              _
          $region93: #{birnn_wrapper_forward.3} parent=88 // pred_fallthru
            _
          %1997 = vnop
        $region89: #{birnn_wrapper_forward.3} parent=76 // pred_fallthru
          _
      $region77: #{birnn_wrapper_forward.3} parent=5 // pred_fallthru
        _
      %p1998 = scmp.le.s32.totalorder 2, %s11
      // Predicated region
      $region127: #{birnn_wrapper_forward.3} parent=5 // pred_check
        %p1999 = pneg %p1998
      $region128: #{birnn_wrapper_forward.3} parent=5 // pred_check_branch
        %2001 = sbr.rel (%p1999) target = $region130
      $region129: #{birnn_wrapper_forward.3} parent=5 // pred_region
        %s2002 = ssub.s32 %s11, 2
        // Predicated region
        $region131: #{birnn_wrapper_forward.3} parent=129 // pred_check
          %p2003 = pneg %p150
        $region132: #{birnn_wrapper_forward.3} parent=129 // pred_check_branch
          %2005 = sbr.rel (%p2003) target = $region134
        $region133: #{birnn_wrapper_forward.3} parent=129 // pred_region
          %s2006 = sand.u32 %s135, 1
          %s2007 = sand.u32 %s135, 1
          %s2008 = smul.addr %s2007, 16
          %s2009 = scalar_lea.vmem [#allocation5], %s2008
        $region134: #{birnn_wrapper_forward.3} parent=129 // pred_fallthru
          _
      $region130: #{birnn_wrapper_forward.3} parent=5 // pred_fallthru
        _
    $region6: #{birnn_wrapper_forward.3} parent=1 // loop_footer
      %s15 = sadd.s32 1, %s11
    $region7: #{birnn_wrapper_forward.3} parent=1 // loop_footer_branch
      %10 = sbr.rel target = $region3
    $region8: #{birnn_wrapper_forward.3} parent=1 // loop_exit
      _

</llo_original>
